<compile_context>
chip_gen: v5e
topology: v5e:2x2
jax: 0.10.0
libtpu: 0.0.40
codegen_flags: <defaults>
</compile_context>

<pallas_src>
import functools
import math

import jax
import jax.numpy as jnp
import numpy as np
from jax.experimental import pallas as pl
from jax.experimental.pallas import tpu as pltpu

LN_EPS = 1e-6           # config.layer_norm_eps
ROPE_BASE = 10000.0


# ----------------------------------------------------------------------------- helpers

def _rotate_half_matrix(num_heads, head_dim):
    """Signed permutation R with (x @ R) == torch _rotate_half applied per half-head block."""
    H = num_heads * head_dim
    half = head_dim // 2
    m = head_dim // 4
    R = np.zeros((H, H), np.float32)
    for h in range(num_heads):
        for p in range(2):                      # the two rotary halves of each head
            base = h * head_dim + p * half
            for j in range(m):
                R[base + m + j, base + j] = -1.0   # out[:m]  = -x[m:]
                R[base + j, base + m + j] = 1.0    # out[m:]  =  x[:m]
    return jnp.asarray(R)


def _rotary_tables(position_ids, head_dim):
    """cos/sin (B,S,head_dim//2) for both position-id sets (GLM MegatronRotaryEmbedding)."""
    half = head_dim // 2
    inv_freq = 1.0 / (ROPE_BASE ** (jnp.arange(0, half, 2, dtype=jnp.float32) / half))  # (hd//4,)

    def tab(pos):
        ang = pos.astype(jnp.float32)[..., None] * inv_freq          # (B,S,hd//4)
        emb = jnp.concatenate([ang, ang], axis=-1)                   # (B,S,hd//2)
        return jnp.cos(emb), jnp.sin(emb)

    cos1, sin1 = tab(position_ids[:, 0, :])
    cos2, sin2 = tab(position_ids[:, 1, :])
    return cos1, sin1, cos2, sin2


def _pick_tile(s, target):
    """Largest multiple-of-8 divisor of s that is <= target (or s itself)."""
    if s <= target:
        return s
    t = (target // 8) * 8
    while t >= 8:
        if s % t == 0:
            return t
        t -= 8
    return s


def _vmem_limit_bytes():
    """Generation-aware scoped-VMEM limit (~85% of physical, capped)."""
    try:
        cap = pltpu.get_tpu_info().vmem_capacity_bytes
        return int(min(cap * 0.85, 110 * 1024 * 1024))
    except Exception:
        return 48 * 1024 * 1024


# ----------------------------------------------------------------------------- kernel

def _flash_attn_kernel(xq_ref, xkv_ref, wq2_ref, wkv3_ref, wo_ref, vec_ref,
                       cosq_ref, sinq_ref, cosk_ref, sink_ref,
                       o_ref,
                       q_scr, k_scr, v_scr, acc_scr, m_scr, l_scr,
                       *, num_heads, head_dim, norm_type, eps, matmul_dtype):
    """Fused Norm -> QKV -> 2D rotary -> online-softmax attention -> output dense + residual.

    Grid = (batch, q_tile, kv_tile); the KV axis is the innermost "arbitrary" reduction axis.

    xq_ref   : (1, tq, H)  hidden_states rows of this q tile
    xkv_ref  : (1, tk, H)  hidden_states rows of this KV tile
    wq2_ref  : (H, 2H)     [WqT | WqT@R]                  (matmul_dtype)
    wkv3_ref : (H, 3H)     [WkT | WkT@R | WvT]            (matmul_dtype)
    wo_ref   : (H, H)      WoT                            (matmul_dtype)
    vec_ref  : (8, H) f32  [gamma, beta, bq, bq@R, bk, bk@R, bv, bo]
    cos/sin  : (1, t, hd)  per-token rotary tables (broadcast over heads in-kernel)
    o_ref    : (1, tq, H)  attention output (written on the last KV step)
    scratch  : q (tq,H) md, k (tk,H) md, v (tk,H) md, acc (tq,H) f32, m/l (tq,nh) f32
    """
    md = matmul_dtype
    H = xq_ref.shape[-1]
    nh, hd = num_heads, head_dim
    ki = pl.program_id(2)

    gamma = vec_ref[0:1]                                   # (1, H)
    beta = vec_ref[1:2]

    def norm(x):
        if norm_type == "layernorm":
            mu = jnp.mean(x, axis=-1, keepdims=True)
            xc = x - mu
            var = jnp.mean(xc * xc, axis=-1, keepdims=True)
            return xc * jax.lax.rsqrt(var + eps) * gamma + beta
        var = jnp.mean(x * x, axis=-1, keepdims=True)      # RMSNorm
        return x * jax.lax.rsqrt(var + eps) * gamma

    def over_heads(t):                                      # (rows, hd) -> (rows, H)
        return jnp.concatenate([t] * nh, axis=-1)

    # ---- first KV step for this (batch, q-tile): cache Q, reset the softmax state ----
    @pl.when(ki == 0)
    def _():
        xq = norm(xq_ref[0].astype(jnp.float32))                              # (tq, H)
        qall = jnp.dot(xq.astype(md), wq2_ref[...],
                       preferred_element_type=jnp.float32)                    # (tq, 2H)
        q_raw = qall[:, :H] + vec_ref[2:3]
        q_rot = qall[:, H:] + vec_ref[3:4]                                    # rotate_half(q), weight-folded
        q = q_raw * over_heads(cosq_ref[0]) + q_rot * over_heads(sinq_ref[0])
        q_scr[...] = (q * (1.0 / math.sqrt(hd))).astype(md)                   # fold 1/sqrt(hd) into Q
        m_scr[...] = jnp.full_like(m_scr, -jnp.inf)
        l_scr[...] = jnp.zeros_like(l_scr)
        acc_scr[...] = jnp.zeros_like(acc_scr)

    # ---- project + rotate this KV tile (one fused wide matmul) ----
    xk = norm(xkv_ref[0].astype(jnp.float32))                                 # (tk, H)
    kall = jnp.dot(xk.astype(md), wkv3_ref[...],
                   preferred_element_type=jnp.float32)                        # (tk, 3H)
    k_raw = kall[:, :H] + vec_ref[4:5]
    k_rot = kall[:, H:2 * H] + vec_ref[5:6]
    k = k_raw * over_heads(cosk_ref[0]) + k_rot * over_heads(sink_ref[0])
    k_scr[...] = k.astype(md)
    v_scr[...] = (kall[:, 2 * H:] + vec_ref[6:7]).astype(md)

    # ---- per-head online-softmax update (static loop, static lane slices) ----
    for h in range(nh):
        lo, hi = h * hd, (h + 1) * hd
        s = jax.lax.dot_general(q_scr[:, lo:hi], k_scr[:, lo:hi],
                                (((1,), (1,)), ((), ())),
                                preferred_element_type=jnp.float32)           # (tq, tk)
        m_prev = m_scr[:, h:h + 1]
        m_new = jnp.maximum(m_prev, jnp.max(s, axis=-1, keepdims=True))
        alpha = jnp.exp(m_prev - m_new)
        p = jnp.exp(s - m_new)
        l_scr[:, h:h + 1] = alpha * l_scr[:, h:h + 1] + jnp.sum(p, axis=-1, keepdims=True)
        pv = jnp.dot(p.astype(md), v_scr[:, lo:hi], preferred_element_type=jnp.float32)
        acc_scr[:, lo:hi] = alpha * acc_scr[:, lo:hi] + pv
        m_scr[:, h:h + 1] = m_new

    # ---- last KV step: normalize, output projection, residual ----
    @pl.when(ki == pl.num_programs(2) - 1)
    def _():
        ctx = jnp.concatenate(
            [(acc_scr[:, h * hd:(h + 1) * hd]
              * pl.reciprocal(l_scr[:, h:h + 1], approx=True)).astype(md)
             for h in range(nh)], axis=-1)                                    # (tq, H)
        attn = jnp.dot(ctx, wo_ref[...], preferred_element_type=jnp.float32) + vec_ref[7:8]
        # residual uses the *pre-norm* hidden states; re-read the ref here so no f32 copy
        # of the tile stays live across the matmul-heavy body.
        o_ref[0] = (xq_ref[0].astype(jnp.float32) + attn).astype(o_ref.dtype)


# ----------------------------------------------------------------------------- wrapper

def cell_spatial_attention(hidden_states, position_ids, params, *, num_heads,
                           norm_type="rmsnorm", eps=LN_EPS, matmul_dtype=jnp.bfloat16,
                           q_tile=256, kv_tile=256):
    B, S, H = hidden_states.shape
    assert H % num_heads == 0
    hd = H // num_heads
    assert hd % 4 == 0, "GLM 2D rotary needs head_dim divisible by 4"

    tq = _pick_tile(S, q_tile)
    tk = _pick_tile(S, kv_tile)
    n_q, n_kv = S // tq, S // tk

    # ---- fold rotate_half into the Q/K weights (R is an exact signed permutation) and fuse
    #      the projections into two wide matmuls ----
    R = _rotate_half_matrix(num_heads, hd)
    wqT, wkT, wvT, woT = (params["wq"].T, params["wk"].T, params["wv"].T, params["wo"].T)
    wq2 = jnp.concatenate([wqT, wqT @ R], axis=1).astype(matmul_dtype)        # (H, 2H)
    wkv3 = jnp.concatenate([wkT, wkT @ R, wvT], axis=1).astype(matmul_dtype)  # (H, 3H)
    wo = woT.astype(matmul_dtype)                                             # (H, H)
    vecs = jnp.stack([params["ln_w"], params["ln_b"],
                      params["bq"], params["bq"] @ R,
                      params["bk"], params["bk"] @ R,
                      params["bv"], params["bo"]]).astype(jnp.float32)        # (8, H)

    # ---- per-token rotary tables, (B, S, hd) only; head broadcast happens in-kernel ----
    cos1, sin1, cos2, sin2 = _rotary_tables(position_ids, hd)
    cos_hd = jnp.concatenate([cos1, cos2], axis=-1)                           # (B, S, hd)
    sin_hd = jnp.concatenate([sin1, sin2], axis=-1)                           # (B, S, hd)

    kernel = functools.partial(_flash_attn_kernel, num_heads=num_heads, head_dim=hd,
                               norm_type=norm_type, eps=eps, matmul_dtype=matmul_dtype)

    q_rows = lambda b, qi, ki: (b, qi, 0)
    kv_rows = lambda b, qi, ki: (b, ki, 0)

    def build(single_buffer_weights):
        def inv_spec(shape):
            imap = lambda b, qi, ki, _n=len(shape): (0,) * _n
            if single_buffer_weights:
                return pl.BlockSpec(shape, imap, pipeline_mode=pl.Buffered(buffer_count=1))
            return pl.BlockSpec(shape, imap)

        return pl.pallas_call(
            kernel,
            out_shape=jax.ShapeDtypeStruct((B, S, H), hidden_states.dtype),
            grid=(B, n_q, n_kv),
            in_specs=[
                pl.BlockSpec((1, tq, H), q_rows),       # hidden_states, query rows
                pl.BlockSpec((1, tk, H), kv_rows),      # hidden_states, key/value rows
                inv_spec((H, 2 * H)),                   # [WqT | WqT@R]
                inv_spec((H, 3 * H)),                   # [WkT | WkT@R | WvT]
                inv_spec((H, H)),                       # WoT
                inv_spec((8, H)),                       # gamma/beta + biases
                pl.BlockSpec((1, tq, hd), q_rows),      # cos, query rows
                pl.BlockSpec((1, tq, hd), q_rows),      # sin, query rows
                pl.BlockSpec((1, tk, hd), kv_rows),     # cos, key rows
                pl.BlockSpec((1, tk, hd), kv_rows),     # sin, key rows
            ],
            out_specs=pl.BlockSpec((1, tq, H), q_rows),
            scratch_shapes=[
                pltpu.VMEM((tq, H), matmul_dtype),          # Q (rotated, pre-scaled)
                pltpu.VMEM((tk, H), matmul_dtype),          # K (rotated)
                pltpu.VMEM((tk, H), matmul_dtype),          # V
                pltpu.VMEM((tq, H), jnp.float32),           # online-softmax accumulator
                pltpu.VMEM((tq, num_heads), jnp.float32),   # running max per head
                pltpu.VMEM((tq, num_heads), jnp.float32),   # running denom per head
            ],
            compiler_params=pltpu.CompilerParams(
                dimension_semantics=("parallel", "parallel", "arbitrary"),
                vmem_limit_bytes=_vmem_limit_bytes(),
            ),
        )

    args = (hidden_states, hidden_states, wq2, wkv3, wo, vecs,
            cos_hd, sin_hd, cos_hd, sin_hd)
    try:
        # single-buffer the block-invariant weight/bias operands (saves ~half the weight VMEM)
        return build(True)(*args)
    except Exception:
        # pl.Buffered(1) not supported by this jax/Mosaic version -> default double buffering.
        return build(False)(*args)


# ----------------------------------------------------------------------------- reference

def cell_spatial_attention_ref(hidden_states, position_ids, params, *, num_heads,
                               norm_type="rmsnorm", eps=LN_EPS, matmul_dtype=jnp.bfloat16):
    """Pure-JAX reference mirroring the PyTorch forward (flash path, eval mode)."""
    B, S, H = hidden_states.shape
    hd = H // num_heads
    md = matmul_dtype
    x = hidden_states.astype(jnp.float32)

    if norm_type == "layernorm":
        mu = jnp.mean(x, -1, keepdims=True)
        xc = x - mu
        var = jnp.mean(xc * xc, -1, keepdims=True)
        xn = xc * jax.lax.rsqrt(var + eps) * params["ln_w"] + params["ln_b"]
    else:
        var = jnp.mean(x * x, -1, keepdims=True)
        xn = x * jax.lax.rsqrt(var + eps) * params["ln_w"]

    def lin(z, w, b):
        return jnp.dot(z.astype(md), w.T.astype(md), preferred_element_type=jnp.float32) + b

    q = lin(xn, params["wq"], params["bq"]).reshape(B, S, num_heads, hd)
    k = lin(xn, params["wk"], params["bk"]).reshape(B, S, num_heads, hd)
    v = lin(xn, params["wv"], params["bv"]).reshape(B, S, num_heads, hd)

    cos1, sin1, cos2, sin2 = _rotary_tables(position_ids, hd)

    def rot(t, cos, sin):
        c, s = cos[:, :, None, :], sin[:, :, None, :]
        t1, t2 = jnp.split(t, 2, axis=-1)
        return t * c + jnp.concatenate([-t2, t1], axis=-1) * s

    half = hd // 2
    q = jnp.concatenate([rot(q[..., :half], cos1, sin1), rot(q[..., half:], cos2, sin2)], -1)
    k = jnp.concatenate([rot(k[..., :half], cos1, sin1), rot(k[..., half:], cos2, sin2)], -1)

    scale = 1.0 / math.sqrt(hd)
    s = jnp.einsum("bqhd,bkhd->bhqk", q.astype(md), k.astype(md),
                   preferred_element_type=jnp.float32) * scale
    p = jax.nn.softmax(s, axis=-1)                               # no mask, no dropout (flash path)
    ctx = jnp.einsum("bhqk,bkhd->bqhd", p.astype(md), v.astype(md),
                     preferred_element_type=jnp.float32).reshape(B, S, H)
    attn_out = jnp.dot(ctx.astype(md), params["wo"].T.astype(md),
                       preferred_element_type=jnp.float32) + params["bo"]
    return x + attn_out


def init_params(key, hidden_size):
    ks = jax.random.split(key, 10)
    s, H = 0.02, hidden_size
    return {
        "ln_w": 1.0 + s * jax.random.normal(ks[0], (H,), jnp.float32),
        "ln_b": s * jax.random.normal(ks[1], (H,), jnp.float32),
        "wq": s * jax.random.normal(ks[2], (H, H), jnp.float32),
        "bq": s * jax.random.normal(ks[3], (H,), jnp.float32),
        "wk": s * jax.random.normal(ks[4], (H, H), jnp.float32),
        "bk": s * jax.random.normal(ks[5], (H,), jnp.float32),
        "wv": s * jax.random.normal(ks[6], (H, H), jnp.float32),
        "bv": s * jax.random.normal(ks[7], (H,), jnp.float32),
        "wo": s * jax.random.normal(ks[8], (H, H), jnp.float32),
        "bo": s * jax.random.normal(ks[9], (H,), jnp.float32),
    }


if __name__ == "__main__":
    key = jax.random.PRNGKey(0)
    k_x, k_p, k_x2, k_p2 = jax.random.split(key, 4)

    # --- small smoke test (single q tile, single KV step) --------------------------------
    B, S, H, NH = 2, 8, 32, 4
    hidden_states = jax.random.normal(k_x, (B, S, H), jnp.float32)
    # GLM-style 2D position ids: [position_ids, block_position_ids], shape (B, 2, S), pad-free
    pos = jnp.broadcast_to(jnp.arange(S, dtype=jnp.int32), (B, S))
    block_pos = jnp.broadcast_to(jnp.arange(S, dtype=jnp.int32) // 2, (B, S))
    position_ids = jnp.stack([pos, block_pos], axis=1)
    params = init_params(k_p, H)

    out = cell_spatial_attention(hidden_states, position_ids, params, num_heads=NH)
    out = jax.block_until_ready(out)
    ref = cell_spatial_attention_ref(hidden_states, position_ids, params, num_heads=NH)
    assert out.shape == (B, S, H)
    err = float(jnp.max(jnp.abs(out - ref)))
    assert jnp.allclose(out, ref, atol=5e-3, rtol=5e-3), f"small-case max abs err = {err}"

    # --- tiled test: multiple q tiles and KV steps exercise the online softmax path ------
    B2, S2, H2, NH2 = 2, 256, 256, 4
    hidden2 = jax.random.normal(k_x2, (B2, S2, H2), jnp.float32)
    pos2 = jnp.broadcast_to(jnp.arange(S2, dtype=jnp.int32), (B2, S2))
    block_pos2 = jnp.broadcast_to(jnp.arange(S2, dtype=jnp.int32) // 4, (B2, S2))
    position_ids2 = jnp.stack([pos2, block_pos2], axis=1)
    params2 = init_params(k_p2, H2)

    out2 = cell_spatial_attention(hidden2, position_ids2, params2, num_heads=NH2,
                                  q_tile=128, kv_tile=128)
    out2 = jax.block_until_ready(out2)
    ref2 = cell_spatial_attention_ref(hidden2, position_ids2, params2, num_heads=NH2)
    err2 = float(jnp.max(jnp.abs(out2 - ref2)))
    assert jnp.allclose(out2, ref2, atol=1e-2, rtol=1e-2), f"tiled-case max abs err = {err2}"

    print("KERNEL_OK")
</pallas_src>

<mosaic_0001>
module attributes {stable_mosaic.version = 11 : i64} {
  func.func @_flash_attn_kernel(%arg0: i32, %arg1: i32, %arg2: i32, %arg3: memref<1x8x32xf32, #tpu.memory_space<vmem>>, %arg4: memref<1x8x32xf32, #tpu.memory_space<vmem>>, %arg5: memref<32x64xbf16, #tpu.memory_space<vmem>>, %arg6: memref<32x96xbf16, #tpu.memory_space<vmem>>, %arg7: memref<32x32xbf16, #tpu.memory_space<vmem>>, %arg8: memref<8x32xf32, #tpu.memory_space<vmem>>, %arg9: memref<1x8x8xf32, #tpu.memory_space<vmem>>, %arg10: memref<1x8x8xf32, #tpu.memory_space<vmem>>, %arg11: memref<1x8x8xf32, #tpu.memory_space<vmem>>, %arg12: memref<1x8x8xf32, #tpu.memory_space<vmem>>, %arg13: memref<1x8x32xf32, #tpu.memory_space<vmem>>, %arg14: memref<8x32xbf16, #tpu.memory_space<vmem>>, %arg15: memref<8x32xbf16, #tpu.memory_space<vmem>>, %arg16: memref<8x32xbf16, #tpu.memory_space<vmem>>, %arg17: memref<8x32xf32, #tpu.memory_space<vmem>>, %arg18: memref<8x4xf32, #tpu.memory_space<vmem>>, %arg19: memref<8x4xf32, #tpu.memory_space<vmem>>) attributes {dimension_semantics = [#tpu.dimension_semantics<parallel>, #tpu.dimension_semantics<parallel>, #tpu.dimension_semantics<arbitrary>], iteration_bounds = array<i64: 2, 1, 1>, scalar_prefetch = 0 : i64, scratch_operands = 6 : i64, tpu.core_type = #tpu.core_type<tc>, window_params = [{transform_indices = @transform_0, window_bounds = array<i64: 1, 8, 32>}, {transform_indices = @transform_1, window_bounds = array<i64: 1, 8, 32>}, {pipeline_mode = #tpu.pipeline_mode<synchronous>, transform_indices = @transform_2, window_bounds = array<i64: 32, 64>}, {pipeline_mode = #tpu.pipeline_mode<synchronous>, transform_indices = @transform_3, window_bounds = array<i64: 32, 96>}, {pipeline_mode = #tpu.pipeline_mode<synchronous>, transform_indices = @transform_4, window_bounds = array<i64: 32, 32>}, {pipeline_mode = #tpu.pipeline_mode<synchronous>, transform_indices = @transform_5, window_bounds = array<i64: 8, 32>}, {transform_indices = @transform_6, window_bounds = array<i64: 1, 8, 8>}, {transform_indices = @transform_7, window_bounds = array<i64: 1, 8, 8>}, {transform_indices = @transform_8, window_bounds = array<i64: 1, 8, 8>}, {transform_indices = @transform_9, window_bounds = array<i64: 1, 8, 8>}, {transform_indices = @transform_10, window_bounds = array<i64: 1, 8, 32>}]} {
    %c0 = arith.constant 0 : index
    %c0_0 = arith.constant 0 : index
    %0 = vector.load %arg8[%c0, %c0_0] : memref<8x32xf32, #tpu.memory_space<vmem>>, vector<1x32xf32>
    %c0_i32 = arith.constant 0 : i32
    %1 = arith.cmpi eq, %arg2, %c0_i32 : i32
    %2 = arith.extui %1 : i1 to i32
    %c0_i32_1 = arith.constant 0 : i32
    %3 = arith.cmpi ne, %2, %c0_i32_1 : i32
    scf.if %3 {
      %c0_107 = arith.constant 0 : index
      %c0_108 = arith.constant 0 : index
      %c0_109 = arith.constant 0 : index
      %157 = vector.load %arg3[%c0_107, %c0_108, %c0_109] : memref<1x8x32xf32, #tpu.memory_space<vmem>>, vector<1x8x32xf32>
      %158 = vector.shape_cast %157 : vector<1x8x32xf32> to vector<8x32xf32>
      %159 = arith.mulf %158, %158 : vector<8x32xf32>
      %cst_110 = arith.constant dense<0.000000e+00> : vector<8xf32>
      %160 = vector.multi_reduction <add>, %159, %cst_110 [1] : vector<8x32xf32> to vector<8xf32>
      %161 = vector.shape_cast %160 : vector<8xf32> to vector<8x1xf32>
      %cst_111 = arith.constant 3.200000e+01 : f32
      %162 = vector.broadcast %cst_111 : f32 to vector<8x1xf32>
      %163 = arith.divf %161, %162 : vector<8x1xf32>
      %cst_112 = arith.constant 9.99999997E-7 : f32
      %164 = vector.broadcast %cst_112 : f32 to vector<8x1xf32>
      %165 = arith.addf %163, %164 : vector<8x1xf32>
      %166 = math.rsqrt %165 : vector<8x1xf32>
      %167 = vector.broadcast %166 : vector<8x1xf32> to vector<8x32xf32>
      %168 = arith.mulf %158, %167 : vector<8x32xf32>
      %169 = vector.broadcast %0 : vector<1x32xf32> to vector<8x32xf32>
      %170 = arith.mulf %168, %169 : vector<8x32xf32>
      %171 = arith.truncf %170 : vector<8x32xf32> to vector<8x32xbf16>
      %c0_113 = arith.constant 0 : index
      %c0_114 = arith.constant 0 : index
      %172 = vector.load %arg5[%c0_113, %c0_114] : memref<32x64xbf16, #tpu.memory_space<vmem>>, vector<32x64xbf16>
      %cst_115 = arith.constant dense<0.000000e+00> : vector<8x64xf32>
      %173 = tpu.matmul %171, %172, %cst_115 {dimension_numbers = #tpu.dot_dimension_numbers<[1], [0], [0], [1], [0, 0, 1, 1], [], []>} : vector<8x32xbf16>, vector<32x64xbf16>, vector<8x64xf32> -> vector<8x64xf32>
      %174 = vector.extract_strided_slice %173 {offsets = [0, 0], sizes = [8, 32], strides = [1, 1]} : vector<8x64xf32> to vector<8x32xf32>
      %c2_116 = arith.constant 2 : index
      %c0_117 = arith.constant 0 : index
      %175 = vector.load %arg8[%c2_116, %c0_117] : memref<8x32xf32, #tpu.memory_space<vmem>>, vector<1x32xf32>
      %176 = vector.broadcast %175 : vector<1x32xf32> to vector<8x32xf32>
      %177 = arith.addf %174, %176 : vector<8x32xf32>
      %178 = vector.extract_strided_slice %173 {offsets = [0, 32], sizes = [8, 32], strides = [1, 1]} : vector<8x64xf32> to vector<8x32xf32>
      %c3_118 = arith.constant 3 : index
      %c0_119 = arith.constant 0 : index
      %179 = vector.load %arg8[%c3_118, %c0_119] : memref<8x32xf32, #tpu.memory_space<vmem>>, vector<1x32xf32>
      %180 = vector.broadcast %179 : vector<1x32xf32> to vector<8x32xf32>
      %181 = arith.addf %178, %180 : vector<8x32xf32>
      %c0_120 = arith.constant 0 : index
      %c0_121 = arith.constant 0 : index
      %c0_122 = arith.constant 0 : index
      %182 = vector.load %arg9[%c0_120, %c0_121, %c0_122] : memref<1x8x8xf32, #tpu.memory_space<vmem>>, vector<1x8x8xf32>
      %183 = vector.shape_cast %182 : vector<1x8x8xf32> to vector<8x8xf32>
      %184 = tpu.concatenate %183, %183, %183, %183 in 1 : vector<8x8xf32>, vector<8x8xf32>, vector<8x8xf32>, vector<8x8xf32> -> vector<8x32xf32>
      %185 = arith.mulf %177, %184 : vector<8x32xf32>
      %c0_123 = arith.constant 0 : index
      %c0_124 = arith.constant 0 : index
      %c0_125 = arith.constant 0 : index
      %186 = vector.load %arg10[%c0_123, %c0_124, %c0_125] : memref<1x8x8xf32, #tpu.memory_space<vmem>>, vector<1x8x8xf32>
      %187 = vector.shape_cast %186 : vector<1x8x8xf32> to vector<8x8xf32>
      %188 = tpu.concatenate %187, %187, %187, %187 in 1 : vector<8x8xf32>, vector<8x8xf32>, vector<8x8xf32>, vector<8x8xf32> -> vector<8x32xf32>
      %189 = arith.mulf %181, %188 : vector<8x32xf32>
      %190 = arith.addf %185, %189 : vector<8x32xf32>
      %cst_126 = arith.constant 0.353553385 : f32
      %191 = vector.broadcast %cst_126 : f32 to vector<8x32xf32>
      %192 = arith.mulf %190, %191 : vector<8x32xf32>
      %193 = arith.truncf %192 : vector<8x32xf32> to vector<8x32xbf16>
      %c0_127 = arith.constant 0 : index
      %c0_128 = arith.constant 0 : index
      %194 = vector.load %arg14[%c0_127, %c0_128] : memref<8x32xbf16, #tpu.memory_space<vmem>>, vector<8x32xbf16>
      tpu.vector_store %arg14[%c0_127, %c0_128], %193 {strides = array<i32>} : memref<8x32xbf16, #tpu.memory_space<vmem>>, vector<8x32xbf16>,
      %cst_129 = arith.constant 0xFF800000 : f32
      %195 = vector.broadcast %cst_129 : f32 to vector<8x4xf32>
      %c0_130 = arith.constant 0 : index
      %c0_131 = arith.constant 0 : index
      %196 = vector.load %arg18[%c0_130, %c0_131] : memref<8x4xf32, #tpu.memory_space<vmem>>, vector<8x4xf32>
      tpu.vector_store %arg18[%c0_130, %c0_131], %195 {strides = array<i32>} : memref<8x4xf32, #tpu.memory_space<vmem>>, vector<8x4xf32>,
      %cst_132 = arith.constant 0.000000e+00 : f32
      %197 = vector.broadcast %cst_132 : f32 to vector<8x4xf32>
      %c0_133 = arith.constant 0 : index
      %c0_134 = arith.constant 0 : index
      %198 = vector.load %arg19[%c0_133, %c0_134] : memref<8x4xf32, #tpu.memory_space<vmem>>, vector<8x4xf32>
      tpu.vector_store %arg19[%c0_133, %c0_134], %197 {strides = array<i32>} : memref<8x4xf32, #tpu.memory_space<vmem>>, vector<8x4xf32>,
      %cst_135 = arith.constant 0.000000e+00 : f32
      %199 = vector.broadcast %cst_135 : f32 to vector<8x32xf32>
      %c0_136 = arith.constant 0 : index
      %c0_137 = arith.constant 0 : index
      %200 = vector.load %arg17[%c0_136, %c0_137] : memref<8x32xf32, #tpu.memory_space<vmem>>, vector<8x32xf32>
      tpu.vector_store %arg17[%c0_136, %c0_137], %199 {strides = array<i32>} : memref<8x32xf32, #tpu.memory_space<vmem>>, vector<8x32xf32>,
    } else {
    }
    %c0_2 = arith.constant 0 : index
    %c0_3 = arith.constant 0 : index
    %c0_4 = arith.constant 0 : index
    %4 = vector.load %arg4[%c0_2, %c0_3, %c0_4] : memref<1x8x32xf32, #tpu.memory_space<vmem>>, vector<1x8x32xf32>
    %5 = vector.shape_cast %4 : vector<1x8x32xf32> to vector<8x32xf32>
    %6 = arith.mulf %5, %5 : vector<8x32xf32>
    %cst = arith.constant dense<0.000000e+00> : vector<8xf32>
    %7 = vector.multi_reduction <add>, %6, %cst [1] : vector<8x32xf32> to vector<8xf32>
    %8 = vector.shape_cast %7 : vector<8xf32> to vector<8x1xf32>
    %cst_5 = arith.constant 3.200000e+01 : f32
    %9 = vector.broadcast %cst_5 : f32 to vector<8x1xf32>
    %10 = arith.divf %8, %9 : vector<8x1xf32>
    %cst_6 = arith.constant 9.99999997E-7 : f32
    %11 = vector.broadcast %cst_6 : f32 to vector<8x1xf32>
    %12 = arith.addf %10, %11 : vector<8x1xf32>
    %13 = math.rsqrt %12 : vector<8x1xf32>
    %14 = vector.broadcast %13 : vector<8x1xf32> to vector<8x32xf32>
    %15 = arith.mulf %5, %14 : vector<8x32xf32>
    %16 = vector.broadcast %0 : vector<1x32xf32> to vector<8x32xf32>
    %17 = arith.mulf %15, %16 : vector<8x32xf32>
    %18 = arith.truncf %17 : vector<8x32xf32> to vector<8x32xbf16>
    %c0_7 = arith.constant 0 : index
    %c0_8 = arith.constant 0 : index
    %19 = vector.load %arg6[%c0_7, %c0_8] : memref<32x96xbf16, #tpu.memory_space<vmem>>, vector<32x96xbf16>
    %cst_9 = arith.constant dense<0.000000e+00> : vector<8x96xf32>
    %20 = tpu.matmul %18, %19, %cst_9 {dimension_numbers = #tpu.dot_dimension_numbers<[1], [0], [0], [1], [0, 0, 1, 1], [], []>} : vector<8x32xbf16>, vector<32x96xbf16>, vector<8x96xf32> -> vector<8x96xf32>
    %21 = vector.extract_strided_slice %20 {offsets = [0, 0], sizes = [8, 32], strides = [1, 1]} : vector<8x96xf32> to vector<8x32xf32>
    %c4 = arith.constant 4 : index
    %c0_10 = arith.constant 0 : index
    %22 = vector.load %arg8[%c4, %c0_10] : memref<8x32xf32, #tpu.memory_space<vmem>>, vector<1x32xf32>
    %23 = vector.broadcast %22 : vector<1x32xf32> to vector<8x32xf32>
    %24 = arith.addf %21, %23 : vector<8x32xf32>
    %25 = vector.extract_strided_slice %20 {offsets = [0, 32], sizes = [8, 32], strides = [1, 1]} : vector<8x96xf32> to vector<8x32xf32>
    %c5 = arith.constant 5 : index
    %c0_11 = arith.constant 0 : index
    %26 = vector.load %arg8[%c5, %c0_11] : memref<8x32xf32, #tpu.memory_space<vmem>>, vector<1x32xf32>
    %27 = vector.broadcast %26 : vector<1x32xf32> to vector<8x32xf32>
    %28 = arith.addf %25, %27 : vector<8x32xf32>
    %c0_12 = arith.constant 0 : index
    %c0_13 = arith.constant 0 : index
    %c0_14 = arith.constant 0 : index
    %29 = vector.load %arg11[%c0_12, %c0_13, %c0_14] : memref<1x8x8xf32, #tpu.memory_space<vmem>>, vector<1x8x8xf32>
    %30 = vector.shape_cast %29 : vector<1x8x8xf32> to vector<8x8xf32>
    %31 = tpu.concatenate %30, %30, %30, %30 in 1 : vector<8x8xf32>, vector<8x8xf32>, vector<8x8xf32>, vector<8x8xf32> -> vector<8x32xf32>
    %32 = arith.mulf %24, %31 : vector<8x32xf32>
    %c0_15 = arith.constant 0 : index
    %c0_16 = arith.constant 0 : index
    %c0_17 = arith.constant 0 : index
    %33 = vector.load %arg12[%c0_15, %c0_16, %c0_17] : memref<1x8x8xf32, #tpu.memory_space<vmem>>, vector<1x8x8xf32>
    %34 = vector.shape_cast %33 : vector<1x8x8xf32> to vector<8x8xf32>
    %35 = tpu.concatenate %34, %34, %34, %34 in 1 : vector<8x8xf32>, vector<8x8xf32>, vector<8x8xf32>, vector<8x8xf32> -> vector<8x32xf32>
    %36 = arith.mulf %28, %35 : vector<8x32xf32>
    %37 = arith.addf %32, %36 : vector<8x32xf32>
    %38 = arith.truncf %37 : vector<8x32xf32> to vector<8x32xbf16>
    %c0_18 = arith.constant 0 : index
    %c0_19 = arith.constant 0 : index
    %39 = vector.load %arg15[%c0_18, %c0_19] : memref<8x32xbf16, #tpu.memory_space<vmem>>, vector<8x32xbf16>
    tpu.vector_store %arg15[%c0_18, %c0_19], %38 {strides = array<i32>} : memref<8x32xbf16, #tpu.memory_space<vmem>>, vector<8x32xbf16>,
    %40 = vector.extract_strided_slice %20 {offsets = [0, 64], sizes = [8, 32], strides = [1, 1]} : vector<8x96xf32> to vector<8x32xf32>
    %c6 = arith.constant 6 : index
    %c0_20 = arith.constant 0 : index
    %41 = vector.load %arg8[%c6, %c0_20] : memref<8x32xf32, #tpu.memory_space<vmem>>, vector<1x32xf32>
    %42 = vector.broadcast %41 : vector<1x32xf32> to vector<8x32xf32>
    %43 = arith.addf %40, %42 : vector<8x32xf32>
    %44 = arith.truncf %43 : vector<8x32xf32> to vector<8x32xbf16>
    %c0_21 = arith.constant 0 : index
    %c0_22 = arith.constant 0 : index
    %45 = vector.load %arg16[%c0_21, %c0_22] : memref<8x32xbf16, #tpu.memory_space<vmem>>, vector<8x32xbf16>
    tpu.vector_store %arg16[%c0_21, %c0_22], %44 {strides = array<i32>} : memref<8x32xbf16, #tpu.memory_space<vmem>>, vector<8x32xbf16>,
    %c0_23 = arith.constant 0 : index
    %c0_24 = arith.constant 0 : index
    %46 = vector.load %arg14[%c0_23, %c0_24] : memref<8x32xbf16, #tpu.memory_space<vmem>>, vector<8x8xbf16>
    %c0_25 = arith.constant 0 : index
    %c0_26 = arith.constant 0 : index
    %47 = vector.load %arg15[%c0_25, %c0_26] : memref<8x32xbf16, #tpu.memory_space<vmem>>, vector<8x8xbf16>
    %cst_27 = arith.constant dense<0.000000e+00> : vector<8x8xf32>
    %48 = tpu.matmul %46, %47, %cst_27 {dimension_numbers = #tpu.dot_dimension_numbers<[1], [1], [0], [0], [0, 0, 1, 0], [], []>} : vector<8x8xbf16>, vector<8x8xbf16>, vector<8x8xf32> -> vector<8x8xf32>
    %c0_28 = arith.constant 0 : index
    %c0_29 = arith.constant 0 : index
    %49 = vector.load %arg18[%c0_28, %c0_29] : memref<8x4xf32, #tpu.memory_space<vmem>>, vector<8x1xf32>
    %cst_30 = arith.constant dense<0xFF800000> : vector<8xf32>
    %50 = vector.multi_reduction <maximumf>, %48, %cst_30 [1] : vector<8x8xf32> to vector<8xf32>
    %51 = vector.shape_cast %50 : vector<8xf32> to vector<8x1xf32>
    %52 = arith.maximumf %49, %51 : vector<8x1xf32>
    %53 = arith.subf %49, %52 : vector<8x1xf32>
    %54 = math.exp %53 : vector<8x1xf32>
    %55 = vector.broadcast %52 : vector<8x1xf32> to vector<8x8xf32>
    %56 = arith.subf %48, %55 : vector<8x8xf32>
    %57 = math.exp %56 : vector<8x8xf32>
    %c0_31 = arith.constant 0 : index
    %c0_32 = arith.constant 0 : index
    %58 = vector.load %arg19[%c0_31, %c0_32] : memref<8x4xf32, #tpu.memory_space<vmem>>, vector<8x1xf32>
    %59 = arith.mulf %54, %58 : vector<8x1xf32>
    %cst_33 = arith.constant dense<0.000000e+00> : vector<8xf32>
    %60 = vector.multi_reduction <add>, %57, %cst_33 [1] : vector<8x8xf32> to vector<8xf32>
    %61 = vector.shape_cast %60 : vector<8xf32> to vector<8x1xf32>
    %62 = arith.addf %59, %61 : vector<8x1xf32>
    %c0_34 = arith.constant 0 : index
    %c0_35 = arith.constant 0 : index
    %63 = vector.load %arg19[%c0_34, %c0_35] : memref<8x4xf32, #tpu.memory_space<vmem>>, vector<8x1xf32>
    tpu.vector_store %arg19[%c0_34, %c0_35], %62 {strides = array<i32>} : memref<8x4xf32, #tpu.memory_space<vmem>>, vector<8x1xf32>,
    %64 = arith.truncf %57 : vector<8x8xf32> to vector<8x8xbf16>
    %c0_36 = arith.constant 0 : index
    %c0_37 = arith.constant 0 : index
    %65 = vector.load %arg16[%c0_36, %c0_37] : memref<8x32xbf16, #tpu.memory_space<vmem>>, vector<8x8xbf16>
    %cst_38 = arith.constant dense<0.000000e+00> : vector<8x8xf32>
    %66 = tpu.matmul %64, %65, %cst_38 {dimension_numbers = #tpu.dot_dimension_numbers<[1], [0], [0], [1], [0, 0, 1, 1], [], []>} : vector<8x8xbf16>, vector<8x8xbf16>, vector<8x8xf32> -> vector<8x8xf32>
    %c0_39 = arith.constant 0 : index
    %c0_40 = arith.constant 0 : index
    %67 = vector.load %arg17[%c0_39, %c0_40] : memref<8x32xf32, #tpu.memory_space<vmem>>, vector<8x8xf32>
    %68 = vector.broadcast %54 : vector<8x1xf32> to vector<8x8xf32>
    %69 = arith.mulf %68, %67 : vector<8x8xf32>
    %70 = arith.addf %69, %66 : vector<8x8xf32>
    %c0_41 = arith.constant 0 : index
    %c0_42 = arith.constant 0 : index
    %71 = vector.load %arg17[%c0_41, %c0_42] : memref<8x32xf32, #tpu.memory_space<vmem>>, vector<8x8xf32>
    tpu.vector_store %arg17[%c0_41, %c0_42], %70 {strides = array<i32>} : memref<8x32xf32, #tpu.memory_space<vmem>>, vector<8x8xf32>,
    %c0_43 = arith.constant 0 : index
    %c0_44 = arith.constant 0 : index
    %72 = vector.load %arg18[%c0_43, %c0_44] : memref<8x4xf32, #tpu.memory_space<vmem>>, vector<8x1xf32>
    tpu.vector_store %arg18[%c0_43, %c0_44], %52 {strides = array<i32>} : memref<8x4xf32, #tpu.memory_space<vmem>>, vector<8x1xf32>,
    %c0_45 = arith.constant 0 : index
    %c8 = arith.constant 8 : index
    %73 = vector.load %arg14[%c0_45, %c8] : memref<8x32xbf16, #tpu.memory_space<vmem>>, vector<8x8xbf16>
    %c0_46 = arith.constant 0 : index
    %c8_47 = arith.constant 8 : index
    %74 = vector.load %arg15[%c0_46, %c8_47] : memref<8x32xbf16, #tpu.memory_space<vmem>>, vector<8x8xbf16>
    %cst_48 = arith.constant dense<0.000000e+00> : vector<8x8xf32>
    %75 = tpu.matmul %73, %74, %cst_48 {dimension_numbers = #tpu.dot_dimension_numbers<[1], [1], [0], [0], [0, 0, 1, 0], [], []>} : vector<8x8xbf16>, vector<8x8xbf16>, vector<8x8xf32> -> vector<8x8xf32>
    %c0_49 = arith.constant 0 : index
    %c1 = arith.constant 1 : index
    %76 = vector.load %arg18[%c0_49, %c1] : memref<8x4xf32, #tpu.memory_space<vmem>>, vector<8x1xf32>
    %cst_50 = arith.constant dense<0xFF800000> : vector<8xf32>
    %77 = vector.multi_reduction <maximumf>, %75, %cst_50 [1] : vector<8x8xf32> to vector<8xf32>
    %78 = vector.shape_cast %77 : vector<8xf32> to vector<8x1xf32>
    %79 = arith.maximumf %76, %78 : vector<8x1xf32>
    %80 = arith.subf %76, %79 : vector<8x1xf32>
    %81 = math.exp %80 : vector<8x1xf32>
    %82 = vector.broadcast %79 : vector<8x1xf32> to vector<8x8xf32>
    %83 = arith.subf %75, %82 : vector<8x8xf32>
    %84 = math.exp %83 : vector<8x8xf32>
    %c0_51 = arith.constant 0 : index
    %c1_52 = arith.constant 1 : index
    %85 = vector.load %arg19[%c0_51, %c1_52] : memref<8x4xf32, #tpu.memory_space<vmem>>, vector<8x1xf32>
    %86 = arith.mulf %81, %85 : vector<8x1xf32>
    %cst_53 = arith.constant dense<0.000000e+00> : vector<8xf32>
    %87 = vector.multi_reduction <add>, %84, %cst_53 [1] : vector<8x8xf32> to vector<8xf32>
    %88 = vector.shape_cast %87 : vector<8xf32> to vector<8x1xf32>
    %89 = arith.addf %86, %88 : vector<8x1xf32>
    %c0_54 = arith.constant 0 : index
    %c1_55 = arith.constant 1 : index
    %90 = vector.load %arg19[%c0_54, %c1_55] : memref<8x4xf32, #tpu.memory_space<vmem>>, vector<8x1xf32>
    tpu.vector_store %arg19[%c0_54, %c1_55], %89 {strides = array<i32>} : memref<8x4xf32, #tpu.memory_space<vmem>>, vector<8x1xf32>,
    %91 = arith.truncf %84 : vector<8x8xf32> to vector<8x8xbf16>
    %c0_56 = arith.constant 0 : index
    %c8_57 = arith.constant 8 : index
    %92 = vector.load %arg16[%c0_56, %c8_57] : memref<8x32xbf16, #tpu.memory_space<vmem>>, vector<8x8xbf16>
    %cst_58 = arith.constant dense<0.000000e+00> : vector<8x8xf32>
    %93 = tpu.matmul %91, %92, %cst_58 {dimension_numbers = #tpu.dot_dimension_numbers<[1], [0], [0], [1], [0, 0, 1, 1], [], []>} : vector<8x8xbf16>, vector<8x8xbf16>, vector<8x8xf32> -> vector<8x8xf32>
    %c0_59 = arith.constant 0 : index
    %c8_60 = arith.constant 8 : index
    %94 = vector.load %arg17[%c0_59, %c8_60] : memref<8x32xf32, #tpu.memory_space<vmem>>, vector<8x8xf32>
    %95 = vector.broadcast %81 : vector<8x1xf32> to vector<8x8xf32>
    %96 = arith.mulf %95, %94 : vector<8x8xf32>
    %97 = arith.addf %96, %93 : vector<8x8xf32>
    %c0_61 = arith.constant 0 : index
    %c8_62 = arith.constant 8 : index
    %98 = vector.load %arg17[%c0_61, %c8_62] : memref<8x32xf32, #tpu.memory_space<vmem>>, vector<8x8xf32>
    tpu.vector_store %arg17[%c0_61, %c8_62], %97 {strides = array<i32>} : memref<8x32xf32, #tpu.memory_space<vmem>>, vector<8x8xf32>,
    %c0_63 = arith.constant 0 : index
    %c1_64 = arith.constant 1 : index
    %99 = vector.load %arg18[%c0_63, %c1_64] : memref<8x4xf32, #tpu.memory_space<vmem>>, vector<8x1xf32>
    tpu.vector_store %arg18[%c0_63, %c1_64], %79 {strides = array<i32>} : memref<8x4xf32, #tpu.memory_space<vmem>>, vector<8x1xf32>,
    %c0_65 = arith.constant 0 : index
    %c16 = arith.constant 16 : index
    %100 = vector.load %arg14[%c0_65, %c16] : memref<8x32xbf16, #tpu.memory_space<vmem>>, vector<8x8xbf16>
    %c0_66 = arith.constant 0 : index
    %c16_67 = arith.constant 16 : index
    %101 = vector.load %arg15[%c0_66, %c16_67] : memref<8x32xbf16, #tpu.memory_space<vmem>>, vector<8x8xbf16>
    %cst_68 = arith.constant dense<0.000000e+00> : vector<8x8xf32>
    %102 = tpu.matmul %100, %101, %cst_68 {dimension_numbers = #tpu.dot_dimension_numbers<[1], [1], [0], [0], [0, 0, 1, 0], [], []>} : vector<8x8xbf16>, vector<8x8xbf16>, vector<8x8xf32> -> vector<8x8xf32>
    %c0_69 = arith.constant 0 : index
    %c2 = arith.constant 2 : index
    %103 = vector.load %arg18[%c0_69, %c2] : memref<8x4xf32, #tpu.memory_space<vmem>>, vector<8x1xf32>
    %cst_70 = arith.constant dense<0xFF800000> : vector<8xf32>
    %104 = vector.multi_reduction <maximumf>, %102, %cst_70 [1] : vector<8x8xf32> to vector<8xf32>
    %105 = vector.shape_cast %104 : vector<8xf32> to vector<8x1xf32>
    %106 = arith.maximumf %103, %105 : vector<8x1xf32>
    %107 = arith.subf %103, %106 : vector<8x1xf32>
    %108 = math.exp %107 : vector<8x1xf32>
    %109 = vector.broadcast %106 : vector<8x1xf32> to vector<8x8xf32>
    %110 = arith.subf %102, %109 : vector<8x8xf32>
    %111 = math.exp %110 : vector<8x8xf32>
    %c0_71 = arith.constant 0 : index
    %c2_72 = arith.constant 2 : index
    %112 = vector.load %arg19[%c0_71, %c2_72] : memref<8x4xf32, #tpu.memory_space<vmem>>, vector<8x1xf32>
    %113 = arith.mulf %108, %112 : vector<8x1xf32>
    %cst_73 = arith.constant dense<0.000000e+00> : vector<8xf32>
    %114 = vector.multi_reduction <add>, %111, %cst_73 [1] : vector<8x8xf32> to vector<8xf32>
    %115 = vector.shape_cast %114 : vector<8xf32> to vector<8x1xf32>
    %116 = arith.addf %113, %115 : vector<8x1xf32>
    %c0_74 = arith.constant 0 : index
    %c2_75 = arith.constant 2 : index
    %117 = vector.load %arg19[%c0_74, %c2_75] : memref<8x4xf32, #tpu.memory_space<vmem>>, vector<8x1xf32>
    tpu.vector_store %arg19[%c0_74, %c2_75], %116 {strides = array<i32>} : memref<8x4xf32, #tpu.memory_space<vmem>>, vector<8x1xf32>,
    %118 = arith.truncf %111 : vector<8x8xf32> to vector<8x8xbf16>
    %c0_76 = arith.constant 0 : index
    %c16_77 = arith.constant 16 : index
    %119 = vector.load %arg16[%c0_76, %c16_77] : memref<8x32xbf16, #tpu.memory_space<vmem>>, vector<8x8xbf16>
    %cst_78 = arith.constant dense<0.000000e+00> : vector<8x8xf32>
    %120 = tpu.matmul %118, %119, %cst_78 {dimension_numbers = #tpu.dot_dimension_numbers<[1], [0], [0], [1], [0, 0, 1, 1], [], []>} : vector<8x8xbf16>, vector<8x8xbf16>, vector<8x8xf32> -> vector<8x8xf32>
    %c0_79 = arith.constant 0 : index
    %c16_80 = arith.constant 16 : index
    %121 = vector.load %arg17[%c0_79, %c16_80] : memref<8x32xf32, #tpu.memory_space<vmem>>, vector<8x8xf32>
    %122 = vector.broadcast %108 : vector<8x1xf32> to vector<8x8xf32>
    %123 = arith.mulf %122, %121 : vector<8x8xf32>
    %124 = arith.addf %123, %120 : vector<8x8xf32>
    %c0_81 = arith.constant 0 : index
    %c16_82 = arith.constant 16 : index
    %125 = vector.load %arg17[%c0_81, %c16_82] : memref<8x32xf32, #tpu.memory_space<vmem>>, vector<8x8xf32>
    tpu.vector_store %arg17[%c0_81, %c16_82], %124 {strides = array<i32>} : memref<8x32xf32, #tpu.memory_space<vmem>>, vector<8x8xf32>,
    %c0_83 = arith.constant 0 : index
    %c2_84 = arith.constant 2 : index
    %126 = vector.load %arg18[%c0_83, %c2_84] : memref<8x4xf32, #tpu.memory_space<vmem>>, vector<8x1xf32>
    tpu.vector_store %arg18[%c0_83, %c2_84], %106 {strides = array<i32>} : memref<8x4xf32, #tpu.memory_space<vmem>>, vector<8x1xf32>,
    %c0_85 = arith.constant 0 : index
    %c24 = arith.constant 24 : index
    %127 = vector.load %arg14[%c0_85, %c24] : memref<8x32xbf16, #tpu.memory_space<vmem>>, vector<8x8xbf16>
    %c0_86 = arith.constant 0 : index
    %c24_87 = arith.constant 24 : index
    %128 = vector.load %arg15[%c0_86, %c24_87] : memref<8x32xbf16, #tpu.memory_space<vmem>>, vector<8x8xbf16>
    %cst_88 = arith.constant dense<0.000000e+00> : vector<8x8xf32>
    %129 = tpu.matmul %127, %128, %cst_88 {dimension_numbers = #tpu.dot_dimension_numbers<[1], [1], [0], [0], [0, 0, 1, 0], [], []>} : vector<8x8xbf16>, vector<8x8xbf16>, vector<8x8xf32> -> vector<8x8xf32>
    %c0_89 = arith.constant 0 : index
    %c3 = arith.constant 3 : index
    %130 = vector.load %arg18[%c0_89, %c3] : memref<8x4xf32, #tpu.memory_space<vmem>>, vector<8x1xf32>
    %cst_90 = arith.constant dense<0xFF800000> : vector<8xf32>
    %131 = vector.multi_reduction <maximumf>, %129, %cst_90 [1] : vector<8x8xf32> to vector<8xf32>
    %132 = vector.shape_cast %131 : vector<8xf32> to vector<8x1xf32>
    %133 = arith.maximumf %130, %132 : vector<8x1xf32>
    %134 = arith.subf %130, %133 : vector<8x1xf32>
    %135 = math.exp %134 : vector<8x1xf32>
    %136 = vector.broadcast %133 : vector<8x1xf32> to vector<8x8xf32>
    %137 = arith.subf %129, %136 : vector<8x8xf32>
    %138 = math.exp %137 : vector<8x8xf32>
    %c0_91 = arith.constant 0 : index
    %c3_92 = arith.constant 3 : index
    %139 = vector.load %arg19[%c0_91, %c3_92] : memref<8x4xf32, #tpu.memory_space<vmem>>, vector<8x1xf32>
    %140 = arith.mulf %135, %139 : vector<8x1xf32>
    %cst_93 = arith.constant dense<0.000000e+00> : vector<8xf32>
    %141 = vector.multi_reduction <add>, %138, %cst_93 [1] : vector<8x8xf32> to vector<8xf32>
    %142 = vector.shape_cast %141 : vector<8xf32> to vector<8x1xf32>
    %143 = arith.addf %140, %142 : vector<8x1xf32>
    %c0_94 = arith.constant 0 : index
    %c3_95 = arith.constant 3 : index
    %144 = vector.load %arg19[%c0_94, %c3_95] : memref<8x4xf32, #tpu.memory_space<vmem>>, vector<8x1xf32>
    tpu.vector_store %arg19[%c0_94, %c3_95], %143 {strides = array<i32>} : memref<8x4xf32, #tpu.memory_space<vmem>>, vector<8x1xf32>,
    %145 = arith.truncf %138 : vector<8x8xf32> to vector<8x8xbf16>
    %c0_96 = arith.constant 0 : index
    %c24_97 = arith.constant 24 : index
    %146 = vector.load %arg16[%c0_96, %c24_97] : memref<8x32xbf16, #tpu.memory_space<vmem>>, vector<8x8xbf16>
    %cst_98 = arith.constant dense<0.000000e+00> : vector<8x8xf32>
    %147 = tpu.matmul %145, %146, %cst_98 {dimension_numbers = #tpu.dot_dimension_numbers<[1], [0], [0], [1], [0, 0, 1, 1], [], []>} : vector<8x8xbf16>, vector<8x8xbf16>, vector<8x8xf32> -> vector<8x8xf32>
    %c0_99 = arith.constant 0 : index
    %c24_100 = arith.constant 24 : index
    %148 = vector.load %arg17[%c0_99, %c24_100] : memref<8x32xf32, #tpu.memory_space<vmem>>, vector<8x8xf32>
    %149 = vector.broadcast %135 : vector<8x1xf32> to vector<8x8xf32>
    %150 = arith.mulf %149, %148 : vector<8x8xf32>
    %151 = arith.addf %150, %147 : vector<8x8xf32>
    %c0_101 = arith.constant 0 : index
    %c24_102 = arith.constant 24 : index
    %152 = vector.load %arg17[%c0_101, %c24_102] : memref<8x32xf32, #tpu.memory_space<vmem>>, vector<8x8xf32>
    tpu.vector_store %arg17[%c0_101, %c24_102], %151 {strides = array<i32>} : memref<8x32xf32, #tpu.memory_space<vmem>>, vector<8x8xf32>,
    %c0_103 = arith.constant 0 : index
    %c3_104 = arith.constant 3 : index
    %153 = vector.load %arg18[%c0_103, %c3_104] : memref<8x4xf32, #tpu.memory_space<vmem>>, vector<8x1xf32>
    tpu.vector_store %arg18[%c0_103, %c3_104], %133 {strides = array<i32>} : memref<8x4xf32, #tpu.memory_space<vmem>>, vector<8x1xf32>,
    %c0_i32_105 = arith.constant 0 : i32
    %154 = arith.cmpi eq, %arg2, %c0_i32_105 : i32
    %155 = arith.extui %154 : i1 to i32
    %c0_i32_106 = arith.constant 0 : i32
    %156 = arith.cmpi ne, %155, %c0_i32_106 : i32
    scf.if %156 {
      %c0_107 = arith.constant 0 : index
      %c0_108 = arith.constant 0 : index
      %157 = vector.load %arg17[%c0_107, %c0_108] : memref<8x32xf32, #tpu.memory_space<vmem>>, vector<8x8xf32>
      %c0_109 = arith.constant 0 : index
      %c0_110 = arith.constant 0 : index
      %158 = vector.load %arg19[%c0_109, %c0_110] : memref<8x4xf32, #tpu.memory_space<vmem>>, vector<8x1xf32>
      %159 = tpu.reciprocal %158 {approx = true} : vector<8x1xf32> -> vector<8x1xf32>
      %160 = vector.broadcast %159 : vector<8x1xf32> to vector<8x8xf32>
      %161 = arith.mulf %157, %160 : vector<8x8xf32>
      %162 = arith.truncf %161 : vector<8x8xf32> to vector<8x8xbf16>
      %c0_111 = arith.constant 0 : index
      %c8_112 = arith.constant 8 : index
      %163 = vector.load %arg17[%c0_111, %c8_112] : memref<8x32xf32, #tpu.memory_space<vmem>>, vector<8x8xf32>
      %c0_113 = arith.constant 0 : index
      %c1_114 = arith.constant 1 : index
      %164 = vector.load %arg19[%c0_113, %c1_114] : memref<8x4xf32, #tpu.memory_space<vmem>>, vector<8x1xf32>
      %165 = tpu.reciprocal %164 {approx = true} : vector<8x1xf32> -> vector<8x1xf32>
      %166 = vector.broadcast %165 : vector<8x1xf32> to vector<8x8xf32>
      %167 = arith.mulf %163, %166 : vector<8x8xf32>
      %168 = arith.truncf %167 : vector<8x8xf32> to vector<8x8xbf16>
      %c0_115 = arith.constant 0 : index
      %c16_116 = arith.constant 16 : index
      %169 = vector.load %arg17[%c0_115, %c16_116] : memref<8x32xf32, #tpu.memory_space<vmem>>, vector<8x8xf32>
      %c0_117 = arith.constant 0 : index
      %c2_118 = arith.constant 2 : index
      %170 = vector.load %arg19[%c0_117, %c2_118] : memref<8x4xf32, #tpu.memory_space<vmem>>, vector<8x1xf32>
      %171 = tpu.reciprocal %170 {approx = true} : vector<8x1xf32> -> vector<8x1xf32>
      %172 = vector.broadcast %171 : vector<8x1xf32> to vector<8x8xf32>
      %173 = arith.mulf %169, %172 : vector<8x8xf32>
      %174 = arith.truncf %173 : vector<8x8xf32> to vector<8x8xbf16>
      %c0_119 = arith.constant 0 : index
      %c24_120 = arith.constant 24 : index
      %175 = vector.load %arg17[%c0_119, %c24_120] : memref<8x32xf32, #tpu.memory_space<vmem>>, vector<8x8xf32>
      %c0_121 = arith.constant 0 : index
      %c3_122 = arith.constant 3 : index
      %176 = vector.load %arg19[%c0_121, %c3_122] : memref<8x4xf32, #tpu.memory_space<vmem>>, vector<8x1xf32>
      %177 = tpu.reciprocal %176 {approx = true} : vector<8x1xf32> -> vector<8x1xf32>
      %178 = vector.broadcast %177 : vector<8x1xf32> to vector<8x8xf32>
      %179 = arith.mulf %175, %178 : vector<8x8xf32>
      %180 = arith.truncf %179 : vector<8x8xf32> to vector<8x8xbf16>
      %181 = tpu.concatenate %162, %168, %174, %180 in 1 : vector<8x8xbf16>, vector<8x8xbf16>, vector<8x8xbf16>, vector<8x8xbf16> -> vector<8x32xbf16>
      %c0_123 = arith.constant 0 : index
      %c0_124 = arith.constant 0 : index
      %182 = vector.load %arg7[%c0_123, %c0_124] : memref<32x32xbf16, #tpu.memory_space<vmem>>, vector<32x32xbf16>
      %cst_125 = arith.constant dense<0.000000e+00> : vector<8x32xf32>
      %183 = tpu.matmul %181, %182, %cst_125 {dimension_numbers = #tpu.dot_dimension_numbers<[1], [0], [0], [1], [0, 0, 1, 1], [], []>} : vector<8x32xbf16>, vector<32x32xbf16>, vector<8x32xf32> -> vector<8x32xf32>
      %c7 = arith.constant 7 : index
      %c0_126 = arith.constant 0 : index
      %184 = vector.load %arg8[%c7, %c0_126] : memref<8x32xf32, #tpu.memory_space<vmem>>, vector<1x32xf32>
      %185 = vector.broadcast %184 : vector<1x32xf32> to vector<8x32xf32>
      %186 = arith.addf %183, %185 : vector<8x32xf32>
      %c0_127 = arith.constant 0 : index
      %c0_128 = arith.constant 0 : index
      %c0_129 = arith.constant 0 : index
      %187 = vector.load %arg3[%c0_127, %c0_128, %c0_129] : memref<1x8x32xf32, #tpu.memory_space<vmem>>, vector<1x8x32xf32>
      %188 = vector.shape_cast %187 : vector<1x8x32xf32> to vector<8x32xf32>
      %189 = arith.addf %188, %186 : vector<8x32xf32>
      %c0_130 = arith.constant 0 : index
      %c0_131 = arith.constant 0 : index
      %c0_132 = arith.constant 0 : index
      %190 = vector.load %arg13[%c0_130, %c0_131, %c0_132] : memref<1x8x32xf32, #tpu.memory_space<vmem>>, vector<1x8x32xf32>
      %191 = vector.shape_cast %190 : vector<1x8x32xf32> to vector<8x32xf32>
      %192 = vector.shape_cast %189 : vector<8x32xf32> to vector<1x8x32xf32>
      tpu.vector_store %arg13[%c0_130, %c0_131, %c0_132], %192 {strides = array<i32>} : memref<1x8x32xf32, #tpu.memory_space<vmem>>, vector<1x8x32xf32>,
    } else {
    }
    return
  }
  func.func @transform_0(%arg0: i32, %arg1: i32, %arg2: i32) -> (i32, i32, i32) {
    %c0_i32 = arith.constant 0 : i32
    %c0_i32_0 = arith.constant 0 : i32
    return %arg0, %arg1, %c0_i32 : i32, i32, i32
  }
  func.func @transform_1(%arg0: i32, %arg1: i32, %arg2: i32) -> (i32, i32, i32) {
    %c0_i32 = arith.constant 0 : i32
    %c0_i32_0 = arith.constant 0 : i32
    return %arg0, %arg2, %c0_i32 : i32, i32, i32
  }
  func.func @transform_2(%arg0: i32, %arg1: i32, %arg2: i32) -> (i32, i32) {
    %c0_i32 = arith.constant 0 : i32
    %c0_i32_0 = arith.constant 0 : i32
    %c0_i32_1 = arith.constant 0 : i32
    return %c0_i32, %c0_i32_0 : i32, i32
  }
  func.func @transform_3(%arg0: i32, %arg1: i32, %arg2: i32) -> (i32, i32) {
    %c0_i32 = arith.constant 0 : i32
    %c0_i32_0 = arith.constant 0 : i32
    %c0_i32_1 = arith.constant 0 : i32
    return %c0_i32, %c0_i32_0 : i32, i32
  }
  func.func @transform_4(%arg0: i32, %arg1: i32, %arg2: i32) -> (i32, i32) {
    %c0_i32 = arith.constant 0 : i32
    %c0_i32_0 = arith.constant 0 : i32
    %c0_i32_1 = arith.constant 0 : i32
    return %c0_i32, %c0_i32_0 : i32, i32
  }
  func.func @transform_5(%arg0: i32, %arg1: i32, %arg2: i32) -> (i32, i32) {
    %c0_i32 = arith.constant 0 : i32
    %c0_i32_0 = arith.constant 0 : i32
    %c0_i32_1 = arith.constant 0 : i32
    return %c0_i32, %c0_i32_0 : i32, i32
  }
  func.func @transform_6(%arg0: i32, %arg1: i32, %arg2: i32) -> (i32, i32, i32) {
    %c0_i32 = arith.constant 0 : i32
    %c0_i32_0 = arith.constant 0 : i32
    return %arg0, %arg1, %c0_i32 : i32, i32, i32
  }
  func.func @transform_7(%arg0: i32, %arg1: i32, %arg2: i32) -> (i32, i32, i32) {
    %c0_i32 = arith.constant 0 : i32
    %c0_i32_0 = arith.constant 0 : i32
    return %arg0, %arg1, %c0_i32 : i32, i32, i32
  }
  func.func @transform_8(%arg0: i32, %arg1: i32, %arg2: i32) -> (i32, i32, i32) {
    %c0_i32 = arith.constant 0 : i32
    %c0_i32_0 = arith.constant 0 : i32
    return %arg0, %arg2, %c0_i32 : i32, i32, i32
  }
  func.func @transform_9(%arg0: i32, %arg1: i32, %arg2: i32) -> (i32, i32, i32) {
    %c0_i32 = arith.constant 0 : i32
    %c0_i32_0 = arith.constant 0 : i32
    return %arg0, %arg2, %c0_i32 : i32, i32, i32
  }
  func.func @transform_10(%arg0: i32, %arg1: i32, %arg2: i32) -> (i32, i32, i32) {
    %c0_i32 = arith.constant 0 : i32
    %c0_i32_0 = arith.constant 0 : i32
    return %arg0, %arg1, %c0_i32 : i32, i32, i32
  }
}

module attributes {stable_mosaic.version = 11 : i64} {
  func.func @_flash_attn_kernel(%arg0: i32, %arg1: i32, %arg2: i32, %arg3: memref<1x8x32xf32, #tpu.memory_space<vmem>>, %arg4: memref<1x8x32xf32, #tpu.memory_space<vmem>>, %arg5: memref<32x64xbf16, #tpu.memory_space<vmem>>, %arg6: memref<32x96xbf16, #tpu.memory_space<vmem>>, %arg7: memref<32x32xbf16, #tpu.memory_space<vmem>>, %arg8: memref<8x32xf32, #tpu.memory_space<vmem>>, %arg9: memref<1x8x8xf32, #tpu.memory_space<vmem>>, %arg10: memref<1x8x8xf32, #tpu.memory_space<vmem>>, %arg11: memref<1x8x8xf32, #tpu.memory_space<vmem>>, %arg12: memref<1x8x8xf32, #tpu.memory_space<vmem>>, %arg13: memref<1x8x32xf32, #tpu.memory_space<vmem>>, %arg14: memref<8x32xbf16, #tpu.memory_space<vmem>>, %arg15: memref<8x32xbf16, #tpu.memory_space<vmem>>, %arg16: memref<8x32xbf16, #tpu.memory_space<vmem>>, %arg17: memref<8x32xf32, #tpu.memory_space<vmem>>, %arg18: memref<8x4xf32, #tpu.memory_space<vmem>>, %arg19: memref<8x4xf32, #tpu.memory_space<vmem>>) attributes {dimension_semantics = [#tpu.dimension_semantics<parallel>, #tpu.dimension_semantics<parallel>, #tpu.dimension_semantics<arbitrary>], iteration_bounds = array<i64: 2, 1, 1>, scalar_prefetch = 0 : i64, scratch_operands = 6 : i64, tpu.core_type = #tpu.core_type<tc>, window_params = [{transform_indices = @transform_0, window_bounds = array<i64: 1, 8, 32>}, {transform_indices = @transform_1, window_bounds = array<i64: 1, 8, 32>}, {pipeline_mode = #tpu.pipeline_mode<synchronous>, transform_indices = @transform_2, window_bounds = array<i64: 32, 64>}, {pipeline_mode = #tpu.pipeline_mode<synchronous>, transform_indices = @transform_3, window_bounds = array<i64: 32, 96>}, {pipeline_mode = #tpu.pipeline_mode<synchronous>, transform_indices = @transform_4, window_bounds = array<i64: 32, 32>}, {pipeline_mode = #tpu.pipeline_mode<synchronous>, transform_indices = @transform_5, window_bounds = array<i64: 8, 32>}, {transform_indices = @transform_6, window_bounds = array<i64: 1, 8, 8>}, {transform_indices = @transform_7, window_bounds = array<i64: 1, 8, 8>}, {transform_indices = @transform_8, window_bounds = array<i64: 1, 8, 8>}, {transform_indices = @transform_9, window_bounds = array<i64: 1, 8, 8>}, {transform_indices = @transform_10, window_bounds = array<i64: 1, 8, 32>}]} {
    %c0 = arith.constant 0 : index
    %c0_0 = arith.constant 0 : index
    %0 = vector.load %arg8[%c0, %c0_0] : memref<8x32xf32, #tpu.memory_space<vmem>>, vector<1x32xf32>
    %c0_i32 = arith.constant 0 : i32
    %1 = arith.cmpi eq, %arg2, %c0_i32 : i32
    %2 = arith.extui %1 : i1 to i32
    %c0_i32_1 = arith.constant 0 : i32
    %3 = arith.cmpi ne, %2, %c0_i32_1 : i32
    scf.if %3 {
      %c0_107 = arith.constant 0 : index
      %c0_108 = arith.constant 0 : index
      %c0_109 = arith.constant 0 : index
      %157 = vector.load %arg3[%c0_107, %c0_108, %c0_109] : memref<1x8x32xf32, #tpu.memory_space<vmem>>, vector<1x8x32xf32>
      %158 = vector.shape_cast %157 : vector<1x8x32xf32> to vector<8x32xf32>
      %159 = arith.mulf %158, %158 : vector<8x32xf32>
      %cst_110 = arith.constant dense<0.000000e+00> : vector<8xf32>
      %160 = vector.multi_reduction <add>, %159, %cst_110 [1] : vector<8x32xf32> to vector<8xf32>
      %161 = vector.shape_cast %160 : vector<8xf32> to vector<8x1xf32>
      %cst_111 = arith.constant 3.200000e+01 : f32
      %162 = vector.broadcast %cst_111 : f32 to vector<8x1xf32>
      %163 = arith.divf %161, %162 : vector<8x1xf32>
      %cst_112 = arith.constant 9.99999997E-7 : f32
      %164 = vector.broadcast %cst_112 : f32 to vector<8x1xf32>
      %165 = arith.addf %163, %164 : vector<8x1xf32>
      %166 = math.rsqrt %165 : vector<8x1xf32>
      %167 = vector.broadcast %166 : vector<8x1xf32> to vector<8x32xf32>
      %168 = arith.mulf %158, %167 : vector<8x32xf32>
      %169 = vector.broadcast %0 : vector<1x32xf32> to vector<8x32xf32>
      %170 = arith.mulf %168, %169 : vector<8x32xf32>
      %171 = arith.truncf %170 : vector<8x32xf32> to vector<8x32xbf16>
      %c0_113 = arith.constant 0 : index
      %c0_114 = arith.constant 0 : index
      %172 = vector.load %arg5[%c0_113, %c0_114] : memref<32x64xbf16, #tpu.memory_space<vmem>>, vector<32x64xbf16>
      %cst_115 = arith.constant dense<0.000000e+00> : vector<8x64xf32>
      %173 = tpu.matmul %171, %172, %cst_115 {dimension_numbers = #tpu.dot_dimension_numbers<[1], [0], [0], [1], [0, 0, 1, 1], [], []>} : vector<8x32xbf16>, vector<32x64xbf16>, vector<8x64xf32> -> vector<8x64xf32>
      %174 = vector.extract_strided_slice %173 {offsets = [0, 0], sizes = [8, 32], strides = [1, 1]} : vector<8x64xf32> to vector<8x32xf32>
      %c2_116 = arith.constant 2 : index
      %c0_117 = arith.constant 0 : index
      %175 = vector.load %arg8[%c2_116, %c0_117] : memref<8x32xf32, #tpu.memory_space<vmem>>, vector<1x32xf32>
      %176 = vector.broadcast %175 : vector<1x32xf32> to vector<8x32xf32>
      %177 = arith.addf %174, %176 : vector<8x32xf32>
      %178 = vector.extract_strided_slice %173 {offsets = [0, 32], sizes = [8, 32], strides = [1, 1]} : vector<8x64xf32> to vector<8x32xf32>
      %c3_118 = arith.constant 3 : index
      %c0_119 = arith.constant 0 : index
      %179 = vector.load %arg8[%c3_118, %c0_119] : memref<8x32xf32, #tpu.memory_space<vmem>>, vector<1x32xf32>
      %180 = vector.broadcast %179 : vector<1x32xf32> to vector<8x32xf32>
      %181 = arith.addf %178, %180 : vector<8x32xf32>
      %c0_120 = arith.constant 0 : index
      %c0_121 = arith.constant 0 : index
      %c0_122 = arith.constant 0 : index
      %182 = vector.load %arg9[%c0_120, %c0_121, %c0_122] : memref<1x8x8xf32, #tpu.memory_space<vmem>>, vector<1x8x8xf32>
      %183 = vector.shape_cast %182 : vector<1x8x8xf32> to vector<8x8xf32>
      %184 = tpu.concatenate %183, %183, %183, %183 in 1 : vector<8x8xf32>, vector<8x8xf32>, vector<8x8xf32>, vector<8x8xf32> -> vector<8x32xf32>
      %185 = arith.mulf %177, %184 : vector<8x32xf32>
      %c0_123 = arith.constant 0 : index
      %c0_124 = arith.constant 0 : index
      %c0_125 = arith.constant 0 : index
      %186 = vector.load %arg10[%c0_123, %c0_124, %c0_125] : memref<1x8x8xf32, #tpu.memory_space<vmem>>, vector<1x8x8xf32>
      %187 = vector.shape_cast %186 : vector<1x8x8xf32> to vector<8x8xf32>
      %188 = tpu.concatenate %187, %187, %187, %187 in 1 : vector<8x8xf32>, vector<8x8xf32>, vector<8x8xf32>, vector<8x8xf32> -> vector<8x32xf32>
      %189 = arith.mulf %181, %188 : vector<8x32xf32>
      %190 = arith.addf %185, %189 : vector<8x32xf32>
      %cst_126 = arith.constant 0.353553385 : f32
      %191 = vector.broadcast %cst_126 : f32 to vector<8x32xf32>
      %192 = arith.mulf %190, %191 : vector<8x32xf32>
      %193 = arith.truncf %192 : vector<8x32xf32> to vector<8x32xbf16>
      %c0_127 = arith.constant 0 : index
      %c0_128 = arith.constant 0 : index
      %194 = vector.load %arg14[%c0_127, %c0_128] : memref<8x32xbf16, #tpu.memory_space<vmem>>, vector<8x32xbf16>
      tpu.vector_store %arg14[%c0_127, %c0_128], %193 {strides = array<i32>} : memref<8x32xbf16, #tpu.memory_space<vmem>>, vector<8x32xbf16>,
      %cst_129 = arith.constant 0xFF800000 : f32
      %195 = vector.broadcast %cst_129 : f32 to vector<8x4xf32>
      %c0_130 = arith.constant 0 : index
      %c0_131 = arith.constant 0 : index
      %196 = vector.load %arg18[%c0_130, %c0_131] : memref<8x4xf32, #tpu.memory_space<vmem>>, vector<8x4xf32>
      tpu.vector_store %arg18[%c0_130, %c0_131], %195 {strides = array<i32>} : memref<8x4xf32, #tpu.memory_space<vmem>>, vector<8x4xf32>,
      %cst_132 = arith.constant 0.000000e+00 : f32
      %197 = vector.broadcast %cst_132 : f32 to vector<8x4xf32>
      %c0_133 = arith.constant 0 : index
      %c0_134 = arith.constant 0 : index
      %198 = vector.load %arg19[%c0_133, %c0_134] : memref<8x4xf32, #tpu.memory_space<vmem>>, vector<8x4xf32>
      tpu.vector_store %arg19[%c0_133, %c0_134], %197 {strides = array<i32>} : memref<8x4xf32, #tpu.memory_space<vmem>>, vector<8x4xf32>,
      %cst_135 = arith.constant 0.000000e+00 : f32
      %199 = vector.broadcast %cst_135 : f32 to vector<8x32xf32>
      %c0_136 = arith.constant 0 : index
      %c0_137 = arith.constant 0 : index
      %200 = vector.load %arg17[%c0_136, %c0_137] : memref<8x32xf32, #tpu.memory_space<vmem>>, vector<8x32xf32>
      tpu.vector_store %arg17[%c0_136, %c0_137], %199 {strides = array<i32>} : memref<8x32xf32, #tpu.memory_space<vmem>>, vector<8x32xf32>,
    } else {
    }
    %c0_2 = arith.constant 0 : index
    %c0_3 = arith.constant 0 : index
    %c0_4 = arith.constant 0 : index
    %4 = vector.load %arg4[%c0_2, %c0_3, %c0_4] : memref<1x8x32xf32, #tpu.memory_space<vmem>>, vector<1x8x32xf32>
    %5 = vector.shape_cast %4 : vector<1x8x32xf32> to vector<8x32xf32>
    %6 = arith.mulf %5, %5 : vector<8x32xf32>
    %cst = arith.constant dense<0.000000e+00> : vector<8xf32>
    %7 = vector.multi_reduction <add>, %6, %cst [1] : vector<8x32xf32> to vector<8xf32>
    %8 = vector.shape_cast %7 : vector<8xf32> to vector<8x1xf32>
    %cst_5 = arith.constant 3.200000e+01 : f32
    %9 = vector.broadcast %cst_5 : f32 to vector<8x1xf32>
    %10 = arith.divf %8, %9 : vector<8x1xf32>
    %cst_6 = arith.constant 9.99999997E-7 : f32
    %11 = vector.broadcast %cst_6 : f32 to vector<8x1xf32>
    %12 = arith.addf %10, %11 : vector<8x1xf32>
    %13 = math.rsqrt %12 : vector<8x1xf32>
    %14 = vector.broadcast %13 : vector<8x1xf32> to vector<8x32xf32>
    %15 = arith.mulf %5, %14 : vector<8x32xf32>
    %16 = vector.broadcast %0 : vector<1x32xf32> to vector<8x32xf32>
    %17 = arith.mulf %15, %16 : vector<8x32xf32>
    %18 = arith.truncf %17 : vector<8x32xf32> to vector<8x32xbf16>
    %c0_7 = arith.constant 0 : index
    %c0_8 = arith.constant 0 : index
    %19 = vector.load %arg6[%c0_7, %c0_8] : memref<32x96xbf16, #tpu.memory_space<vmem>>, vector<32x96xbf16>
    %cst_9 = arith.constant dense<0.000000e+00> : vector<8x96xf32>
    %20 = tpu.matmul %18, %19, %cst_9 {dimension_numbers = #tpu.dot_dimension_numbers<[1], [0], [0], [1], [0, 0, 1, 1], [], []>} : vector<8x32xbf16>, vector<32x96xbf16>, vector<8x96xf32> -> vector<8x96xf32>
    %21 = vector.extract_strided_slice %20 {offsets = [0, 0], sizes = [8, 32], strides = [1, 1]} : vector<8x96xf32> to vector<8x32xf32>
    %c4 = arith.constant 4 : index
    %c0_10 = arith.constant 0 : index
    %22 = vector.load %arg8[%c4, %c0_10] : memref<8x32xf32, #tpu.memory_space<vmem>>, vector<1x32xf32>
    %23 = vector.broadcast %22 : vector<1x32xf32> to vector<8x32xf32>
    %24 = arith.addf %21, %23 : vector<8x32xf32>
    %25 = vector.extract_strided_slice %20 {offsets = [0, 32], sizes = [8, 32], strides = [1, 1]} : vector<8x96xf32> to vector<8x32xf32>
    %c5 = arith.constant 5 : index
    %c0_11 = arith.constant 0 : index
    %26 = vector.load %arg8[%c5, %c0_11] : memref<8x32xf32, #tpu.memory_space<vmem>>, vector<1x32xf32>
    %27 = vector.broadcast %26 : vector<1x32xf32> to vector<8x32xf32>
    %28 = arith.addf %25, %27 : vector<8x32xf32>
    %c0_12 = arith.constant 0 : index
    %c0_13 = arith.constant 0 : index
    %c0_14 = arith.constant 0 : index
    %29 = vector.load %arg11[%c0_12, %c0_13, %c0_14] : memref<1x8x8xf32, #tpu.memory_space<vmem>>, vector<1x8x8xf32>
    %30 = vector.shape_cast %29 : vector<1x8x8xf32> to vector<8x8xf32>
    %31 = tpu.concatenate %30, %30, %30, %30 in 1 : vector<8x8xf32>, vector<8x8xf32>, vector<8x8xf32>, vector<8x8xf32> -> vector<8x32xf32>
    %32 = arith.mulf %24, %31 : vector<8x32xf32>
    %c0_15 = arith.constant 0 : index
    %c0_16 = arith.constant 0 : index
    %c0_17 = arith.constant 0 : index
    %33 = vector.load %arg12[%c0_15, %c0_16, %c0_17] : memref<1x8x8xf32, #tpu.memory_space<vmem>>, vector<1x8x8xf32>
    %34 = vector.shape_cast %33 : vector<1x8x8xf32> to vector<8x8xf32>
    %35 = tpu.concatenate %34, %34, %34, %34 in 1 : vector<8x8xf32>, vector<8x8xf32>, vector<8x8xf32>, vector<8x8xf32> -> vector<8x32xf32>
    %36 = arith.mulf %28, %35 : vector<8x32xf32>
    %37 = arith.addf %32, %36 : vector<8x32xf32>
    %38 = arith.truncf %37 : vector<8x32xf32> to vector<8x32xbf16>
    %c0_18 = arith.constant 0 : index
    %c0_19 = arith.constant 0 : index
    %39 = vector.load %arg15[%c0_18, %c0_19] : memref<8x32xbf16, #tpu.memory_space<vmem>>, vector<8x32xbf16>
    tpu.vector_store %arg15[%c0_18, %c0_19], %38 {strides = array<i32>} : memref<8x32xbf16, #tpu.memory_space<vmem>>, vector<8x32xbf16>,
    %40 = vector.extract_strided_slice %20 {offsets = [0, 64], sizes = [8, 32], strides = [1, 1]} : vector<8x96xf32> to vector<8x32xf32>
    %c6 = arith.constant 6 : index
    %c0_20 = arith.constant 0 : index
    %41 = vector.load %arg8[%c6, %c0_20] : memref<8x32xf32, #tpu.memory_space<vmem>>, vector<1x32xf32>
    %42 = vector.broadcast %41 : vector<1x32xf32> to vector<8x32xf32>
    %43 = arith.addf %40, %42 : vector<8x32xf32>
    %44 = arith.truncf %43 : vector<8x32xf32> to vector<8x32xbf16>
    %c0_21 = arith.constant 0 : index
    %c0_22 = arith.constant 0 : index
    %45 = vector.load %arg16[%c0_21, %c0_22] : memref<8x32xbf16, #tpu.memory_space<vmem>>, vector<8x32xbf16>
    tpu.vector_store %arg16[%c0_21, %c0_22], %44 {strides = array<i32>} : memref<8x32xbf16, #tpu.memory_space<vmem>>, vector<8x32xbf16>,
    %c0_23 = arith.constant 0 : index
    %c0_24 = arith.constant 0 : index
    %46 = vector.load %arg14[%c0_23, %c0_24] : memref<8x32xbf16, #tpu.memory_space<vmem>>, vector<8x8xbf16>
    %c0_25 = arith.constant 0 : index
    %c0_26 = arith.constant 0 : index
    %47 = vector.load %arg15[%c0_25, %c0_26] : memref<8x32xbf16, #tpu.memory_space<vmem>>, vector<8x8xbf16>
    %cst_27 = arith.constant dense<0.000000e+00> : vector<8x8xf32>
    %48 = tpu.matmul %46, %47, %cst_27 {dimension_numbers = #tpu.dot_dimension_numbers<[1], [1], [0], [0], [0, 0, 1, 0], [], []>} : vector<8x8xbf16>, vector<8x8xbf16>, vector<8x8xf32> -> vector<8x8xf32>
    %c0_28 = arith.constant 0 : index
    %c0_29 = arith.constant 0 : index
    %49 = vector.load %arg18[%c0_28, %c0_29] : memref<8x4xf32, #tpu.memory_space<vmem>>, vector<8x1xf32>
    %cst_30 = arith.constant dense<0xFF800000> : vector<8xf32>
    %50 = vector.multi_reduction <maximumf>, %48, %cst_30 [1] : vector<8x8xf32> to vector<8xf32>
    %51 = vector.shape_cast %50 : vector<8xf32> to vector<8x1xf32>
    %52 = arith.maximumf %49, %51 : vector<8x1xf32>
    %53 = arith.subf %49, %52 : vector<8x1xf32>
    %54 = math.exp %53 : vector<8x1xf32>
    %55 = vector.broadcast %52 : vector<8x1xf32> to vector<8x8xf32>
    %56 = arith.subf %48, %55 : vector<8x8xf32>
    %57 = math.exp %56 : vector<8x8xf32>
    %c0_31 = arith.constant 0 : index
    %c0_32 = arith.constant 0 : index
    %58 = vector.load %arg19[%c0_31, %c0_32] : memref<8x4xf32, #tpu.memory_space<vmem>>, vector<8x1xf32>
    %59 = arith.mulf %54, %58 : vector<8x1xf32>
    %cst_33 = arith.constant dense<0.000000e+00> : vector<8xf32>
    %60 = vector.multi_reduction <add>, %57, %cst_33 [1] : vector<8x8xf32> to vector<8xf32>
    %61 = vector.shape_cast %60 : vector<8xf32> to vector<8x1xf32>
    %62 = arith.addf %59, %61 : vector<8x1xf32>
    %c0_34 = arith.constant 0 : index
    %c0_35 = arith.constant 0 : index
    %63 = vector.load %arg19[%c0_34, %c0_35] : memref<8x4xf32, #tpu.memory_space<vmem>>, vector<8x1xf32>
    tpu.vector_store %arg19[%c0_34, %c0_35], %62 {strides = array<i32>} : memref<8x4xf32, #tpu.memory_space<vmem>>, vector<8x1xf32>,
    %64 = arith.truncf %57 : vector<8x8xf32> to vector<8x8xbf16>
    %c0_36 = arith.constant 0 : index
    %c0_37 = arith.constant 0 : index
    %65 = vector.load %arg16[%c0_36, %c0_37] : memref<8x32xbf16, #tpu.memory_space<vmem>>, vector<8x8xbf16>
    %cst_38 = arith.constant dense<0.000000e+00> : vector<8x8xf32>
    %66 = tpu.matmul %64, %65, %cst_38 {dimension_numbers = #tpu.dot_dimension_numbers<[1], [0], [0], [1], [0, 0, 1, 1], [], []>} : vector<8x8xbf16>, vector<8x8xbf16>, vector<8x8xf32> -> vector<8x8xf32>
    %c0_39 = arith.constant 0 : index
    %c0_40 = arith.constant 0 : index
    %67 = vector.load %arg17[%c0_39, %c0_40] : memref<8x32xf32, #tpu.memory_space<vmem>>, vector<8x8xf32>
    %68 = vector.broadcast %54 : vector<8x1xf32> to vector<8x8xf32>
    %69 = arith.mulf %68, %67 : vector<8x8xf32>
    %70 = arith.addf %69, %66 : vector<8x8xf32>
    %c0_41 = arith.constant 0 : index
    %c0_42 = arith.constant 0 : index
    %71 = vector.load %arg17[%c0_41, %c0_42] : memref<8x32xf32, #tpu.memory_space<vmem>>, vector<8x8xf32>
    tpu.vector_store %arg17[%c0_41, %c0_42], %70 {strides = array<i32>} : memref<8x32xf32, #tpu.memory_space<vmem>>, vector<8x8xf32>,
    %c0_43 = arith.constant 0 : index
    %c0_44 = arith.constant 0 : index
    %72 = vector.load %arg18[%c0_43, %c0_44] : memref<8x4xf32, #tpu.memory_space<vmem>>, vector<8x1xf32>
    tpu.vector_store %arg18[%c0_43, %c0_44], %52 {strides = array<i32>} : memref<8x4xf32, #tpu.memory_space<vmem>>, vector<8x1xf32>,
    %c0_45 = arith.constant 0 : index
    %c8 = arith.constant 8 : index
    %73 = vector.load %arg14[%c0_45, %c8] : memref<8x32xbf16, #tpu.memory_space<vmem>>, vector<8x8xbf16>
    %c0_46 = arith.constant 0 : index
    %c8_47 = arith.constant 8 : index
    %74 = vector.load %arg15[%c0_46, %c8_47] : memref<8x32xbf16, #tpu.memory_space<vmem>>, vector<8x8xbf16>
    %cst_48 = arith.constant dense<0.000000e+00> : vector<8x8xf32>
    %75 = tpu.matmul %73, %74, %cst_48 {dimension_numbers = #tpu.dot_dimension_numbers<[1], [1], [0], [0], [0, 0, 1, 0], [], []>} : vector<8x8xbf16>, vector<8x8xbf16>, vector<8x8xf32> -> vector<8x8xf32>
    %c0_49 = arith.constant 0 : index
    %c1 = arith.constant 1 : index
    %76 = vector.load %arg18[%c0_49, %c1] : memref<8x4xf32, #tpu.memory_space<vmem>>, vector<8x1xf32>
    %cst_50 = arith.constant dense<0xFF800000> : vector<8xf32>
    %77 = vector.multi_reduction <maximumf>, %75, %cst_50 [1] : vector<8x8xf32> to vector<8xf32>
    %78 = vector.shape_cast %77 : vector<8xf32> to vector<8x1xf32>
    %79 = arith.maximumf %76, %78 : vector<8x1xf32>
    %80 = arith.subf %76, %79 : vector<8x1xf32>
    %81 = math.exp %80 : vector<8x1xf32>
    %82 = vector.broadcast %79 : vector<8x1xf32> to vector<8x8xf32>
    %83 = arith.subf %75, %82 : vector<8x8xf32>
    %84 = math.exp %83 : vector<8x8xf32>
    %c0_51 = arith.constant 0 : index
    %c1_52 = arith.constant 1 : index
    %85 = vector.load %arg19[%c0_51, %c1_52] : memref<8x4xf32, #tpu.memory_space<vmem>>, vector<8x1xf32>
    %86 = arith.mulf %81, %85 : vector<8x1xf32>
    %cst_53 = arith.constant dense<0.000000e+00> : vector<8xf32>
    %87 = vector.multi_reduction <add>, %84, %cst_53 [1] : vector<8x8xf32> to vector<8xf32>
    %88 = vector.shape_cast %87 : vector<8xf32> to vector<8x1xf32>
    %89 = arith.addf %86, %88 : vector<8x1xf32>
    %c0_54 = arith.constant 0 : index
    %c1_55 = arith.constant 1 : index
    %90 = vector.load %arg19[%c0_54, %c1_55] : memref<8x4xf32, #tpu.memory_space<vmem>>, vector<8x1xf32>
    tpu.vector_store %arg19[%c0_54, %c1_55], %89 {strides = array<i32>} : memref<8x4xf32, #tpu.memory_space<vmem>>, vector<8x1xf32>,
    %91 = arith.truncf %84 : vector<8x8xf32> to vector<8x8xbf16>
    %c0_56 = arith.constant 0 : index
    %c8_57 = arith.constant 8 : index
    %92 = vector.load %arg16[%c0_56, %c8_57] : memref<8x32xbf16, #tpu.memory_space<vmem>>, vector<8x8xbf16>
    %cst_58 = arith.constant dense<0.000000e+00> : vector<8x8xf32>
    %93 = tpu.matmul %91, %92, %cst_58 {dimension_numbers = #tpu.dot_dimension_numbers<[1], [0], [0], [1], [0, 0, 1, 1], [], []>} : vector<8x8xbf16>, vector<8x8xbf16>, vector<8x8xf32> -> vector<8x8xf32>
    %c0_59 = arith.constant 0 : index
    %c8_60 = arith.constant 8 : index
    %94 = vector.load %arg17[%c0_59, %c8_60] : memref<8x32xf32, #tpu.memory_space<vmem>>, vector<8x8xf32>
    %95 = vector.broadcast %81 : vector<8x1xf32> to vector<8x8xf32>
    %96 = arith.mulf %95, %94 : vector<8x8xf32>
    %97 = arith.addf %96, %93 : vector<8x8xf32>
    %c0_61 = arith.constant 0 : index
    %c8_62 = arith.constant 8 : index
    %98 = vector.load %arg17[%c0_61, %c8_62] : memref<8x32xf32, #tpu.memory_space<vmem>>, vector<8x8xf32>
    tpu.vector_store %arg17[%c0_61, %c8_62], %97 {strides = array<i32>} : memref<8x32xf32, #tpu.memory_space<vmem>>, vector<8x8xf32>,
    %c0_63 = arith.constant 0 : index
    %c1_64 = arith.constant 1 : index
    %99 = vector.load %arg18[%c0_63, %c1_64] : memref<8x4xf32, #tpu.memory_space<vmem>>, vector<8x1xf32>
    tpu.vector_store %arg18[%c0_63, %c1_64], %79 {strides = array<i32>} : memref<8x4xf32, #tpu.memory_space<vmem>>, vector<8x1xf32>,
    %c0_65 = arith.constant 0 : index
    %c16 = arith.constant 16 : index
    %100 = vector.load %arg14[%c0_65, %c16] : memref<8x32xbf16, #tpu.memory_space<vmem>>, vector<8x8xbf16>
    %c0_66 = arith.constant 0 : index
    %c16_67 = arith.constant 16 : index
    %101 = vector.load %arg15[%c0_66, %c16_67] : memref<8x32xbf16, #tpu.memory_space<vmem>>, vector<8x8xbf16>
    %cst_68 = arith.constant dense<0.000000e+00> : vector<8x8xf32>
    %102 = tpu.matmul %100, %101, %cst_68 {dimension_numbers = #tpu.dot_dimension_numbers<[1], [1], [0], [0], [0, 0, 1, 0], [], []>} : vector<8x8xbf16>, vector<8x8xbf16>, vector<8x8xf32> -> vector<8x8xf32>
    %c0_69 = arith.constant 0 : index
    %c2 = arith.constant 2 : index
    %103 = vector.load %arg18[%c0_69, %c2] : memref<8x4xf32, #tpu.memory_space<vmem>>, vector<8x1xf32>
    %cst_70 = arith.constant dense<0xFF800000> : vector<8xf32>
    %104 = vector.multi_reduction <maximumf>, %102, %cst_70 [1] : vector<8x8xf32> to vector<8xf32>
    %105 = vector.shape_cast %104 : vector<8xf32> to vector<8x1xf32>
    %106 = arith.maximumf %103, %105 : vector<8x1xf32>
    %107 = arith.subf %103, %106 : vector<8x1xf32>
    %108 = math.exp %107 : vector<8x1xf32>
    %109 = vector.broadcast %106 : vector<8x1xf32> to vector<8x8xf32>
    %110 = arith.subf %102, %109 : vector<8x8xf32>
    %111 = math.exp %110 : vector<8x8xf32>
    %c0_71 = arith.constant 0 : index
    %c2_72 = arith.constant 2 : index
    %112 = vector.load %arg19[%c0_71, %c2_72] : memref<8x4xf32, #tpu.memory_space<vmem>>, vector<8x1xf32>
    %113 = arith.mulf %108, %112 : vector<8x1xf32>
    %cst_73 = arith.constant dense<0.000000e+00> : vector<8xf32>
    %114 = vector.multi_reduction <add>, %111, %cst_73 [1] : vector<8x8xf32> to vector<8xf32>
    %115 = vector.shape_cast %114 : vector<8xf32> to vector<8x1xf32>
    %116 = arith.addf %113, %115 : vector<8x1xf32>
    %c0_74 = arith.constant 0 : index
    %c2_75 = arith.constant 2 : index
    %117 = vector.load %arg19[%c0_74, %c2_75] : memref<8x4xf32, #tpu.memory_space<vmem>>, vector<8x1xf32>
    tpu.vector_store %arg19[%c0_74, %c2_75], %116 {strides = array<i32>} : memref<8x4xf32, #tpu.memory_space<vmem>>, vector<8x1xf32>,
    %118 = arith.truncf %111 : vector<8x8xf32> to vector<8x8xbf16>
    %c0_76 = arith.constant 0 : index
    %c16_77 = arith.constant 16 : index
    %119 = vector.load %arg16[%c0_76, %c16_77] : memref<8x32xbf16, #tpu.memory_space<vmem>>, vector<8x8xbf16>
    %cst_78 = arith.constant dense<0.000000e+00> : vector<8x8xf32>
    %120 = tpu.matmul %118, %119, %cst_78 {dimension_numbers = #tpu.dot_dimension_numbers<[1], [0], [0], [1], [0, 0, 1, 1], [], []>} : vector<8x8xbf16>, vector<8x8xbf16>, vector<8x8xf32> -> vector<8x8xf32>
    %c0_79 = arith.constant 0 : index
    %c16_80 = arith.constant 16 : index
    %121 = vector.load %arg17[%c0_79, %c16_80] : memref<8x32xf32, #tpu.memory_space<vmem>>, vector<8x8xf32>
    %122 = vector.broadcast %108 : vector<8x1xf32> to vector<8x8xf32>
    %123 = arith.mulf %122, %121 : vector<8x8xf32>
    %124 = arith.addf %123, %120 : vector<8x8xf32>
    %c0_81 = arith.constant 0 : index
    %c16_82 = arith.constant 16 : index
    %125 = vector.load %arg17[%c0_81, %c16_82] : memref<8x32xf32, #tpu.memory_space<vmem>>, vector<8x8xf32>
    tpu.vector_store %arg17[%c0_81, %c16_82], %124 {strides = array<i32>} : memref<8x32xf32, #tpu.memory_space<vmem>>, vector<8x8xf32>,
    %c0_83 = arith.constant 0 : index
    %c2_84 = arith.constant 2 : index
    %126 = vector.load %arg18[%c0_83, %c2_84] : memref<8x4xf32, #tpu.memory_space<vmem>>, vector<8x1xf32>
    tpu.vector_store %arg18[%c0_83, %c2_84], %106 {strides = array<i32>} : memref<8x4xf32, #tpu.memory_space<vmem>>, vector<8x1xf32>,
    %c0_85 = arith.constant 0 : index
    %c24 = arith.constant 24 : index
    %127 = vector.load %arg14[%c0_85, %c24] : memref<8x32xbf16, #tpu.memory_space<vmem>>, vector<8x8xbf16>
    %c0_86 = arith.constant 0 : index
    %c24_87 = arith.constant 24 : index
    %128 = vector.load %arg15[%c0_86, %c24_87] : memref<8x32xbf16, #tpu.memory_space<vmem>>, vector<8x8xbf16>
    %cst_88 = arith.constant dense<0.000000e+00> : vector<8x8xf32>
    %129 = tpu.matmul %127, %128, %cst_88 {dimension_numbers = #tpu.dot_dimension_numbers<[1], [1], [0], [0], [0, 0, 1, 0], [], []>} : vector<8x8xbf16>, vector<8x8xbf16>, vector<8x8xf32> -> vector<8x8xf32>
    %c0_89 = arith.constant 0 : index
    %c3 = arith.constant 3 : index
    %130 = vector.load %arg18[%c0_89, %c3] : memref<8x4xf32, #tpu.memory_space<vmem>>, vector<8x1xf32>
    %cst_90 = arith.constant dense<0xFF800000> : vector<8xf32>
    %131 = vector.multi_reduction <maximumf>, %129, %cst_90 [1] : vector<8x8xf32> to vector<8xf32>
    %132 = vector.shape_cast %131 : vector<8xf32> to vector<8x1xf32>
    %133 = arith.maximumf %130, %132 : vector<8x1xf32>
    %134 = arith.subf %130, %133 : vector<8x1xf32>
    %135 = math.exp %134 : vector<8x1xf32>
    %136 = vector.broadcast %133 : vector<8x1xf32> to vector<8x8xf32>
    %137 = arith.subf %129, %136 : vector<8x8xf32>
    %138 = math.exp %137 : vector<8x8xf32>
    %c0_91 = arith.constant 0 : index
    %c3_92 = arith.constant 3 : index
    %139 = vector.load %arg19[%c0_91, %c3_92] : memref<8x4xf32, #tpu.memory_space<vmem>>, vector<8x1xf32>
    %140 = arith.mulf %135, %139 : vector<8x1xf32>
    %cst_93 = arith.constant dense<0.000000e+00> : vector<8xf32>
    %141 = vector.multi_reduction <add>, %138, %cst_93 [1] : vector<8x8xf32> to vector<8xf32>
    %142 = vector.shape_cast %141 : vector<8xf32> to vector<8x1xf32>
    %143 = arith.addf %140, %142 : vector<8x1xf32>
    %c0_94 = arith.constant 0 : index
    %c3_95 = arith.constant 3 : index
    %144 = vector.load %arg19[%c0_94, %c3_95] : memref<8x4xf32, #tpu.memory_space<vmem>>, vector<8x1xf32>
    tpu.vector_store %arg19[%c0_94, %c3_95], %143 {strides = array<i32>} : memref<8x4xf32, #tpu.memory_space<vmem>>, vector<8x1xf32>,
    %145 = arith.truncf %138 : vector<8x8xf32> to vector<8x8xbf16>
    %c0_96 = arith.constant 0 : index
    %c24_97 = arith.constant 24 : index
    %146 = vector.load %arg16[%c0_96, %c24_97] : memref<8x32xbf16, #tpu.memory_space<vmem>>, vector<8x8xbf16>
    %cst_98 = arith.constant dense<0.000000e+00> : vector<8x8xf32>
    %147 = tpu.matmul %145, %146, %cst_98 {dimension_numbers = #tpu.dot_dimension_numbers<[1], [0], [0], [1], [0, 0, 1, 1], [], []>} : vector<8x8xbf16>, vector<8x8xbf16>, vector<8x8xf32> -> vector<8x8xf32>
    %c0_99 = arith.constant 0 : index
    %c24_100 = arith.constant 24 : index
    %148 = vector.load %arg17[%c0_99, %c24_100] : memref<8x32xf32, #tpu.memory_space<vmem>>, vector<8x8xf32>
    %149 = vector.broadcast %135 : vector<8x1xf32> to vector<8x8xf32>
    %150 = arith.mulf %149, %148 : vector<8x8xf32>
    %151 = arith.addf %150, %147 : vector<8x8xf32>
    %c0_101 = arith.constant 0 : index
    %c24_102 = arith.constant 24 : index
    %152 = vector.load %arg17[%c0_101, %c24_102] : memref<8x32xf32, #tpu.memory_space<vmem>>, vector<8x8xf32>
    tpu.vector_store %arg17[%c0_101, %c24_102], %151 {strides = array<i32>} : memref<8x32xf32, #tpu.memory_space<vmem>>, vector<8x8xf32>,
    %c0_103 = arith.constant 0 : index
    %c3_104 = arith.constant 3 : index
    %153 = vector.load %arg18[%c0_103, %c3_104] : memref<8x4xf32, #tpu.memory_space<vmem>>, vector<8x1xf32>
    tpu.vector_store %arg18[%c0_103, %c3_104], %133 {strides = array<i32>} : memref<8x4xf32, #tpu.memory_space<vmem>>, vector<8x1xf32>,
    %c0_i32_105 = arith.constant 0 : i32
    %154 = arith.cmpi eq, %arg2, %c0_i32_105 : i32
    %155 = arith.extui %154 : i1 to i32
    %c0_i32_106 = arith.constant 0 : i32
    %156 = arith.cmpi ne, %155, %c0_i32_106 : i32
    scf.if %156 {
      %c0_107 = arith.constant 0 : index
      %c0_108 = arith.constant 0 : index
      %157 = vector.load %arg17[%c0_107, %c0_108] : memref<8x32xf32, #tpu.memory_space<vmem>>, vector<8x8xf32>
      %c0_109 = arith.constant 0 : index
      %c0_110 = arith.constant 0 : index
      %158 = vector.load %arg19[%c0_109, %c0_110] : memref<8x4xf32, #tpu.memory_space<vmem>>, vector<8x1xf32>
      %159 = tpu.reciprocal %158 {approx = true} : vector<8x1xf32> -> vector<8x1xf32>
      %160 = vector.broadcast %159 : vector<8x1xf32> to vector<8x8xf32>
      %161 = arith.mulf %157, %160 : vector<8x8xf32>
      %162 = arith.truncf %161 : vector<8x8xf32> to vector<8x8xbf16>
      %c0_111 = arith.constant 0 : index
      %c8_112 = arith.constant 8 : index
      %163 = vector.load %arg17[%c0_111, %c8_112] : memref<8x32xf32, #tpu.memory_space<vmem>>, vector<8x8xf32>
      %c0_113 = arith.constant 0 : index
      %c1_114 = arith.constant 1 : index
      %164 = vector.load %arg19[%c0_113, %c1_114] : memref<8x4xf32, #tpu.memory_space<vmem>>, vector<8x1xf32>
      %165 = tpu.reciprocal %164 {approx = true} : vector<8x1xf32> -> vector<8x1xf32>
      %166 = vector.broadcast %165 : vector<8x1xf32> to vector<8x8xf32>
      %167 = arith.mulf %163, %166 : vector<8x8xf32>
      %168 = arith.truncf %167 : vector<8x8xf32> to vector<8x8xbf16>
      %c0_115 = arith.constant 0 : index
      %c16_116 = arith.constant 16 : index
      %169 = vector.load %arg17[%c0_115, %c16_116] : memref<8x32xf32, #tpu.memory_space<vmem>>, vector<8x8xf32>
      %c0_117 = arith.constant 0 : index
      %c2_118 = arith.constant 2 : index
      %170 = vector.load %arg19[%c0_117, %c2_118] : memref<8x4xf32, #tpu.memory_space<vmem>>, vector<8x1xf32>
      %171 = tpu.reciprocal %170 {approx = true} : vector<8x1xf32> -> vector<8x1xf32>
      %172 = vector.broadcast %171 : vector<8x1xf32> to vector<8x8xf32>
      %173 = arith.mulf %169, %172 : vector<8x8xf32>
      %174 = arith.truncf %173 : vector<8x8xf32> to vector<8x8xbf16>
      %c0_119 = arith.constant 0 : index
      %c24_120 = arith.constant 24 : index
      %175 = vector.load %arg17[%c0_119, %c24_120] : memref<8x32xf32, #tpu.memory_space<vmem>>, vector<8x8xf32>
      %c0_121 = arith.constant 0 : index
      %c3_122 = arith.constant 3 : index
      %176 = vector.load %arg19[%c0_121, %c3_122] : memref<8x4xf32, #tpu.memory_space<vmem>>, vector<8x1xf32>
      %177 = tpu.reciprocal %176 {approx = true} : vector<8x1xf32> -> vector<8x1xf32>
      %178 = vector.broadcast %177 : vector<8x1xf32> to vector<8x8xf32>
      %179 = arith.mulf %175, %178 : vector<8x8xf32>
      %180 = arith.truncf %179 : vector<8x8xf32> to vector<8x8xbf16>
      %181 = tpu.concatenate %162, %168, %174, %180 in 1 : vector<8x8xbf16>, vector<8x8xbf16>, vector<8x8xbf16>, vector<8x8xbf16> -> vector<8x32xbf16>
      %c0_123 = arith.constant 0 : index
      %c0_124 = arith.constant 0 : index
      %182 = vector.load %arg7[%c0_123, %c0_124] : memref<32x32xbf16, #tpu.memory_space<vmem>>, vector<32x32xbf16>
      %cst_125 = arith.constant dense<0.000000e+00> : vector<8x32xf32>
      %183 = tpu.matmul %181, %182, %cst_125 {dimension_numbers = #tpu.dot_dimension_numbers<[1], [0], [0], [1], [0, 0, 1, 1], [], []>} : vector<8x32xbf16>, vector<32x32xbf16>, vector<8x32xf32> -> vector<8x32xf32>
      %c7 = arith.constant 7 : index
      %c0_126 = arith.constant 0 : index
      %184 = vector.load %arg8[%c7, %c0_126] : memref<8x32xf32, #tpu.memory_space<vmem>>, vector<1x32xf32>
      %185 = vector.broadcast %184 : vector<1x32xf32> to vector<8x32xf32>
      %186 = arith.addf %183, %185 : vector<8x32xf32>
      %c0_127 = arith.constant 0 : index
      %c0_128 = arith.constant 0 : index
      %c0_129 = arith.constant 0 : index
      %187 = vector.load %arg3[%c0_127, %c0_128, %c0_129] : memref<1x8x32xf32, #tpu.memory_space<vmem>>, vector<1x8x32xf32>
      %188 = vector.shape_cast %187 : vector<1x8x32xf32> to vector<8x32xf32>
      %189 = arith.addf %188, %186 : vector<8x32xf32>
      %c0_130 = arith.constant 0 : index
      %c0_131 = arith.constant 0 : index
      %c0_132 = arith.constant 0 : index
      %190 = vector.load %arg13[%c0_130, %c0_131, %c0_132] : memref<1x8x32xf32, #tpu.memory_space<vmem>>, vector<1x8x32xf32>
      %191 = vector.shape_cast %190 : vector<1x8x32xf32> to vector<8x32xf32>
      %192 = vector.shape_cast %189 : vector<8x32xf32> to vector<1x8x32xf32>
      tpu.vector_store %arg13[%c0_130, %c0_131, %c0_132], %192 {strides = array<i32>} : memref<1x8x32xf32, #tpu.memory_space<vmem>>, vector<1x8x32xf32>,
    } else {
    }
    return
  }
  func.func @transform_0(%arg0: i32, %arg1: i32, %arg2: i32) -> (i32, i32, i32) {
    %c0_i32 = arith.constant 0 : i32
    %c0_i32_0 = arith.constant 0 : i32
    return %arg0, %arg1, %c0_i32 : i32, i32, i32
  }
  func.func @transform_1(%arg0: i32, %arg1: i32, %arg2: i32) -> (i32, i32, i32) {
    %c0_i32 = arith.constant 0 : i32
    %c0_i32_0 = arith.constant 0 : i32
    return %arg0, %arg2, %c0_i32 : i32, i32, i32
  }
  func.func @transform_2(%arg0: i32, %arg1: i32, %arg2: i32) -> (i32, i32) {
    %c0_i32 = arith.constant 0 : i32
    %c0_i32_0 = arith.constant 0 : i32
    %c0_i32_1 = arith.constant 0 : i32
    return %c0_i32, %c0_i32_0 : i32, i32
  }
  func.func @transform_3(%arg0: i32, %arg1: i32, %arg2: i32) -> (i32, i32) {
    %c0_i32 = arith.constant 0 : i32
    %c0_i32_0 = arith.constant 0 : i32
    %c0_i32_1 = arith.constant 0 : i32
    return %c0_i32, %c0_i32_0 : i32, i32
  }
  func.func @transform_4(%arg0: i32, %arg1: i32, %arg2: i32) -> (i32, i32) {
    %c0_i32 = arith.constant 0 : i32
    %c0_i32_0 = arith.constant 0 : i32
    %c0_i32_1 = arith.constant 0 : i32
    return %c0_i32, %c0_i32_0 : i32, i32
  }
  func.func @transform_5(%arg0: i32, %arg1: i32, %arg2: i32) -> (i32, i32) {
    %c0_i32 = arith.constant 0 : i32
    %c0_i32_0 = arith.constant 0 : i32
    %c0_i32_1 = arith.constant 0 : i32
    return %c0_i32, %c0_i32_0 : i32, i32
  }
  func.func @transform_6(%arg0: i32, %arg1: i32, %arg2: i32) -> (i32, i32, i32) {
    %c0_i32 = arith.constant 0 : i32
    %c0_i32_0 = arith.constant 0 : i32
    return %arg0, %arg1, %c0_i32 : i32, i32, i32
  }
  func.func @transform_7(%arg0: i32, %arg1: i32, %arg2: i32) -> (i32, i32, i32) {
    %c0_i32 = arith.constant 0 : i32
    %c0_i32_0 = arith.constant 0 : i32
    return %arg0, %arg1, %c0_i32 : i32, i32, i32
  }
  func.func @transform_8(%arg0: i32, %arg1: i32, %arg2: i32) -> (i32, i32, i32) {
    %c0_i32 = arith.constant 0 : i32
    %c0_i32_0 = arith.constant 0 : i32
    return %arg0, %arg2, %c0_i32 : i32, i32, i32
  }
  func.func @transform_9(%arg0: i32, %arg1: i32, %arg2: i32) -> (i32, i32, i32) {
    %c0_i32 = arith.constant 0 : i32
    %c0_i32_0 = arith.constant 0 : i32
    return %arg0, %arg2, %c0_i32 : i32, i32, i32
  }
  func.func @transform_10(%arg0: i32, %arg1: i32, %arg2: i32) -> (i32, i32, i32) {
    %c0_i32 = arith.constant 0 : i32
    %c0_i32_0 = arith.constant 0 : i32
    return %arg0, %arg1, %c0_i32 : i32, i32, i32
  }
}

</mosaic_0001>

<llo_original>
// kernel: tpu_custom_call.1
$region0: #{tpu_custom_call.1}
  #allocation0 [shape = 'u32[]', space=smem, size = 0x4, offset = 0x4, fixed_abs, tag = 'smem constant byte address 0x4 - core index']
  #allocation1 [shape = 'u32[72,128]{1,0:T(1,128)}', space=vmem, size = 0x9000, scoped, tag = 'internal scratch']
  #allocation2 [shape = 'bf16[8,32]{1,0:T(8,128)(2,1)}', space=vmem, size = 0x800, scoped, tag = 'scratch operand']
  #allocation3 [shape = 'bf16[8,32]{1,0:T(8,128)(2,1)}', space=vmem, size = 0x800, scoped, tag = 'scratch operand']
  #allocation4 [shape = 'bf16[8,32]{1,0:T(8,128)(2,1)}', space=vmem, size = 0x800, scoped, tag = 'scratch operand']
  #allocation5 [shape = 'f32[8,32]{1,0:T(8,128)}', space=vmem, size = 0x1000, scoped, tag = 'scratch operand']
  #allocation6 [shape = 'f32[8,4]{1,0:T(8,128)}', space=vmem, size = 0x1000, scoped, tag = 'scratch operand']
  #allocation7 [shape = 'f32[8,4]{1,0:T(8,128)}', space=vmem, size = 0x1000, scoped, tag = 'scratch operand']
  %s0 = inlined_call_operand.hbm [shape: f32[2,8,32], index: 0, kind: input, shape index: {}]
  %s1 = inlined_call_operand.hbm [shape: f32[2,8,32], index: 1, kind: input, shape index: {}]
  %s2 = inlined_call_operand.hbm [shape: bf16[32,64], index: 2, kind: input, shape index: {}]
  %s3 = inlined_call_operand.hbm [shape: bf16[32,96], index: 3, kind: input, shape index: {}]
  %s4 = inlined_call_operand.hbm [shape: bf16[32,32], index: 4, kind: input, shape index: {}]
  %s5 = inlined_call_operand.hbm [shape: f32[8,32], index: 5, kind: input, shape index: {}]
  %s6 = inlined_call_operand.hbm [shape: f32[2,8,8], index: 6, kind: input, shape index: {}]
  %s7 = inlined_call_operand.hbm [shape: f32[2,8,8], index: 7, kind: input, shape index: {}]
  %s8 = inlined_call_operand.hbm [shape: f32[2,8,8], index: 8, kind: input, shape index: {}]
  %s9 = inlined_call_operand.hbm [shape: f32[2,8,8], index: 9, kind: input, shape index: {}]
  %s10 = inlined_call_operand.hbm [shape: f32[2,8,32], index: 10, kind: output, shape index: {}]
  %s11 = sld [smem:[#allocation0]]
  $region121: #{tpu_custom_call.1} parent=0
    _
  %s13 = ssub.s32 1, %s11
  %s14 = scalar_select 0, %s13, %s11
  $region1: #{tpu_custom_call.1} parent=0
    #allocation8 [shape = 'u8[8192]{0}', space=vmem, size = 0x2000, scoped, tag = 'input window, operand 0']
    #allocation9 [shape = 's32[2]{0}', space=sflag, size = 0x8, scoped, tag = 'scoped memory for tpu_custom_call.1']
    #allocation10 [shape = 's32[2]{0}', space=sflag, size = 0x8, scoped, tag = 'scoped memory for tpu_custom_call.1']
    #allocation11 [shape = 'u8[8192]{0}', space=vmem, size = 0x2000, scoped, tag = 'input window, operand 1']
    #allocation12 [shape = 's32[2]{0}', space=sflag, size = 0x8, scoped, tag = 'scoped memory for tpu_custom_call.1']
    #allocation13 [shape = 'u8[8192]{0}', space=vmem, size = 0x2000, scoped, tag = 'input window, operand 2, single buffered']
    #allocation14 [shape = 'u8[8192]{0}', space=vmem, size = 0x2000, scoped, tag = 'input window, operand 3, single buffered']
    #allocation15 [shape = 's32[1]{0}', space=sflag, size = 0x4, scoped, tag = 'scoped memory for tpu_custom_call.1']
    #allocation16 [shape = 'u8[8192]{0}', space=vmem, size = 0x2000, scoped, tag = 'input window, operand 4, single buffered']
    #allocation17 [shape = 'u8[4096]{0}', space=vmem, size = 0x1000, scoped, tag = 'input window, operand 5, single buffered']
    #allocation18 [shape = 's32[1]{0}', space=sflag, size = 0x4, scoped, tag = 'scoped memory for tpu_custom_call.1']
    #allocation19 [shape = 'u8[8192]{0}', space=vmem, size = 0x2000, scoped, tag = 'input window, operand 6']
    #allocation20 [shape = 'u8[8192]{0}', space=vmem, size = 0x2000, scoped, tag = 'input window, operand 7']
    #allocation21 [shape = 'u8[8192]{0}', space=vmem, size = 0x2000, scoped, tag = 'input window, operand 8']
    #allocation22 [shape = 'u8[8192]{0}', space=vmem, size = 0x2000, scoped, tag = 'input window, operand 9']
    #allocation23 [shape = 'u8[8192]{0}', space=vmem, size = 0x2000, scoped, tag = 'output window, operand 0']
    %15 = vsyncpa [#allocation9], 0
    %s16 = scalar_lea.sflag [#allocation9], 1
    %17 = vsyncpa %s16, 0
    %18 = vsyncpa [#allocation12], 0
    %s19 = scalar_lea.sflag [#allocation12], 1
    %20 = vsyncpa %s19, 0
    %21 = vsyncpa [#allocation15], 0
    %22 = vsyncpa [#allocation18], 0
    %23 = vsyncpa [#allocation10], 0
    %s24 = scalar_lea.sflag [#allocation10], 1
    %25 = vsyncpa %s24, 0
    loop: start=0, step=1, limit=4
    $region2: #{tpu_custom_call.1} parent=1 // loop_pre_header
      _
    $region3: #{tpu_custom_call.1} parent=1 // loop_header
      %s27 = sphi 0, %s31
      %p28 = scmp.ge.s32.totalorder %s27, 4
      %s34 = sphi 0, %s53
      %s35 = sphi 0, %s49
      %s36 = sphi 0, %s45
      %s37 = sphi 0, %s34
      %s38 = sphi 0, %s35
      %s39 = sphi 0, %s36
      %s40 = sphi 0, %s37
      %s41 = sphi 0, %s38
      %s42 = sphi 0, %s39
      %s58 = sphi 0, %s60
      %s61 = sphi 0, %s58
      %s62 = sphi 0, %s61
      %s78 = sphi 0, %s62
      %s86 = sphi 0, %s88
      %s89 = sphi 0, %s86
      %s90 = sphi 0, %s89
      %s106 = sphi 0, %s90
      %s110 = sphi 0, %s110
      %s112 = sphi 0, %s110
      %s113 = sphi 0, %s112
      %s127 = sphi 0, %s113
      %s131 = sphi 0, %s131
      %s133 = sphi 0, %s131
      %s134 = sphi 0, %s133
      %s148 = sphi 0, %s134
      %s152 = sphi 0, %s152
      %s154 = sphi 0, %s152
      %s155 = sphi 0, %s154
      %s169 = sphi 0, %s155
      %s173 = sphi 0, %s173
      %s175 = sphi 0, %s173
      %s176 = sphi 0, %s175
      %s190 = sphi 0, %s176
      %s198 = sphi 0, %s200
      %s201 = sphi 0, %s198
      %s202 = sphi 0, %s201
      %s218 = sphi 0, %s202
      %s226 = sphi 0, %s228
      %s229 = sphi 0, %s226
      %s230 = sphi 0, %s229
      %s246 = sphi 0, %s230
      %s254 = sphi 0, %s256
      %s257 = sphi 0, %s254
      %s258 = sphi 0, %s257
      %s274 = sphi 0, %s258
      %s282 = sphi 0, %s284
      %s285 = sphi 0, %s282
      %s286 = sphi 0, %s285
      %s302 = sphi 0, %s286
      %s310 = sphi 0, %s312
      %s313 = sphi 0, %s310
      %s314 = sphi 0, %s313
      %s330 = sphi 0, %s314
    $region4: #{tpu_custom_call.1} parent=1 // loop_header_branch
      %30 = sbr.rel (%p28) target = $region8
    $region5: #{tpu_custom_call.1} parent=1 // loop_body
      %s32 = ssub.s32 %s27, 1
      %s33 = ssub.s32 %s27, 2
      %s43 = sadd.s32 1, %s36
      %p44 = scmp.ge.s32.totalorder %s43, 1
      %s45 = scalar_select %p44, 0, %s43
      %s46 = sadd.s32 1, %s35
      %s47 = scalar_select %p44, %s46, %s35
      %p48 = scmp.ge.s32.totalorder %s47, 1
      %s49 = scalar_select %p48, 0, %s47
      %s50 = sadd.s32 1, %s34
      %s51 = scalar_select %p48, %s50, %s34
      %p52 = scmp.ge.s32.totalorder %s51, 2
      %s53 = scalar_select %p52, 0, %s51
      %s54 = ssub.s32 %s34, %s53
      %s55 = ssub.s32 %s35, %s49
      %s56 = sor.u32 %s54, %s55
      %p57 = scmp.eq.s32.totalorder %s56, 0
      %s59 = sadd.s32 %s58, 1
      %s60 = scalar_select %p57, %s58, %s59
      %p63 = pneg %p57
      %p64 = scmp.eq.s32.totalorder %s27, 1
      %p65 = por %p63, %p64
      %p66 = scmp.ne.s32.totalorder %s58, %s61
      %p67 = scmp.eq.s32.totalorder %s27, 0
      %p68 = por %p66, %p67
      %p69 = scmp.ne.s32.totalorder %s58, %s61
      %p70 = scmp.eq.s32.totalorder %s32, 1
      %p71 = por %p69, %p70
      %p72 = scmp.ne.s32.totalorder %s61, %s62
      %p73 = scmp.eq.s32.totalorder %s32, 0
      %p74 = por %p72, %p73
      %p75 = scmp.ne.s32.totalorder %s61, %s62
      %p76 = scmp.eq.s32.totalorder %s33, 1
      %p77 = por %p75, %p76
      %p79 = scmp.ne.s32.totalorder %s62, %s78
      %p80 = scmp.eq.s32.totalorder %s33, 0
      %p81 = por %p79, %p80
      %s82 = ssub.s32 %s34, %s53
      %s83 = ssub.s32 %s36, %s45
      %s84 = sor.u32 %s82, %s83
      %p85 = scmp.eq.s32.totalorder %s84, 0
      %s87 = sadd.s32 %s86, 1
      %s88 = scalar_select %p85, %s86, %s87
      %p91 = pneg %p85
      %p92 = scmp.eq.s32.totalorder %s27, 1
      %p93 = por %p91, %p92
      %p94 = scmp.ne.s32.totalorder %s86, %s89
      %p95 = scmp.eq.s32.totalorder %s27, 0
      %p96 = por %p94, %p95
      %p97 = scmp.ne.s32.totalorder %s86, %s89
      %p98 = scmp.eq.s32.totalorder %s32, 1
      %p99 = por %p97, %p98
      %p100 = scmp.ne.s32.totalorder %s89, %s90
      %p101 = scmp.eq.s32.totalorder %s32, 0
      %p102 = por %p100, %p101
      %p103 = scmp.ne.s32.totalorder %s89, %s90
      %p104 = scmp.eq.s32.totalorder %s33, 1
      %p105 = por %p103, %p104
      %p107 = scmp.ne.s32.totalorder %s90, %s106
      %p108 = scmp.eq.s32.totalorder %s33, 0
      %p109 = por %p107, %p108
      %s111 = sadd.s32 %s110, 1
      %p114 = scmp.eq.s32.totalorder %s27, 1
      %p115 = scmp.ne.s32.totalorder %s110, %s112
      %p116 = scmp.eq.s32.totalorder %s27, 0
      %p117 = por %p115, %p116
      %p118 = scmp.ne.s32.totalorder %s110, %s112
      %p119 = scmp.eq.s32.totalorder %s32, 1
      %p120 = por %p118, %p119
      %p121 = scmp.ne.s32.totalorder %s112, %s113
      %p122 = scmp.eq.s32.totalorder %s32, 0
      %p123 = por %p121, %p122
      %p124 = scmp.ne.s32.totalorder %s112, %s113
      %p125 = scmp.eq.s32.totalorder %s33, 1
      %p126 = por %p124, %p125
      %p128 = scmp.ne.s32.totalorder %s113, %s127
      %p129 = scmp.eq.s32.totalorder %s33, 0
      %p130 = por %p128, %p129
      %s132 = sadd.s32 %s131, 1
      %p135 = scmp.eq.s32.totalorder %s27, 1
      %p136 = scmp.ne.s32.totalorder %s131, %s133
      %p137 = scmp.eq.s32.totalorder %s27, 0
      %p138 = por %p136, %p137
      %p139 = scmp.ne.s32.totalorder %s131, %s133
      %p140 = scmp.eq.s32.totalorder %s32, 1
      %p141 = por %p139, %p140
      %p142 = scmp.ne.s32.totalorder %s133, %s134
      %p143 = scmp.eq.s32.totalorder %s32, 0
      %p144 = por %p142, %p143
      %p145 = scmp.ne.s32.totalorder %s133, %s134
      %p146 = scmp.eq.s32.totalorder %s33, 1
      %p147 = por %p145, %p146
      %p149 = scmp.ne.s32.totalorder %s134, %s148
      %p150 = scmp.eq.s32.totalorder %s33, 0
      %p151 = por %p149, %p150
      %s153 = sadd.s32 %s152, 1
      %p156 = scmp.eq.s32.totalorder %s27, 1
      %p157 = scmp.ne.s32.totalorder %s152, %s154
      %p158 = scmp.eq.s32.totalorder %s27, 0
      %p159 = por %p157, %p158
      %p160 = scmp.ne.s32.totalorder %s152, %s154
      %p161 = scmp.eq.s32.totalorder %s32, 1
      %p162 = por %p160, %p161
      %p163 = scmp.ne.s32.totalorder %s154, %s155
      %p164 = scmp.eq.s32.totalorder %s32, 0
      %p165 = por %p163, %p164
      %p166 = scmp.ne.s32.totalorder %s154, %s155
      %p167 = scmp.eq.s32.totalorder %s33, 1
      %p168 = por %p166, %p167
      %p170 = scmp.ne.s32.totalorder %s155, %s169
      %p171 = scmp.eq.s32.totalorder %s33, 0
      %p172 = por %p170, %p171
      %s174 = sadd.s32 %s173, 1
      %p177 = scmp.eq.s32.totalorder %s27, 1
      %p178 = scmp.ne.s32.totalorder %s173, %s175
      %p179 = scmp.eq.s32.totalorder %s27, 0
      %p180 = por %p178, %p179
      %p181 = scmp.ne.s32.totalorder %s173, %s175
      %p182 = scmp.eq.s32.totalorder %s32, 1
      %p183 = por %p181, %p182
      %p184 = scmp.ne.s32.totalorder %s175, %s176
      %p185 = scmp.eq.s32.totalorder %s32, 0
      %p186 = por %p184, %p185
      %p187 = scmp.ne.s32.totalorder %s175, %s176
      %p188 = scmp.eq.s32.totalorder %s33, 1
      %p189 = por %p187, %p188
      %p191 = scmp.ne.s32.totalorder %s176, %s190
      %p192 = scmp.eq.s32.totalorder %s33, 0
      %p193 = por %p191, %p192
      %s194 = ssub.s32 %s34, %s53
      %s195 = ssub.s32 %s35, %s49
      %s196 = sor.u32 %s194, %s195
      %p197 = scmp.eq.s32.totalorder %s196, 0
      %s199 = sadd.s32 %s198, 1
      %s200 = scalar_select %p197, %s198, %s199
      %p203 = pneg %p197
      %p204 = scmp.eq.s32.totalorder %s27, 1
      %p205 = por %p203, %p204
      %p206 = scmp.ne.s32.totalorder %s198, %s201
      %p207 = scmp.eq.s32.totalorder %s27, 0
      %p208 = por %p206, %p207
      %p209 = scmp.ne.s32.totalorder %s198, %s201
      %p210 = scmp.eq.s32.totalorder %s32, 1
      %p211 = por %p209, %p210
      %p212 = scmp.ne.s32.totalorder %s201, %s202
      %p213 = scmp.eq.s32.totalorder %s32, 0
      %p214 = por %p212, %p213
      %p215 = scmp.ne.s32.totalorder %s201, %s202
      %p216 = scmp.eq.s32.totalorder %s33, 1
      %p217 = por %p215, %p216
      %p219 = scmp.ne.s32.totalorder %s202, %s218
      %p220 = scmp.eq.s32.totalorder %s33, 0
      %p221 = por %p219, %p220
      %s222 = ssub.s32 %s34, %s53
      %s223 = ssub.s32 %s35, %s49
      %s224 = sor.u32 %s222, %s223
      %p225 = scmp.eq.s32.totalorder %s224, 0
      %s227 = sadd.s32 %s226, 1
      %s228 = scalar_select %p225, %s226, %s227
      %p231 = pneg %p225
      %p232 = scmp.eq.s32.totalorder %s27, 1
      %p233 = por %p231, %p232
      %p234 = scmp.ne.s32.totalorder %s226, %s229
      %p235 = scmp.eq.s32.totalorder %s27, 0
      %p236 = por %p234, %p235
      %p237 = scmp.ne.s32.totalorder %s226, %s229
      %p238 = scmp.eq.s32.totalorder %s32, 1
      %p239 = por %p237, %p238
      %p240 = scmp.ne.s32.totalorder %s229, %s230
      %p241 = scmp.eq.s32.totalorder %s32, 0
      %p242 = por %p240, %p241
      %p243 = scmp.ne.s32.totalorder %s229, %s230
      %p244 = scmp.eq.s32.totalorder %s33, 1
      %p245 = por %p243, %p244
      %p247 = scmp.ne.s32.totalorder %s230, %s246
      %p248 = scmp.eq.s32.totalorder %s33, 0
      %p249 = por %p247, %p248
      %s250 = ssub.s32 %s34, %s53
      %s251 = ssub.s32 %s36, %s45
      %s252 = sor.u32 %s250, %s251
      %p253 = scmp.eq.s32.totalorder %s252, 0
      %s255 = sadd.s32 %s254, 1
      %s256 = scalar_select %p253, %s254, %s255
      %p259 = pneg %p253
      %p260 = scmp.eq.s32.totalorder %s27, 1
      %p261 = por %p259, %p260
      %p262 = scmp.ne.s32.totalorder %s254, %s257
      %p263 = scmp.eq.s32.totalorder %s27, 0
      %p264 = por %p262, %p263
      %p265 = scmp.ne.s32.totalorder %s254, %s257
      %p266 = scmp.eq.s32.totalorder %s32, 1
      %p267 = por %p265, %p266
      %p268 = scmp.ne.s32.totalorder %s257, %s258
      %p269 = scmp.eq.s32.totalorder %s32, 0
      %p270 = por %p268, %p269
      %p271 = scmp.ne.s32.totalorder %s257, %s258
      %p272 = scmp.eq.s32.totalorder %s33, 1
      %p273 = por %p271, %p272
      %p275 = scmp.ne.s32.totalorder %s258, %s274
      %p276 = scmp.eq.s32.totalorder %s33, 0
      %p277 = por %p275, %p276
      %s278 = ssub.s32 %s34, %s53
      %s279 = ssub.s32 %s36, %s45
      %s280 = sor.u32 %s278, %s279
      %p281 = scmp.eq.s32.totalorder %s280, 0
      %s283 = sadd.s32 %s282, 1
      %s284 = scalar_select %p281, %s282, %s283
      %p287 = pneg %p281
      %p288 = scmp.eq.s32.totalorder %s27, 1
      %p289 = por %p287, %p288
      %p290 = scmp.ne.s32.totalorder %s282, %s285
      %p291 = scmp.eq.s32.totalorder %s27, 0
      %p292 = por %p290, %p291
      %p293 = scmp.ne.s32.totalorder %s282, %s285
      %p294 = scmp.eq.s32.totalorder %s32, 1
      %p295 = por %p293, %p294
      %p296 = scmp.ne.s32.totalorder %s285, %s286
      %p297 = scmp.eq.s32.totalorder %s32, 0
      %p298 = por %p296, %p297
      %p299 = scmp.ne.s32.totalorder %s285, %s286
      %p300 = scmp.eq.s32.totalorder %s33, 1
      %p301 = por %p299, %p300
      %p303 = scmp.ne.s32.totalorder %s286, %s302
      %p304 = scmp.eq.s32.totalorder %s33, 0
      %p305 = por %p303, %p304
      %s306 = ssub.s32 %s34, %s53
      %s307 = ssub.s32 %s35, %s49
      %s308 = sor.u32 %s306, %s307
      %p309 = scmp.eq.s32.totalorder %s308, 0
      %s311 = sadd.s32 %s310, 1
      %s312 = scalar_select %p309, %s310, %s311
      %p315 = pneg %p309
      %p316 = scmp.eq.s32.totalorder %s27, 1
      %p317 = por %p315, %p316
      %p318 = scmp.ne.s32.totalorder %s310, %s313
      %p319 = scmp.eq.s32.totalorder %s27, 0
      %p320 = por %p318, %p319
      %p321 = scmp.ne.s32.totalorder %s310, %s313
      %p322 = scmp.eq.s32.totalorder %s32, 1
      %p323 = por %p321, %p322
      %p324 = scmp.ne.s32.totalorder %s313, %s314
      %p325 = scmp.eq.s32.totalorder %s32, 0
      %p326 = por %p324, %p325
      %p327 = scmp.ne.s32.totalorder %s313, %s314
      %p328 = scmp.eq.s32.totalorder %s33, 1
      %p329 = por %p327, %p328
      %p331 = scmp.ne.s32.totalorder %s314, %s330
      %p332 = scmp.eq.s32.totalorder %s33, 0
      %p333 = por %p331, %p332
      %p334 = scmp.le.s32.totalorder 1, %s27
      %p335 = scmp.lt.s32.totalorder %s27, 3
      %p336 = pnand %p334, %p335
      %p337 = pneg %p336
      // Predicated region
      $region9: #{tpu_custom_call.1} parent=5 // pred_check
        _
      $region10: #{tpu_custom_call.1} parent=5 // pred_check_branch
        %339 = sbr.rel (%p336) target = $region12
      $region11: #{tpu_custom_call.1} parent=5 // pred_region
        %s340 = ssub.s32 %s27, 1
        // Predicated region
        $region13: #{tpu_custom_call.1} parent=11 // pred_check
          %p341 = pneg %p123
        $region14: #{tpu_custom_call.1} parent=11 // pred_check_branch
          %343 = sbr.rel (%p341) target = $region16
        $region15: #{tpu_custom_call.1} parent=11 // pred_region
          %345 = vsyncadd [#allocation12], 0
          %s346 = sshll.u32 %s2, 4
          %s347 = int_to_ptr.hbm [resolvable:$true] %s346
          %s348 = sshll.u32 [#allocation13], 4
          %s349 = int_to_ptr.vmem [resolvable:$true] %s348
          %354 = dma.hbm_to_vmem [thread:$0]  %s347, 256, %s349, [#allocation12], 64, 64, 4
        $region16: #{tpu_custom_call.1} parent=11 // pred_fallthru
          _
        // Predicated region
        $region17: #{tpu_custom_call.1} parent=11 // pred_check
          %p355 = pneg %p144
        $region18: #{tpu_custom_call.1} parent=11 // pred_check_branch
          %357 = sbr.rel (%p355) target = $region20
        $region19: #{tpu_custom_call.1} parent=11 // pred_region
          %359 = vsyncadd [#allocation15], 0
          %s360 = sshll.u32 %s3, 4
          %s361 = int_to_ptr.hbm [resolvable:$true] %s360
          %s362 = sshll.u32 [#allocation14], 4
          %s363 = int_to_ptr.vmem [resolvable:$true] %s362
          %368 = dma.hbm_to_vmem [thread:$0]  %s361, 256, %s363, [#allocation15], 64, 64, 4
        $region20: #{tpu_custom_call.1} parent=11 // pred_fallthru
          _
        // Predicated region
        $region21: #{tpu_custom_call.1} parent=11 // pred_check
          %p369 = pneg %p165
        $region22: #{tpu_custom_call.1} parent=11 // pred_check_branch
          %371 = sbr.rel (%p369) target = $region24
        $region23: #{tpu_custom_call.1} parent=11 // pred_region
          %373 = vsyncadd [#allocation15], 0
          %s374 = sshll.u32 %s4, 4
          %s375 = int_to_ptr.hbm [resolvable:$true] %s374
          %s376 = sshll.u32 [#allocation16], 4
          %s377 = int_to_ptr.vmem [resolvable:$true] %s376
          %382 = dma.hbm_to_vmem [thread:$0]  %s375, 256, %s377, [#allocation15], 64, 64, 4
        $region24: #{tpu_custom_call.1} parent=11 // pred_fallthru
          _
        // Predicated region
        $region25: #{tpu_custom_call.1} parent=11 // pred_check
          %p383 = pneg %p186
        $region26: #{tpu_custom_call.1} parent=11 // pred_check_branch
          %385 = sbr.rel (%p383) target = $region28
        $region27: #{tpu_custom_call.1} parent=11 // pred_region
          %387 = vsyncadd [#allocation18], 0
          %s389 = sshll.u32 %s5, 4
          %s390 = int_to_ptr.hbm [resolvable:$true] %s389
          %s391 = sshll.u32 [#allocation17], 4
          %s392 = int_to_ptr.vmem [resolvable:$true] %s391
          %394 = dma.hbm_to_vmem [thread:$0]  %s390, 128, %s392, [#allocation18]
        $region28: #{tpu_custom_call.1} parent=11 // pred_fallthru
          _
      $region12: #{tpu_custom_call.1} parent=5 // pred_fallthru
        _
      %p395 = scmp.lt.s32.totalorder %s27, 2
      // Predicated region
      $region29: #{tpu_custom_call.1} parent=5 // pred_check
        %p396 = pneg %p395
      $region30: #{tpu_custom_call.1} parent=5 // pred_check_branch
        %398 = sbr.rel (%p396) target = $region32
      $region31: #{tpu_custom_call.1} parent=5 // pred_region
        // Predicated region
        $region33: #{tpu_custom_call.1} parent=31 // pred_check
          %p399 = pneg %p68
        $region34: #{tpu_custom_call.1} parent=31 // pred_check_branch
          %401 = sbr.rel (%p399) target = $region36
        $region35: #{tpu_custom_call.1} parent=31 // pred_region
          %s402 = sand.u32 %s27, 1
          %s403 = scalar_lea.sflag [#allocation9], %s402
          %s404 = sand.u32 %s58, 1
          %s405 = smul.addr %s404, 8
          %s406 = scalar_lea.vmem [#allocation8], %s405
          %408 = vsyncadd %s403, 0
          %s409 = sadd.s32 %s35, %s34
          %s410 = smul.addr %s409, 8
          %s411 = scalar_lea.hbm %s0, %s410
          %s413 = sshll.u32 %s411, 4
          %s414 = int_to_ptr.hbm [resolvable:$true] %s413
          %s415 = sshll.u32 %s406, 4
          %s416 = int_to_ptr.vmem [resolvable:$true] %s415
          %418 = dma.hbm_to_vmem [thread:$0]  %s414, 128, %s416, %s403
        $region36: #{tpu_custom_call.1} parent=31 // pred_fallthru
          _
        // Predicated region
        $region37: #{tpu_custom_call.1} parent=31 // pred_check
          %p419 = pneg %p96
        $region38: #{tpu_custom_call.1} parent=31 // pred_check_branch
          %421 = sbr.rel (%p419) target = $region40
        $region39: #{tpu_custom_call.1} parent=31 // pred_region
          %s422 = sand.u32 %s27, 1
          %s423 = scalar_lea.sflag [#allocation12], %s422
          %s424 = sand.u32 %s86, 1
          %s425 = smul.addr %s424, 8
          %s426 = scalar_lea.vmem [#allocation11], %s425
          %428 = vsyncadd %s423, 0
          %s429 = sadd.s32 %s36, %s34
          %s430 = smul.addr %s429, 8
          %s431 = scalar_lea.hbm %s1, %s430
          %s433 = sshll.u32 %s431, 4
          %s434 = int_to_ptr.hbm [resolvable:$true] %s433
          %s435 = sshll.u32 %s426, 4
          %s436 = int_to_ptr.vmem [resolvable:$true] %s435
          %438 = dma.hbm_to_vmem [thread:$0]  %s434, 128, %s436, %s423
        $region40: #{tpu_custom_call.1} parent=31 // pred_fallthru
          _
        // Predicated region
        $region41: #{tpu_custom_call.1} parent=31 // pred_check
          %p439 = pneg %p208
        $region42: #{tpu_custom_call.1} parent=31 // pred_check_branch
          %441 = sbr.rel (%p439) target = $region44
        $region43: #{tpu_custom_call.1} parent=31 // pred_region
          %s442 = sand.u32 %s27, 1
          %s443 = scalar_lea.sflag [#allocation9], %s442
          %s444 = sand.u32 %s198, 1
          %s445 = smul.addr %s444, 8
          %s446 = scalar_lea.vmem [#allocation19], %s445
          %448 = vsyncadd %s443, 0
          %s449 = sadd.s32 %s35, %s34
          %s450 = smul.addr %s449, 8
          %s451 = scalar_lea.hbm %s6, %s450
          %s453 = sshll.u32 %s451, 4
          %s454 = int_to_ptr.hbm [resolvable:$true] %s453
          %s455 = sshll.u32 %s446, 4
          %s456 = int_to_ptr.vmem [resolvable:$true] %s455
          %458 = dma.hbm_to_vmem [thread:$0]  %s454, 128, %s456, %s443
        $region44: #{tpu_custom_call.1} parent=31 // pred_fallthru
          _
        // Predicated region
        $region45: #{tpu_custom_call.1} parent=31 // pred_check
          %p459 = pneg %p236
        $region46: #{tpu_custom_call.1} parent=31 // pred_check_branch
          %461 = sbr.rel (%p459) target = $region48
        $region47: #{tpu_custom_call.1} parent=31 // pred_region
          %s462 = sand.u32 %s27, 1
          %s463 = scalar_lea.sflag [#allocation12], %s462
          %s464 = sand.u32 %s226, 1
          %s465 = smul.addr %s464, 8
          %s466 = scalar_lea.vmem [#allocation20], %s465
          %468 = vsyncadd %s463, 0
          %s469 = sadd.s32 %s35, %s34
          %s470 = smul.addr %s469, 8
          %s471 = scalar_lea.hbm %s7, %s470
          %s473 = sshll.u32 %s471, 4
          %s474 = int_to_ptr.hbm [resolvable:$true] %s473
          %s475 = sshll.u32 %s466, 4
          %s476 = int_to_ptr.vmem [resolvable:$true] %s475
          %478 = dma.hbm_to_vmem [thread:$0]  %s474, 128, %s476, %s463
        $region48: #{tpu_custom_call.1} parent=31 // pred_fallthru
          _
        // Predicated region
        $region49: #{tpu_custom_call.1} parent=31 // pred_check
          %p479 = pneg %p264
        $region50: #{tpu_custom_call.1} parent=31 // pred_check_branch
          %481 = sbr.rel (%p479) target = $region52
        $region51: #{tpu_custom_call.1} parent=31 // pred_region
          %s482 = sand.u32 %s27, 1
          %s483 = scalar_lea.sflag [#allocation9], %s482
          %s484 = sand.u32 %s254, 1
          %s485 = smul.addr %s484, 8
          %s486 = scalar_lea.vmem [#allocation21], %s485
          %488 = vsyncadd %s483, 0
          %s489 = sadd.s32 %s36, %s34
          %s490 = smul.addr %s489, 8
          %s491 = scalar_lea.hbm %s8, %s490
          %s493 = sshll.u32 %s491, 4
          %s494 = int_to_ptr.hbm [resolvable:$true] %s493
          %s495 = sshll.u32 %s486, 4
          %s496 = int_to_ptr.vmem [resolvable:$true] %s495
          %498 = dma.hbm_to_vmem [thread:$0]  %s494, 128, %s496, %s483
        $region52: #{tpu_custom_call.1} parent=31 // pred_fallthru
          _
        // Predicated region
        $region53: #{tpu_custom_call.1} parent=31 // pred_check
          %p499 = pneg %p292
        $region54: #{tpu_custom_call.1} parent=31 // pred_check_branch
          %501 = sbr.rel (%p499) target = $region56
        $region55: #{tpu_custom_call.1} parent=31 // pred_region
          %s502 = sand.u32 %s27, 1
          %s503 = scalar_lea.sflag [#allocation12], %s502
          %s504 = sand.u32 %s282, 1
          %s505 = smul.addr %s504, 8
          %s506 = scalar_lea.vmem [#allocation22], %s505
          %508 = vsyncadd %s503, 0
          %s509 = sadd.s32 %s36, %s34
          %s510 = smul.addr %s509, 8
          %s511 = scalar_lea.hbm %s9, %s510
          %s513 = sshll.u32 %s511, 4
          %s514 = int_to_ptr.hbm [resolvable:$true] %s513
          %s515 = sshll.u32 %s506, 4
          %s516 = int_to_ptr.vmem [resolvable:$true] %s515
          %518 = dma.hbm_to_vmem [thread:$0]  %s514, 128, %s516, %s503
        $region56: #{tpu_custom_call.1} parent=31 // pred_fallthru
          _
      $region32: #{tpu_custom_call.1} parent=5 // pred_fallthru
        _
      %p519 = scmp.le.s32.totalorder 1, %s27
      %p520 = scmp.lt.s32.totalorder %s27, 3
      %p521 = pnand %p519, %p520
      %p522 = pneg %p521
      // Predicated region
      $region57: #{tpu_custom_call.1} parent=5 // pred_check
        _
      $region58: #{tpu_custom_call.1} parent=5 // pred_check_branch
        %524 = sbr.rel (%p521) target = $region60
      $region59: #{tpu_custom_call.1} parent=5 // pred_region
        %s525 = ssub.s32 %s27, 1
        %s526 = sand.u32 %s32, 1
        %s527 = scalar_lea.sflag [#allocation9], %s526
        %s528 = sand.u32 %s61, 1
        %s529 = smul.addr %s528, 8
        %s530 = scalar_lea.vmem [#allocation8], %s529
        // Predicated region
        $region61: #{tpu_custom_call.1} parent=59 // pred_check
          %p531 = pneg %p74
        $region62: #{tpu_custom_call.1} parent=59 // pred_check_branch
          %533 = sbr.rel (%p531) target = $region64
        $region63: #{tpu_custom_call.1} parent=59 // pred_region
          %535 = dma.done %s527, 128
        $region64: #{tpu_custom_call.1} parent=59 // pred_fallthru
          _
        %s536 = sand.u32 %s32, 1
        %s537 = scalar_lea.sflag [#allocation12], %s536
        %s538 = sand.u32 %s89, 1
        %s539 = smul.addr %s538, 8
        %s540 = scalar_lea.vmem [#allocation11], %s539
        // Predicated region
        $region65: #{tpu_custom_call.1} parent=59 // pred_check
          %p541 = pneg %p102
        $region66: #{tpu_custom_call.1} parent=59 // pred_check_branch
          %543 = sbr.rel (%p541) target = $region68
        $region67: #{tpu_custom_call.1} parent=59 // pred_region
          %545 = dma.done %s537, 128
        $region68: #{tpu_custom_call.1} parent=59 // pred_fallthru
          _
        // Predicated region
        $region69: #{tpu_custom_call.1} parent=59 // pred_check
          %p546 = pneg %p123
        $region70: #{tpu_custom_call.1} parent=59 // pred_check_branch
          %548 = sbr.rel (%p546) target = $region72
        $region71: #{tpu_custom_call.1} parent=59 // pred_region
          %550 = dma.done [#allocation12], 256
        $region72: #{tpu_custom_call.1} parent=59 // pred_fallthru
          _
        // Predicated region
        $region73: #{tpu_custom_call.1} parent=59 // pred_check
          %p551 = pneg %p144
        $region74: #{tpu_custom_call.1} parent=59 // pred_check_branch
          %553 = sbr.rel (%p551) target = $region76
        $region75: #{tpu_custom_call.1} parent=59 // pred_region
          %555 = dma.done [#allocation15], 256
        $region76: #{tpu_custom_call.1} parent=59 // pred_fallthru
          _
        // Predicated region
        $region77: #{tpu_custom_call.1} parent=59 // pred_check
          %p556 = pneg %p165
        $region78: #{tpu_custom_call.1} parent=59 // pred_check_branch
          %558 = sbr.rel (%p556) target = $region80
        $region79: #{tpu_custom_call.1} parent=59 // pred_region
          %560 = dma.done [#allocation15], 256
        $region80: #{tpu_custom_call.1} parent=59 // pred_fallthru
          _
        // Predicated region
        $region81: #{tpu_custom_call.1} parent=59 // pred_check
          %p561 = pneg %p186
        $region82: #{tpu_custom_call.1} parent=59 // pred_check_branch
          %563 = sbr.rel (%p561) target = $region84
        $region83: #{tpu_custom_call.1} parent=59 // pred_region
          %565 = dma.done [#allocation18], 128
        $region84: #{tpu_custom_call.1} parent=59 // pred_fallthru
          _
        %s566 = sand.u32 %s32, 1
        %s567 = scalar_lea.sflag [#allocation9], %s566
        %s568 = sand.u32 %s201, 1
        %s569 = smul.addr %s568, 8
        %s570 = scalar_lea.vmem [#allocation19], %s569
        // Predicated region
        $region85: #{tpu_custom_call.1} parent=59 // pred_check
          %p571 = pneg %p214
        $region86: #{tpu_custom_call.1} parent=59 // pred_check_branch
          %573 = sbr.rel (%p571) target = $region88
        $region87: #{tpu_custom_call.1} parent=59 // pred_region
          %575 = dma.done %s567, 128
        $region88: #{tpu_custom_call.1} parent=59 // pred_fallthru
          _
        %s576 = sand.u32 %s32, 1
        %s577 = scalar_lea.sflag [#allocation12], %s576
        %s578 = sand.u32 %s229, 1
        %s579 = smul.addr %s578, 8
        %s580 = scalar_lea.vmem [#allocation20], %s579
        // Predicated region
        $region89: #{tpu_custom_call.1} parent=59 // pred_check
          %p581 = pneg %p242
        $region90: #{tpu_custom_call.1} parent=59 // pred_check_branch
          %583 = sbr.rel (%p581) target = $region92
        $region91: #{tpu_custom_call.1} parent=59 // pred_region
          %585 = dma.done %s577, 128
        $region92: #{tpu_custom_call.1} parent=59 // pred_fallthru
          _
        %s586 = sand.u32 %s32, 1
        %s587 = scalar_lea.sflag [#allocation9], %s586
        %s588 = sand.u32 %s257, 1
        %s589 = smul.addr %s588, 8
        %s590 = scalar_lea.vmem [#allocation21], %s589
        // Predicated region
        $region93: #{tpu_custom_call.1} parent=59 // pred_check
          %p591 = pneg %p270
        $region94: #{tpu_custom_call.1} parent=59 // pred_check_branch
          %593 = sbr.rel (%p591) target = $region96
        $region95: #{tpu_custom_call.1} parent=59 // pred_region
          %595 = dma.done %s587, 128
        $region96: #{tpu_custom_call.1} parent=59 // pred_fallthru
          _
        %s596 = sand.u32 %s32, 1
        %s597 = scalar_lea.sflag [#allocation12], %s596
        %s598 = sand.u32 %s285, 1
        %s599 = smul.addr %s598, 8
        %s600 = scalar_lea.vmem [#allocation22], %s599
        // Predicated region
        $region97: #{tpu_custom_call.1} parent=59 // pred_check
          %p601 = pneg %p298
        $region98: #{tpu_custom_call.1} parent=59 // pred_check_branch
          %603 = sbr.rel (%p601) target = $region100
        $region99: #{tpu_custom_call.1} parent=59 // pred_region
          %605 = dma.done %s597, 128
        $region100: #{tpu_custom_call.1} parent=59 // pred_fallthru
          _
        %s606 = sand.u32 %s32, 1
        %s607 = scalar_lea.sflag [#allocation9], %s606
        %s608 = sand.u32 %s61, 1
        %s609 = smul.addr %s608, 8
        %s610 = scalar_lea.vmem [#allocation8], %s609
        %p611 = pneg %p74
        %p612 = pneg %p71
        %s613 = sand.u32 %s32, 1
        %s614 = scalar_lea.sflag [#allocation12], %s613
        %s615 = sand.u32 %s89, 1
        %s616 = smul.addr %s615, 8
        %s617 = scalar_lea.vmem [#allocation11], %s616
        %p618 = pneg %p102
        %p619 = pneg %p99
        %p620 = pneg %p123
        %p621 = pneg %p120
        %p622 = pneg %p144
        %p623 = pneg %p141
        %p624 = pneg %p165
        %p625 = pneg %p162
        %p626 = pneg %p186
        %p627 = pneg %p183
        %s628 = sand.u32 %s32, 1
        %s629 = scalar_lea.sflag [#allocation9], %s628
        %s630 = sand.u32 %s201, 1
        %s631 = smul.addr %s630, 8
        %s632 = scalar_lea.vmem [#allocation19], %s631
        %p633 = pneg %p214
        %p634 = pneg %p211
        %s635 = sand.u32 %s32, 1
        %s636 = scalar_lea.sflag [#allocation12], %s635
        %s637 = sand.u32 %s229, 1
        %s638 = smul.addr %s637, 8
        %s639 = scalar_lea.vmem [#allocation20], %s638
        %p640 = pneg %p242
        %p641 = pneg %p239
        %s642 = sand.u32 %s32, 1
        %s643 = scalar_lea.sflag [#allocation9], %s642
        %s644 = sand.u32 %s257, 1
        %s645 = smul.addr %s644, 8
        %s646 = scalar_lea.vmem [#allocation21], %s645
        %p647 = pneg %p270
        %p648 = pneg %p267
        %s649 = sand.u32 %s32, 1
        %s650 = scalar_lea.sflag [#allocation12], %s649
        %s651 = sand.u32 %s285, 1
        %s652 = smul.addr %s651, 8
        %s653 = scalar_lea.vmem [#allocation22], %s652
        %p654 = pneg %p298
        %p655 = pneg %p295
        %p656 = pneg %p326
        %p657 = pneg %p323
        %s658 = sand.u32 %s313, 1
        %s659 = scalar_lea.sflag [#allocation10], %s658
        %s660 = sand.u32 %s313, 1
        %s661 = smul.addr %s660, 8
        %s662 = scalar_lea.vmem [#allocation23], %s661
        %v664 = vld [vmem:[#allocation17] sm:$0x1]
        %p665 = scmp.eq.s32.totalorder %s39, 0
        // Predicated region
        $region101: #{tpu_custom_call.1} parent=59 // pred_check
          %p666 = pneg %p665
        $region102: #{tpu_custom_call.1} parent=59 // pred_check_branch
          %668 = sbr.rel (%p666) target = $region104
        $region103: #{tpu_custom_call.1} parent=59 // pred_region
          %v669 = vld [vmem:[%s530] sm:$0xff]
          %v670 = vmul.f32 %v669, %v669
          %vm671 = vcmask 261120
          %v672 = vsel %vm671, %v670, 0.0
          %673 = vadd.xlane.f32.xlu0 %v672
          %v674 = vpop.xlane.xlu0 %673
          %v675 = vrcp.pop 32.0
          %v676 = vmul.f32 32.0, %v675
          %v677 = vsub.f32 1.0, %v676
          %v678 = vmul.f32 %v675, %v677
          %v679 = vadd.f32 %v675, %v678
          %vm680 = vweird.f32 %v675
          %v681 = vsel %vm680, %v675, %v679
          %v682 = vmul.f32 %v674, %v681
          %v683 = vadd.f32 %v682, 1e-06
          %v684 = vrsqrt.pop %v683
          %v685 = vmul.f32 %v684, %v683
          %v686 = vmul.f32 %v685, %v684
          %v687 = vmul.f32 0.5, %v686
          %v688 = vsub.f32 1.5, %v687
          %v689 = vmul.f32 %v684, %v688
          %vm690 = vweird.f32 %v683
          %vm691 = vweird.f32 %v684
          %vm692 = vmor %vm690, %vm691
          %v693 = vsel %vm692, %v684, %v689
          %v694 = vmul.f32 %v669, %v693
          %v695 = vperm.slane %v664, 0
          %v696 = vmul.f32 %v694, %v695
          %v697 = vpack.c.bf16 %v696, %v696
          %v698 = vld [vmem:[#allocation13] sm:$0xf]
          %v699 = vld [vmem:[#allocation13 + $0x4] sm:$0xf]
          %v700 = vld [vmem:[#allocation13 + $0x8] sm:$0xf]
          %v701 = vld [vmem:[#allocation13 + $0xc] sm:$0xf]
          %v706 = vunpack.c.l.b16 %v698
          %v707 = vunpack.c.l.b16 %v699
          %v708 = vunpack.c.l.b16 %v700
          %v709 = vunpack.c.l.b16 %v701
          %v710 = vpack.c.b16 %v707, %v706
          %v711 = vpack.c.b16 %v709, %v708
          %v715 = vsel %vm671, %v697, 0
          %717 = vmatpush.bf16.msra.mxu0 0
          %718 = vmatpush.bf16.msra.mxu0 0
          %719 = vmatpush.bf16.msra.mxu0 0
          %720 = vmatpush.bf16.msra.mxu0 0
          %721 = vmatpush.bf16.msra.mxu0 0
          %722 = vmatpush.bf16.msra.mxu0 0
          %723 = vmatpush.bf16.msra.mxu0 %v711
          %724 = vmatpush.bf16.msra.mxu0 %v710
          %725 = vmatmul.bf16.gmra.mxu0 %v715
          %v726 = vpop.f32.mrf.mxu0
          %v727 = vadd.f32 0.0, %v726
          %v728 = vpop.f32.mrf.mxu0
          %729 = vdwg.mxu0
          %v730 = vld [vmem:[#allocation17 + $0x2] sm:$0x1]
          %v731 = vperm.slane %v730, 0
          %v732 = vadd.f32 %v727, %v731
          %v733 = vld [vmem:[#allocation17 + $0x3] sm:$0x1]
          %v734 = vperm.slane %v733, 0
          %736 = vrot.lane.b32.xlu0 %v734, 32
          %v737 = vpop.permute.xlu0 %736
          %v739 = vadd.f32 %v727, %v737
          %v740 = vld [vmem:[%s570] sm:$0xff]
          %742 = vrot.lane.b32.xlu0 %v740, 8
          %v743 = vpop.permute.xlu0 %742
          %745 = vrot.lane.b32.xlu0 %v740, 16
          %v746 = vpop.permute.xlu0 %745
          %748 = vrot.lane.b32.xlu0 %v740, 24
          %v749 = vpop.permute.xlu0 %748
          %vm751 = vcmask 64512
          %v752 = vsel %vm751, %v740, %v743
          %vm753 = vcmask 130048
          %v754 = vsel %vm753, %v752, %v746
          %vm755 = vcmask 195584
          %v756 = vsel %vm755, %v754, %v749
          %v757 = vmul.f32 %v732, %v756
          %v758 = vld [vmem:[%s580] sm:$0xff]
          %760 = vrot.lane.b32.xlu0 %v758, 8
          %v761 = vpop.permute.xlu0 %760
          %763 = vrot.lane.b32.xlu0 %v758, 16
          %v764 = vpop.permute.xlu0 %763
          %766 = vrot.lane.b32.xlu0 %v758, 24
          %v767 = vpop.permute.xlu0 %766
          %v769 = vsel %vm751, %v758, %v761
          %v770 = vsel %vm753, %v769, %v764
          %v771 = vsel %vm755, %v770, %v767
          %773 = vrot.lane.b32.xlu0 %v771, 32
          %v774 = vpop.permute.xlu0 %773
          %v776 = vmul.f32 %v739, %v774
          %778 = vrot.lane.b32.xlu0 %v776, 96
          %v779 = vpop.permute.xlu0 %778
          %v781 = vadd.f32 %v757, %v779
          %v782 = vmul.f32 %v781, 0.35355338
          %v783 = vpack.c.bf16 %v782, %v782
          %vm784 = vcmask 257024
          %785 = vst.msk [vmem:[#allocation2] sm:$0xf] %vm784, %v783
          %vm786 = vcmask 31744
          %787 = vst.msk [vmem:[#allocation6] sm:$0xff] %vm786, -inf
          %788 = vst.msk [vmem:[#allocation7] sm:$0xff] %vm786, 0.0
          %789 = vst.msk [vmem:[#allocation5] sm:$0xff] %vm671, 0.0
        $region104: #{tpu_custom_call.1} parent=59 // pred_fallthru
          _
        %v790 = vld [vmem:[%s540] sm:$0xff]
        %v791 = vmul.f32 %v790, %v790
        %vm792 = vcmask 261120
        %v793 = vsel %vm792, %v791, 0.0
        %794 = vadd.xlane.f32.xlu0 %v793
        %v795 = vpop.xlane.xlu0 %794
        %v796 = vrcp.pop 32.0
        %v797 = vmul.f32 32.0, %v796
        %v798 = vsub.f32 1.0, %v797
        %v799 = vmul.f32 %v796, %v798
        %v800 = vadd.f32 %v796, %v799
        %vm801 = vweird.f32 %v796
        %v802 = vsel %vm801, %v796, %v800
        %v803 = vmul.f32 %v795, %v802
        %v804 = vadd.f32 %v803, 1e-06
        %v805 = vrsqrt.pop %v804
        %v806 = vmul.f32 %v805, %v804
        %v807 = vmul.f32 %v806, %v805
        %v808 = vmul.f32 0.5, %v807
        %v809 = vsub.f32 1.5, %v808
        %v810 = vmul.f32 %v805, %v809
        %vm811 = vweird.f32 %v804
        %vm812 = vweird.f32 %v805
        %vm813 = vmor %vm811, %vm812
        %v814 = vsel %vm813, %v805, %v810
        %v815 = vmul.f32 %v790, %v814
        %v816 = vperm.slane %v664, 0
        %v817 = vmul.f32 %v815, %v816
        %v818 = vpack.c.bf16 %v817, %v817
        %v819 = vld [vmem:[#allocation14] sm:$0xf]
        %v820 = vld [vmem:[#allocation14 + $0x4] sm:$0xf]
        %v821 = vld [vmem:[#allocation14 + $0x8] sm:$0xf]
        %v822 = vld [vmem:[#allocation14 + $0xc] sm:$0xf]
        %v827 = vunpack.c.l.b16 %v819
        %v828 = vunpack.c.l.b16 %v820
        %v829 = vunpack.c.l.b16 %v821
        %v830 = vunpack.c.l.b16 %v822
        %v831 = vpack.c.b16 %v828, %v827
        %v832 = vpack.c.b16 %v830, %v829
        %v836 = vsel %vm792, %v818, 0
        %838 = vmatpush.bf16.msra.mxu0 0
        %839 = vmatpush.bf16.msra.mxu0 0
        %840 = vmatpush.bf16.msra.mxu0 0
        %841 = vmatpush.bf16.msra.mxu0 0
        %842 = vmatpush.bf16.msra.mxu0 0
        %843 = vmatpush.bf16.msra.mxu0 0
        %844 = vmatpush.bf16.msra.mxu0 %v832
        %845 = vmatpush.bf16.msra.mxu0 %v831
        %846 = vmatmul.bf16.gmra.mxu0 %v836
        %v847 = vpop.f32.mrf.mxu0
        %v848 = vadd.f32 0.0, %v847
        %v849 = vpop.f32.mrf.mxu0
        %850 = vdwg.mxu0
        %v851 = vld [vmem:[#allocation17 + $0x4] sm:$0x1]
        %v852 = vperm.slane %v851, 0
        %v853 = vadd.f32 %v848, %v852
        %v854 = vld [vmem:[#allocation17 + $0x5] sm:$0x1]
        %v855 = vperm.slane %v854, 0
        %857 = vrot.lane.b32.xlu0 %v855, 32
        %v858 = vpop.permute.xlu0 %857
        %v860 = vadd.f32 %v848, %v858
        %v861 = vld [vmem:[%s590] sm:$0xff]
        %863 = vrot.lane.b32.xlu0 %v861, 8
        %v864 = vpop.permute.xlu0 %863
        %866 = vrot.lane.b32.xlu0 %v861, 16
        %v867 = vpop.permute.xlu0 %866
        %869 = vrot.lane.b32.xlu0 %v861, 24
        %v870 = vpop.permute.xlu0 %869
        %vm872 = vcmask 64512
        %v873 = vsel %vm872, %v861, %v864
        %vm874 = vcmask 130048
        %v875 = vsel %vm874, %v873, %v867
        %vm876 = vcmask 195584
        %v877 = vsel %vm876, %v875, %v870
        %v878 = vmul.f32 %v853, %v877
        %v879 = vld [vmem:[%s600] sm:$0xff]
        %881 = vrot.lane.b32.xlu0 %v879, 8
        %v882 = vpop.permute.xlu0 %881
        %884 = vrot.lane.b32.xlu0 %v879, 16
        %v885 = vpop.permute.xlu0 %884
        %887 = vrot.lane.b32.xlu0 %v879, 24
        %v888 = vpop.permute.xlu0 %887
        %v890 = vsel %vm872, %v879, %v882
        %v891 = vsel %vm874, %v890, %v885
        %v892 = vsel %vm876, %v891, %v888
        %894 = vrot.lane.b32.xlu0 %v892, 32
        %v895 = vpop.permute.xlu0 %894
        %v897 = vmul.f32 %v860, %v895
        %899 = vrot.lane.b32.xlu0 %v897, 96
        %v900 = vpop.permute.xlu0 %899
        %v902 = vadd.f32 %v878, %v900
        %v903 = vpack.c.bf16 %v902, %v902
        %vm904 = vcmask 257024
        %905 = vst.msk [vmem:[#allocation3] sm:$0xf] %vm904, %v903
        %v906 = vld [vmem:[#allocation17 + $0x6] sm:$0x1]
        %v907 = vperm.slane %v906, 0
        %909 = vrot.lane.b32.xlu0 %v907, 64
        %v910 = vpop.permute.xlu0 %909
        %v912 = vadd.f32 %v848, %v910
        %v913 = vpack.c.bf16 %v912, %v912
        %915 = vrot.lane.b32.xlu0 %v913, 64
        %v916 = vpop.permute.xlu0 %915
        %918 = vst.msk [vmem:[#allocation4] sm:$0xf] %vm904, %v916
        %v919 = vld [vmem:[#allocation2] sm:$0xf]
        %v920 = vld [vmem:[#allocation3] sm:$0xf]
        %v922 = vsel %vm872, %v919, 0
        %v925 = vsel %vm872, %v920, 0
        %927 = vmatpush.bf16.xpose.msra.mxu0 0
        %928 = vmatpush.bf16.xpose.msra.mxu0 0
        %929 = vmatpush.bf16.xpose.msra.mxu0 0
        %930 = vmatpush.bf16.xpose.msra.mxu0 0
        %931 = vmatpush.bf16.xpose.msra.mxu0 0
        %932 = vmatpush.bf16.xpose.msra.mxu0 0
        %933 = vmatpush.bf16.xpose.msra.mxu0 0
        %934 = vmatpush.bf16.xpose.msra.mxu0 %v925
        %935 = vmatmul.bf16.gmra.mxu0 %v922
        %v936 = vpop.f32.mrf.mxu0
        %v937 = vadd.f32 0.0, %v936
        %v938 = vpop.f32.mrf.mxu0
        %939 = vdwg.mxu0
        %v940 = vld [vmem:[#allocation6] sm:$0xff]
        %v941 = vsel %vm872, %v937, -inf
        %942 = vmax.xlane.f32.xlu0 %v941
        %v943 = vpop.xlane.xlu0 %942
        %v944 = vmax.f32 %v940, %v943
        %v945 = vsub.f32 %v940, %v944
        %v946 = vmul.f32 %v945, 1.442695
        %v947 = vpow.pop %v946
        %949 = vset.pattern.permute.xlu0 0
        %950 = vperm.xlu0 %949, %v944
        %v951 = vpop.permute.xlu0 %950
        %v953 = vsub.f32 %v937, %v951
        %v954 = vmul.f32 %v953, 1.442695
        %v955 = vpow.pop %v954
        %v956 = vld [vmem:[#allocation7] sm:$0xff]
        %v957 = vmul.f32 %v947, %v956
        %v958 = vsel %vm872, %v955, 0.0
        %959 = vadd.xlane.f32.xlu0 %v958
        %v960 = vpop.xlane.xlu0 %959
        %v961 = vadd.f32 %v957, %v960
        %vm962 = vcmask 7168
        %963 = vst.msk [vmem:[#allocation7] sm:$0xff] %vm962, %v961
        %v964 = vpack.c.bf16 %v955, %v955
        %v965 = vld [vmem:[#allocation4] sm:$0xf]
        %v967 = vsel %vm872, %v964, 0
        %vm969 = vcmask 1043456
        %v971 = vsel %vm969, %v965, 0
        %973 = vmatpush.bf16.msra.mxu0 0
        %974 = vmatpush.bf16.msra.mxu0 0
        %975 = vmatpush.bf16.msra.mxu0 0
        %976 = vmatpush.bf16.msra.mxu0 0
        %977 = vmatpush.bf16.msra.mxu0 0
        %978 = vmatpush.bf16.msra.mxu0 0
        %979 = vmatpush.bf16.msra.mxu0 0
        %980 = vmatpush.bf16.msra.mxu0 %v971
        %981 = vmatmul.bf16.gmra.mxu0 %v967
        %v982 = vpop.f32.mrf.mxu0
        %v983 = vadd.f32 0.0, %v982
        %v984 = vpop.f32.mrf.mxu0
        %985 = vdwg.mxu0
        %v986 = vld [vmem:[#allocation5] sm:$0xff]
        %988 = vset.pattern.permute.xlu0 0
        %989 = vperm.xlu0 %988, %v947
        %v990 = vpop.permute.xlu0 %989
        %v992 = vmul.f32 %v990, %v986
        %v993 = vadd.f32 %v992, %v983
        %994 = vst.msk [vmem:[#allocation5] sm:$0xff] %vm872, %v993
        %995 = vst.msk [vmem:[#allocation6] sm:$0xff] %vm962, %v944
        %v996 = vld [vmem:[#allocation2] sm:$0xf]
        %v997 = vld [vmem:[#allocation3] sm:$0xf]
        %v999 = vunpack.c.l.b16 %v996
        %v1000 = vpack.c.b16 %v999, %v999
        %1001 = vrot.lane.b32.xlu0 %v1000, 120
        %v1002 = vpop.permute.xlu0 %1001
        %v1004 = vunpack.c.l.b16 %v997
        %v1005 = vpack.c.b16 %v1004, %v1004
        %1006 = vrot.lane.b32.xlu0 %v1005, 120
        %v1007 = vpop.permute.xlu0 %1006
        %v1009 = vsel %vm872, %v1002, 0
        %v1012 = vsel %vm872, %v1007, 0
        %1014 = vmatpush.bf16.xpose.msra.mxu0 0
        %1015 = vmatpush.bf16.xpose.msra.mxu0 0
        %1016 = vmatpush.bf16.xpose.msra.mxu0 0
        %1017 = vmatpush.bf16.xpose.msra.mxu0 0
        %1018 = vmatpush.bf16.xpose.msra.mxu0 0
        %1019 = vmatpush.bf16.xpose.msra.mxu0 0
        %1020 = vmatpush.bf16.xpose.msra.mxu0 0
        %1021 = vmatpush.bf16.xpose.msra.mxu0 %v1012
        %1022 = vmatmul.bf16.gmra.mxu0 %v1009
        %v1023 = vpop.f32.mrf.mxu0
        %v1024 = vadd.f32 0.0, %v1023
        %v1025 = vpop.f32.mrf.mxu0
        %1026 = vdwg.mxu0
        %v1027 = vld [vmem:[#allocation6] sm:$0xff]
        %v1028 = vsel %vm872, %v1024, -inf
        %1029 = vmax.xlane.f32.xlu0 %v1028
        %v1030 = vpop.xlane.xlu0 %1029
        %v1031 = vmax.f32 %v1027, %v1030
        %v1032 = vsub.f32 %v1027, %v1031
        %v1033 = vmul.f32 %v1032, 1.442695
        %v1034 = vpow.pop %v1033
        %1036 = vset.pattern.permute.xlu0 1
        %1037 = vperm.xlu0 %1036, %v1031
        %v1038 = vpop.permute.xlu0 %1037
        %v1040 = vsub.f32 %v1024, %v1038
        %v1041 = vmul.f32 %v1040, 1.442695
        %v1042 = vpow.pop %v1041
        %v1043 = vld [vmem:[#allocation7] sm:$0xff]
        %v1044 = vmul.f32 %v1034, %v1043
        %v1045 = vsel %vm872, %v1042, 0.0
        %1046 = vadd.xlane.f32.xlu0 %v1045
        %v1047 = vpop.xlane.xlu0 %1046
        %v1048 = vadd.f32 %v1044, %v1047
        %vm1049 = vcmask 15368
        %1050 = vst.msk [vmem:[#allocation7] sm:$0xff] %vm1049, %v1048
        %v1051 = vpack.c.bf16 %v1042, %v1042
        %v1052 = vld [vmem:[#allocation4] sm:$0xf]
        %v1054 = vunpack.c.l.b16 %v1052
        %v1055 = vpack.c.b16 %v1054, %v1054
        %1056 = vrot.lane.b32.xlu0 %v1055, 120
        %v1057 = vpop.permute.xlu0 %1056
        %v1059 = vsel %vm872, %v1051, 0
        %v1062 = vsel %vm969, %v1057, 0
        %1064 = vmatpush.bf16.msra.mxu0 0
        %1065 = vmatpush.bf16.msra.mxu0 0
        %1066 = vmatpush.bf16.msra.mxu0 0
        %1067 = vmatpush.bf16.msra.mxu0 0
        %1068 = vmatpush.bf16.msra.mxu0 0
        %1069 = vmatpush.bf16.msra.mxu0 0
        %1070 = vmatpush.bf16.msra.mxu0 0
        %1071 = vmatpush.bf16.msra.mxu0 %v1062
        %1072 = vmatmul.bf16.gmra.mxu0 %v1059
        %v1073 = vpop.f32.mrf.mxu0
        %v1074 = vadd.f32 0.0, %v1073
        %v1075 = vpop.f32.mrf.mxu0
        %1076 = vdwg.mxu0
        %v1077 = vld [vmem:[#allocation5] sm:$0xff]
        %1079 = vset.pattern.permute.xlu0 1
        %1080 = vperm.xlu0 %1079, %v1034
        %v1081 = vpop.permute.xlu0 %1080
        %v1083 = vmul.f32 %v1081, %v1077
        %1085 = vrot.lane.b32.xlu0 %v1074, 8
        %v1086 = vpop.permute.xlu0 %1085
        %v1088 = vadd.f32 %v1083, %v1086
        %vm1089 = vcmask 130112
        %1090 = vst.msk [vmem:[#allocation5] sm:$0xff] %vm1089, %v1088
        %1091 = vst.msk [vmem:[#allocation6] sm:$0xff] %vm1049, %v1031
        %v1092 = vld [vmem:[#allocation2] sm:$0xf]
        %v1093 = vld [vmem:[#allocation3] sm:$0xf]
        %v1095 = vunpack.c.l.b16 %v1092
        %v1096 = vpack.c.b16 %v1095, %v1095
        %1097 = vrot.lane.b32.xlu0 %v1096, 112
        %v1098 = vpop.permute.xlu0 %1097
        %v1100 = vunpack.c.l.b16 %v1093
        %v1101 = vpack.c.b16 %v1100, %v1100
        %1102 = vrot.lane.b32.xlu0 %v1101, 112
        %v1103 = vpop.permute.xlu0 %1102
        %v1105 = vsel %vm872, %v1098, 0
        %v1108 = vsel %vm872, %v1103, 0
        %1110 = vmatpush.bf16.xpose.msra.mxu0 0
        %1111 = vmatpush.bf16.xpose.msra.mxu0 0
        %1112 = vmatpush.bf16.xpose.msra.mxu0 0
        %1113 = vmatpush.bf16.xpose.msra.mxu0 0
        %1114 = vmatpush.bf16.xpose.msra.mxu0 0
        %1115 = vmatpush.bf16.xpose.msra.mxu0 0
        %1116 = vmatpush.bf16.xpose.msra.mxu0 0
        %1117 = vmatpush.bf16.xpose.msra.mxu0 %v1108
        %1118 = vmatmul.bf16.gmra.mxu0 %v1105
        %v1119 = vpop.f32.mrf.mxu0
        %v1120 = vadd.f32 0.0, %v1119
        %v1121 = vpop.f32.mrf.mxu0
        %1122 = vdwg.mxu0
        %v1123 = vld [vmem:[#allocation6] sm:$0xff]
        %v1124 = vsel %vm872, %v1120, -inf
        %1125 = vmax.xlane.f32.xlu0 %v1124
        %v1126 = vpop.xlane.xlu0 %1125
        %v1127 = vmax.f32 %v1123, %v1126
        %v1128 = vsub.f32 %v1123, %v1127
        %v1129 = vmul.f32 %v1128, 1.442695
        %v1130 = vpow.pop %v1129
        %1132 = vset.pattern.permute.xlu0 2
        %1133 = vperm.xlu0 %1132, %v1127
        %v1134 = vpop.permute.xlu0 %1133
        %v1136 = vsub.f32 %v1120, %v1134
        %v1137 = vmul.f32 %v1136, 1.442695
        %v1138 = vpow.pop %v1137
        %v1139 = vld [vmem:[#allocation7] sm:$0xff]
        %v1140 = vmul.f32 %v1130, %v1139
        %v1141 = vsel %vm872, %v1138, 0.0
        %1142 = vadd.xlane.f32.xlu0 %v1141
        %v1143 = vpop.xlane.xlu0 %1142
        %v1144 = vadd.f32 %v1140, %v1143
        %vm1145 = vcmask 23568
        %1146 = vst.msk [vmem:[#allocation7] sm:$0xff] %vm1145, %v1144
        %v1147 = vpack.c.bf16 %v1138, %v1138
        %v1148 = vld [vmem:[#allocation4] sm:$0xf]
        %v1150 = vunpack.c.l.b16 %v1148
        %v1151 = vpack.c.b16 %v1150, %v1150
        %1152 = vrot.lane.b32.xlu0 %v1151, 112
        %v1153 = vpop.permute.xlu0 %1152
        %v1155 = vsel %vm872, %v1147, 0
        %v1158 = vsel %vm969, %v1153, 0
        %1160 = vmatpush.bf16.msra.mxu0 0
        %1161 = vmatpush.bf16.msra.mxu0 0
        %1162 = vmatpush.bf16.msra.mxu0 0
        %1163 = vmatpush.bf16.msra.mxu0 0
        %1164 = vmatpush.bf16.msra.mxu0 0
        %1165 = vmatpush.bf16.msra.mxu0 0
        %1166 = vmatpush.bf16.msra.mxu0 0
        %1167 = vmatpush.bf16.msra.mxu0 %v1158
        %1168 = vmatmul.bf16.gmra.mxu0 %v1155
        %v1169 = vpop.f32.mrf.mxu0
        %v1170 = vadd.f32 0.0, %v1169
        %v1171 = vpop.f32.mrf.mxu0
        %1172 = vdwg.mxu0
        %v1173 = vld [vmem:[#allocation5] sm:$0xff]
        %1175 = vset.pattern.permute.xlu0 2
        %1176 = vperm.xlu0 %1175, %v1130
        %v1177 = vpop.permute.xlu0 %1176
        %v1179 = vmul.f32 %v1177, %v1173
        %1181 = vrot.lane.b32.xlu0 %v1170, 16
        %v1182 = vpop.permute.xlu0 %1181
        %v1184 = vadd.f32 %v1179, %v1182
        %vm1185 = vcmask 195712
        %1186 = vst.msk [vmem:[#allocation5] sm:$0xff] %vm1185, %v1184
        %1187 = vst.msk [vmem:[#allocation6] sm:$0xff] %vm1145, %v1127
        %v1188 = vld [vmem:[#allocation2] sm:$0xf]
        %v1189 = vld [vmem:[#allocation3] sm:$0xf]
        %v1191 = vunpack.c.l.b16 %v1188
        %v1192 = vpack.c.b16 %v1191, %v1191
        %1193 = vrot.lane.b32.xlu0 %v1192, 104
        %v1194 = vpop.permute.xlu0 %1193
        %v1196 = vunpack.c.l.b16 %v1189
        %v1197 = vpack.c.b16 %v1196, %v1196
        %1198 = vrot.lane.b32.xlu0 %v1197, 104
        %v1199 = vpop.permute.xlu0 %1198
        %v1201 = vsel %vm872, %v1194, 0
        %v1204 = vsel %vm872, %v1199, 0
        %1206 = vmatpush.bf16.xpose.msra.mxu0 0
        %1207 = vmatpush.bf16.xpose.msra.mxu0 0
        %1208 = vmatpush.bf16.xpose.msra.mxu0 0
        %1209 = vmatpush.bf16.xpose.msra.mxu0 0
        %1210 = vmatpush.bf16.xpose.msra.mxu0 0
        %1211 = vmatpush.bf16.xpose.msra.mxu0 0
        %1212 = vmatpush.bf16.xpose.msra.mxu0 0
        %1213 = vmatpush.bf16.xpose.msra.mxu0 %v1204
        %1214 = vmatmul.bf16.gmra.mxu0 %v1201
        %v1215 = vpop.f32.mrf.mxu0
        %v1216 = vadd.f32 0.0, %v1215
        %v1217 = vpop.f32.mrf.mxu0
        %1218 = vdwg.mxu0
        %v1219 = vld [vmem:[#allocation6] sm:$0xff]
        %v1220 = vsel %vm872, %v1216, -inf
        %1221 = vmax.xlane.f32.xlu0 %v1220
        %v1222 = vpop.xlane.xlu0 %1221
        %v1223 = vmax.f32 %v1219, %v1222
        %v1224 = vsub.f32 %v1219, %v1223
        %v1225 = vmul.f32 %v1224, 1.442695
        %v1226 = vpow.pop %v1225
        %1228 = vset.pattern.permute.xlu0 3
        %1229 = vperm.xlu0 %1228, %v1223
        %v1230 = vpop.permute.xlu0 %1229
        %v1232 = vsub.f32 %v1216, %v1230
        %v1233 = vmul.f32 %v1232, 1.442695
        %v1234 = vpow.pop %v1233
        %v1235 = vld [vmem:[#allocation7] sm:$0xff]
        %v1236 = vmul.f32 %v1226, %v1235
        %v1237 = vsel %vm872, %v1234, 0.0
        %1238 = vadd.xlane.f32.xlu0 %v1237
        %v1239 = vpop.xlane.xlu0 %1238
        %v1240 = vadd.f32 %v1236, %v1239
        %vm1241 = vcmask 31768
        %1242 = vst.msk [vmem:[#allocation7] sm:$0xff] %vm1241, %v1240
        %v1243 = vpack.c.bf16 %v1234, %v1234
        %v1244 = vld [vmem:[#allocation4] sm:$0xf]
        %v1246 = vunpack.c.l.b16 %v1244
        %v1247 = vpack.c.b16 %v1246, %v1246
        %1248 = vrot.lane.b32.xlu0 %v1247, 104
        %v1249 = vpop.permute.xlu0 %1248
        %v1251 = vsel %vm872, %v1243, 0
        %v1254 = vsel %vm969, %v1249, 0
        %1256 = vmatpush.bf16.msra.mxu0 0
        %1257 = vmatpush.bf16.msra.mxu0 0
        %1258 = vmatpush.bf16.msra.mxu0 0
        %1259 = vmatpush.bf16.msra.mxu0 0
        %1260 = vmatpush.bf16.msra.mxu0 0
        %1261 = vmatpush.bf16.msra.mxu0 0
        %1262 = vmatpush.bf16.msra.mxu0 0
        %1263 = vmatpush.bf16.msra.mxu0 %v1254
        %1264 = vmatmul.bf16.gmra.mxu0 %v1251
        %v1265 = vpop.f32.mrf.mxu0
        %v1266 = vadd.f32 0.0, %v1265
        %v1267 = vpop.f32.mrf.mxu0
        %1268 = vdwg.mxu0
        %v1269 = vld [vmem:[#allocation5] sm:$0xff]
        %1271 = vset.pattern.permute.xlu0 3
        %1272 = vperm.xlu0 %1271, %v1226
        %v1273 = vpop.permute.xlu0 %1272
        %v1275 = vmul.f32 %v1273, %v1269
        %1277 = vrot.lane.b32.xlu0 %v1266, 24
        %v1278 = vpop.permute.xlu0 %1277
        %v1280 = vadd.f32 %v1275, %v1278
        %vm1281 = vcmask 261312
        %1282 = vst.msk [vmem:[#allocation5] sm:$0xff] %vm1281, %v1280
        %1283 = vst.msk [vmem:[#allocation6] sm:$0xff] %vm1241, %v1223
        // Predicated region
        $region105: #{tpu_custom_call.1} parent=59 // pred_check
          %p1284 = pneg %p665
        $region106: #{tpu_custom_call.1} parent=59 // pred_check_branch
          %1286 = sbr.rel (%p1284) target = $region108
        $region107: #{tpu_custom_call.1} parent=59 // pred_region
          %v1287 = vld [vmem:[#allocation5] sm:$0xff]
          %v1288 = vld [vmem:[#allocation7] sm:$0xff]
          %v1289 = vrcp.pop %v1288
          %1291 = vset.pattern.permute.xlu0 0
          %1292 = vperm.xlu0 %1291, %v1289
          %v1293 = vpop.permute.xlu0 %1292
          %v1295 = vmul.f32 %v1287, %v1293
          %v1296 = vpack.c.bf16 %v1295, %v1295
          %1297 = vset.pattern.permute.xlu0 1
          %1298 = vperm.xlu0 %1297, %v1289
          %v1299 = vpop.permute.xlu0 %1298
          %v1301 = vmul.f32 %v1287, %v1299
          %v1302 = vpack.c.bf16 %v1301, %v1301
          %1303 = vset.pattern.permute.xlu0 2
          %1304 = vperm.xlu0 %1303, %v1289
          %v1305 = vpop.permute.xlu0 %1304
          %v1307 = vmul.f32 %v1287, %v1305
          %v1308 = vpack.c.bf16 %v1307, %v1307
          %1309 = vset.pattern.permute.xlu0 3
          %1310 = vperm.xlu0 %1309, %v1289
          %v1311 = vpop.permute.xlu0 %1310
          %v1313 = vmul.f32 %v1287, %v1311
          %v1314 = vpack.c.bf16 %v1313, %v1313
          %v1317 = vsel %vm872, %v1296, %v1302
          %v1319 = vsel %vm874, %v1317, %v1308
          %v1321 = vsel %vm876, %v1319, %v1314
          %v1322 = vld [vmem:[#allocation16] sm:$0xf]
          %v1323 = vld [vmem:[#allocation16 + $0x4] sm:$0xf]
          %v1324 = vld [vmem:[#allocation16 + $0x8] sm:$0xf]
          %v1325 = vld [vmem:[#allocation16 + $0xc] sm:$0xf]
          %v1326 = vld [vmem:[#allocation17 + $0x7] sm:$0x1]
          %v1327 = vperm.slane %v1326, 0
          %v1332 = vunpack.c.l.b16 %v1322
          %v1333 = vunpack.c.l.b16 %v1323
          %v1334 = vunpack.c.l.b16 %v1324
          %v1335 = vunpack.c.l.b16 %v1325
          %v1336 = vpack.c.b16 %v1333, %v1332
          %v1337 = vpack.c.b16 %v1335, %v1334
          %v1340 = vsel %vm792, %v1321, 0
          %1342 = vmatpush.bf16.msra.mxu0 0
          %1343 = vmatpush.bf16.msra.mxu0 0
          %1344 = vmatpush.bf16.msra.mxu0 0
          %1345 = vmatpush.bf16.msra.mxu0 0
          %1346 = vmatpush.bf16.msra.mxu0 0
          %1347 = vmatpush.bf16.msra.mxu0 0
          %1348 = vmatpush.bf16.msra.mxu0 %v1337
          %1349 = vmatpush.bf16.msra.mxu0 %v1336
          %1350 = vmatmul.bf16.gmra.mxu0 %v1340
          %v1351 = vpop.f32.mrf.mxu0
          %v1352 = vadd.f32 %v1327, %v1351
          %v1353 = vpop.f32.mrf.mxu0
          %1354 = vdwg.mxu0
          %v1355 = vld [vmem:[%s530] sm:$0xff]
          %v1356 = vadd.f32 %v1355, %v1352
          %1357 = vst.msk [vmem:[%s662] sm:$0xff] %vm792, %v1356
        $region108: #{tpu_custom_call.1} parent=59 // pred_fallthru
          _
        %s1358 = sand.u32 %s313, 1
        %s1359 = scalar_lea.sflag [#allocation10], %s1358
        %s1360 = sand.u32 %s313, 1
        %s1361 = smul.addr %s1360, 8
        %s1362 = scalar_lea.vmem [#allocation23], %s1361
        // Predicated region
        $region109: #{tpu_custom_call.1} parent=59 // pred_check
          %p1363 = pneg %p323
        $region110: #{tpu_custom_call.1} parent=59 // pred_check_branch
          %1365 = sbr.rel (%p1363) target = $region112
        $region111: #{tpu_custom_call.1} parent=59 // pred_region
          %1367 = vsyncadd %s1359, 0
          %s1368 = sadd.s32 %s38, %s37
          %s1369 = smul.addr %s1368, 8
          %s1370 = scalar_lea.hbm %s10, %s1369
          %s1372 = sshll.u32 %s1362, 4
          %s1373 = int_to_ptr.vmem [resolvable:$true] %s1372
          %s1374 = sshll.u32 %s1370, 4
          %s1375 = int_to_ptr.hbm [resolvable:$true] %s1374
          %1377 = dma.vmem_to_hbm [thread:$0]  %s1373, 128, %s1375, %s1359
        $region112: #{tpu_custom_call.1} parent=59 // pred_fallthru
          _
      $region60: #{tpu_custom_call.1} parent=5 // pred_fallthru
        _
      %p1378 = scmp.le.s32.totalorder 2, %s27
      // Predicated region
      $region113: #{tpu_custom_call.1} parent=5 // pred_check
        %p1379 = pneg %p1378
      $region114: #{tpu_custom_call.1} parent=5 // pred_check_branch
        %1381 = sbr.rel (%p1379) target = $region116
      $region115: #{tpu_custom_call.1} parent=5 // pred_region
        %s1382 = ssub.s32 %s27, 2
        // Predicated region
        $region117: #{tpu_custom_call.1} parent=115 // pred_check
          %p1383 = pneg %p329
        $region118: #{tpu_custom_call.1} parent=115 // pred_check_branch
          %1385 = sbr.rel (%p1383) target = $region120
        $region119: #{tpu_custom_call.1} parent=115 // pred_region
          %s1386 = sand.u32 %s314, 1
          %s1387 = scalar_lea.sflag [#allocation10], %s1386
          %s1388 = sand.u32 %s314, 1
          %s1389 = smul.addr %s1388, 8
          %s1390 = scalar_lea.vmem [#allocation23], %s1389
          %1392 = dma.done %s1387, 128
        $region120: #{tpu_custom_call.1} parent=115 // pred_fallthru
          _
      $region116: #{tpu_custom_call.1} parent=5 // pred_fallthru
        _
    $region6: #{tpu_custom_call.1} parent=1 // loop_footer
      %s31 = sadd.s32 1, %s27
    $region7: #{tpu_custom_call.1} parent=1 // loop_footer_branch
      %26 = sbr.rel target = $region3
    $region8: #{tpu_custom_call.1} parent=1 // loop_exit
      _
    %1393 = vsyncpa [#allocation9], 1
    %s1394 = scalar_lea.sflag [#allocation9], 1
    %1395 = vsyncpa %s1394, 1
    %1396 = vsyncpa [#allocation12], 1
    %s1397 = scalar_lea.sflag [#allocation12], 1
    %1398 = vsyncpa %s1397, 1
    %1399 = vsyncpa [#allocation15], 1
    %1400 = vsyncpa [#allocation18], 1
    %1401 = vsyncpa [#allocation10], 1
    %s1402 = scalar_lea.sflag [#allocation10], 1
    %1403 = vsyncpa %s1402, 1

// kernel: tpu_custom_call.1
$region0: #{tpu_custom_call.1}
  #allocation0 [shape = 'u32[]', space=smem, size = 0x4, offset = 0x4, fixed_abs, tag = 'smem constant byte address 0x4 - core index']
  #allocation1 [shape = 'u32[72,128]{1,0:T(1,128)}', space=vmem, size = 0x9000, scoped, tag = 'internal scratch']
  #allocation2 [shape = 'bf16[8,32]{1,0:T(8,128)(2,1)}', space=vmem, size = 0x800, scoped, tag = 'scratch operand']
  #allocation3 [shape = 'bf16[8,32]{1,0:T(8,128)(2,1)}', space=vmem, size = 0x800, scoped, tag = 'scratch operand']
  #allocation4 [shape = 'bf16[8,32]{1,0:T(8,128)(2,1)}', space=vmem, size = 0x800, scoped, tag = 'scratch operand']
  #allocation5 [shape = 'f32[8,32]{1,0:T(8,128)}', space=vmem, size = 0x1000, scoped, tag = 'scratch operand']
  #allocation6 [shape = 'f32[8,4]{1,0:T(8,128)}', space=vmem, size = 0x1000, scoped, tag = 'scratch operand']
  #allocation7 [shape = 'f32[8,4]{1,0:T(8,128)}', space=vmem, size = 0x1000, scoped, tag = 'scratch operand']
  %s0 = inlined_call_operand.hbm [shape: f32[2,8,32], index: 0, kind: input, shape index: {}]
  %s1 = inlined_call_operand.hbm [shape: f32[2,8,32], index: 1, kind: input, shape index: {}]
  %s2 = inlined_call_operand.hbm [shape: bf16[32,64], index: 2, kind: input, shape index: {}]
  %s3 = inlined_call_operand.hbm [shape: bf16[32,96], index: 3, kind: input, shape index: {}]
  %s4 = inlined_call_operand.hbm [shape: bf16[32,32], index: 4, kind: input, shape index: {}]
  %s5 = inlined_call_operand.hbm [shape: f32[8,32], index: 5, kind: input, shape index: {}]
  %s6 = inlined_call_operand.hbm [shape: f32[2,8,8], index: 6, kind: input, shape index: {}]
  %s7 = inlined_call_operand.hbm [shape: f32[2,8,8], index: 7, kind: input, shape index: {}]
  %s8 = inlined_call_operand.hbm [shape: f32[2,8,8], index: 8, kind: input, shape index: {}]
  %s9 = inlined_call_operand.hbm [shape: f32[2,8,8], index: 9, kind: input, shape index: {}]
  %s10 = inlined_call_operand.hbm [shape: f32[2,8,32], index: 10, kind: output, shape index: {}]
  %s11 = sld [smem:[#allocation0]]
  $region121: #{tpu_custom_call.1} parent=0
    _
  %s13 = ssub.s32 1, %s11
  %s14 = scalar_select 0, %s13, %s11
  $region1: #{tpu_custom_call.1} parent=0
    #allocation8 [shape = 'u8[8192]{0}', space=vmem, size = 0x2000, scoped, tag = 'input window, operand 0']
    #allocation9 [shape = 's32[2]{0}', space=sflag, size = 0x8, scoped, tag = 'scoped memory for tpu_custom_call.1']
    #allocation10 [shape = 's32[2]{0}', space=sflag, size = 0x8, scoped, tag = 'scoped memory for tpu_custom_call.1']
    #allocation11 [shape = 'u8[8192]{0}', space=vmem, size = 0x2000, scoped, tag = 'input window, operand 1']
    #allocation12 [shape = 's32[2]{0}', space=sflag, size = 0x8, scoped, tag = 'scoped memory for tpu_custom_call.1']
    #allocation13 [shape = 'u8[8192]{0}', space=vmem, size = 0x2000, scoped, tag = 'input window, operand 2, single buffered']
    #allocation14 [shape = 'u8[8192]{0}', space=vmem, size = 0x2000, scoped, tag = 'input window, operand 3, single buffered']
    #allocation15 [shape = 's32[1]{0}', space=sflag, size = 0x4, scoped, tag = 'scoped memory for tpu_custom_call.1']
    #allocation16 [shape = 'u8[8192]{0}', space=vmem, size = 0x2000, scoped, tag = 'input window, operand 4, single buffered']
    #allocation17 [shape = 'u8[4096]{0}', space=vmem, size = 0x1000, scoped, tag = 'input window, operand 5, single buffered']
    #allocation18 [shape = 's32[1]{0}', space=sflag, size = 0x4, scoped, tag = 'scoped memory for tpu_custom_call.1']
    #allocation19 [shape = 'u8[8192]{0}', space=vmem, size = 0x2000, scoped, tag = 'input window, operand 6']
    #allocation20 [shape = 'u8[8192]{0}', space=vmem, size = 0x2000, scoped, tag = 'input window, operand 7']
    #allocation21 [shape = 'u8[8192]{0}', space=vmem, size = 0x2000, scoped, tag = 'input window, operand 8']
    #allocation22 [shape = 'u8[8192]{0}', space=vmem, size = 0x2000, scoped, tag = 'input window, operand 9']
    #allocation23 [shape = 'u8[8192]{0}', space=vmem, size = 0x2000, scoped, tag = 'output window, operand 0']
    %15 = vsyncpa [#allocation9], 0
    %s16 = scalar_lea.sflag [#allocation9], 1
    %17 = vsyncpa %s16, 0
    %18 = vsyncpa [#allocation12], 0
    %s19 = scalar_lea.sflag [#allocation12], 1
    %20 = vsyncpa %s19, 0
    %21 = vsyncpa [#allocation15], 0
    %22 = vsyncpa [#allocation18], 0
    %23 = vsyncpa [#allocation10], 0
    %s24 = scalar_lea.sflag [#allocation10], 1
    %25 = vsyncpa %s24, 0
    loop: start=0, step=1, limit=4
    $region2: #{tpu_custom_call.1} parent=1 // loop_pre_header
      _
    $region3: #{tpu_custom_call.1} parent=1 // loop_header
      %s27 = sphi 0, %s31
      %p28 = scmp.ge.s32.totalorder %s27, 4
      %s34 = sphi 0, %s53
      %s35 = sphi 0, %s49
      %s36 = sphi 0, %s45
      %s37 = sphi 0, %s34
      %s38 = sphi 0, %s35
      %s39 = sphi 0, %s36
      %s40 = sphi 0, %s37
      %s41 = sphi 0, %s38
      %s42 = sphi 0, %s39
      %s58 = sphi 0, %s60
      %s61 = sphi 0, %s58
      %s62 = sphi 0, %s61
      %s78 = sphi 0, %s62
      %s86 = sphi 0, %s88
      %s89 = sphi 0, %s86
      %s90 = sphi 0, %s89
      %s106 = sphi 0, %s90
      %s110 = sphi 0, %s110
      %s112 = sphi 0, %s110
      %s113 = sphi 0, %s112
      %s127 = sphi 0, %s113
      %s131 = sphi 0, %s131
      %s133 = sphi 0, %s131
      %s134 = sphi 0, %s133
      %s148 = sphi 0, %s134
      %s152 = sphi 0, %s152
      %s154 = sphi 0, %s152
      %s155 = sphi 0, %s154
      %s169 = sphi 0, %s155
      %s173 = sphi 0, %s173
      %s175 = sphi 0, %s173
      %s176 = sphi 0, %s175
      %s190 = sphi 0, %s176
      %s198 = sphi 0, %s200
      %s201 = sphi 0, %s198
      %s202 = sphi 0, %s201
      %s218 = sphi 0, %s202
      %s226 = sphi 0, %s228
      %s229 = sphi 0, %s226
      %s230 = sphi 0, %s229
      %s246 = sphi 0, %s230
      %s254 = sphi 0, %s256
      %s257 = sphi 0, %s254
      %s258 = sphi 0, %s257
      %s274 = sphi 0, %s258
      %s282 = sphi 0, %s284
      %s285 = sphi 0, %s282
      %s286 = sphi 0, %s285
      %s302 = sphi 0, %s286
      %s310 = sphi 0, %s312
      %s313 = sphi 0, %s310
      %s314 = sphi 0, %s313
      %s330 = sphi 0, %s314
    $region4: #{tpu_custom_call.1} parent=1 // loop_header_branch
      %30 = sbr.rel (%p28) target = $region8
    $region5: #{tpu_custom_call.1} parent=1 // loop_body
      %s32 = ssub.s32 %s27, 1
      %s33 = ssub.s32 %s27, 2
      %s43 = sadd.s32 1, %s36
      %p44 = scmp.ge.s32.totalorder %s43, 1
      %s45 = scalar_select %p44, 0, %s43
      %s46 = sadd.s32 1, %s35
      %s47 = scalar_select %p44, %s46, %s35
      %p48 = scmp.ge.s32.totalorder %s47, 1
      %s49 = scalar_select %p48, 0, %s47
      %s50 = sadd.s32 1, %s34
      %s51 = scalar_select %p48, %s50, %s34
      %p52 = scmp.ge.s32.totalorder %s51, 2
      %s53 = scalar_select %p52, 0, %s51
      %s54 = ssub.s32 %s34, %s53
      %s55 = ssub.s32 %s35, %s49
      %s56 = sor.u32 %s54, %s55
      %p57 = scmp.eq.s32.totalorder %s56, 0
      %s59 = sadd.s32 %s58, 1
      %s60 = scalar_select %p57, %s58, %s59
      %p63 = pneg %p57
      %p64 = scmp.eq.s32.totalorder %s27, 1
      %p65 = por %p63, %p64
      %p66 = scmp.ne.s32.totalorder %s58, %s61
      %p67 = scmp.eq.s32.totalorder %s27, 0
      %p68 = por %p66, %p67
      %p69 = scmp.ne.s32.totalorder %s58, %s61
      %p70 = scmp.eq.s32.totalorder %s32, 1
      %p71 = por %p69, %p70
      %p72 = scmp.ne.s32.totalorder %s61, %s62
      %p73 = scmp.eq.s32.totalorder %s32, 0
      %p74 = por %p72, %p73
      %p75 = scmp.ne.s32.totalorder %s61, %s62
      %p76 = scmp.eq.s32.totalorder %s33, 1
      %p77 = por %p75, %p76
      %p79 = scmp.ne.s32.totalorder %s62, %s78
      %p80 = scmp.eq.s32.totalorder %s33, 0
      %p81 = por %p79, %p80
      %s82 = ssub.s32 %s34, %s53
      %s83 = ssub.s32 %s36, %s45
      %s84 = sor.u32 %s82, %s83
      %p85 = scmp.eq.s32.totalorder %s84, 0
      %s87 = sadd.s32 %s86, 1
      %s88 = scalar_select %p85, %s86, %s87
      %p91 = pneg %p85
      %p92 = scmp.eq.s32.totalorder %s27, 1
      %p93 = por %p91, %p92
      %p94 = scmp.ne.s32.totalorder %s86, %s89
      %p95 = scmp.eq.s32.totalorder %s27, 0
      %p96 = por %p94, %p95
      %p97 = scmp.ne.s32.totalorder %s86, %s89
      %p98 = scmp.eq.s32.totalorder %s32, 1
      %p99 = por %p97, %p98
      %p100 = scmp.ne.s32.totalorder %s89, %s90
      %p101 = scmp.eq.s32.totalorder %s32, 0
      %p102 = por %p100, %p101
      %p103 = scmp.ne.s32.totalorder %s89, %s90
      %p104 = scmp.eq.s32.totalorder %s33, 1
      %p105 = por %p103, %p104
      %p107 = scmp.ne.s32.totalorder %s90, %s106
      %p108 = scmp.eq.s32.totalorder %s33, 0
      %p109 = por %p107, %p108
      %s111 = sadd.s32 %s110, 1
      %p114 = scmp.eq.s32.totalorder %s27, 1
      %p115 = scmp.ne.s32.totalorder %s110, %s112
      %p116 = scmp.eq.s32.totalorder %s27, 0
      %p117 = por %p115, %p116
      %p118 = scmp.ne.s32.totalorder %s110, %s112
      %p119 = scmp.eq.s32.totalorder %s32, 1
      %p120 = por %p118, %p119
      %p121 = scmp.ne.s32.totalorder %s112, %s113
      %p122 = scmp.eq.s32.totalorder %s32, 0
      %p123 = por %p121, %p122
      %p124 = scmp.ne.s32.totalorder %s112, %s113
      %p125 = scmp.eq.s32.totalorder %s33, 1
      %p126 = por %p124, %p125
      %p128 = scmp.ne.s32.totalorder %s113, %s127
      %p129 = scmp.eq.s32.totalorder %s33, 0
      %p130 = por %p128, %p129
      %s132 = sadd.s32 %s131, 1
      %p135 = scmp.eq.s32.totalorder %s27, 1
      %p136 = scmp.ne.s32.totalorder %s131, %s133
      %p137 = scmp.eq.s32.totalorder %s27, 0
      %p138 = por %p136, %p137
      %p139 = scmp.ne.s32.totalorder %s131, %s133
      %p140 = scmp.eq.s32.totalorder %s32, 1
      %p141 = por %p139, %p140
      %p142 = scmp.ne.s32.totalorder %s133, %s134
      %p143 = scmp.eq.s32.totalorder %s32, 0
      %p144 = por %p142, %p143
      %p145 = scmp.ne.s32.totalorder %s133, %s134
      %p146 = scmp.eq.s32.totalorder %s33, 1
      %p147 = por %p145, %p146
      %p149 = scmp.ne.s32.totalorder %s134, %s148
      %p150 = scmp.eq.s32.totalorder %s33, 0
      %p151 = por %p149, %p150
      %s153 = sadd.s32 %s152, 1
      %p156 = scmp.eq.s32.totalorder %s27, 1
      %p157 = scmp.ne.s32.totalorder %s152, %s154
      %p158 = scmp.eq.s32.totalorder %s27, 0
      %p159 = por %p157, %p158
      %p160 = scmp.ne.s32.totalorder %s152, %s154
      %p161 = scmp.eq.s32.totalorder %s32, 1
      %p162 = por %p160, %p161
      %p163 = scmp.ne.s32.totalorder %s154, %s155
      %p164 = scmp.eq.s32.totalorder %s32, 0
      %p165 = por %p163, %p164
      %p166 = scmp.ne.s32.totalorder %s154, %s155
      %p167 = scmp.eq.s32.totalorder %s33, 1
      %p168 = por %p166, %p167
      %p170 = scmp.ne.s32.totalorder %s155, %s169
      %p171 = scmp.eq.s32.totalorder %s33, 0
      %p172 = por %p170, %p171
      %s174 = sadd.s32 %s173, 1
      %p177 = scmp.eq.s32.totalorder %s27, 1
      %p178 = scmp.ne.s32.totalorder %s173, %s175
      %p179 = scmp.eq.s32.totalorder %s27, 0
      %p180 = por %p178, %p179
      %p181 = scmp.ne.s32.totalorder %s173, %s175
      %p182 = scmp.eq.s32.totalorder %s32, 1
      %p183 = por %p181, %p182
      %p184 = scmp.ne.s32.totalorder %s175, %s176
      %p185 = scmp.eq.s32.totalorder %s32, 0
      %p186 = por %p184, %p185
      %p187 = scmp.ne.s32.totalorder %s175, %s176
      %p188 = scmp.eq.s32.totalorder %s33, 1
      %p189 = por %p187, %p188
      %p191 = scmp.ne.s32.totalorder %s176, %s190
      %p192 = scmp.eq.s32.totalorder %s33, 0
      %p193 = por %p191, %p192
      %s194 = ssub.s32 %s34, %s53
      %s195 = ssub.s32 %s35, %s49
      %s196 = sor.u32 %s194, %s195
      %p197 = scmp.eq.s32.totalorder %s196, 0
      %s199 = sadd.s32 %s198, 1
      %s200 = scalar_select %p197, %s198, %s199
      %p203 = pneg %p197
      %p204 = scmp.eq.s32.totalorder %s27, 1
      %p205 = por %p203, %p204
      %p206 = scmp.ne.s32.totalorder %s198, %s201
      %p207 = scmp.eq.s32.totalorder %s27, 0
      %p208 = por %p206, %p207
      %p209 = scmp.ne.s32.totalorder %s198, %s201
      %p210 = scmp.eq.s32.totalorder %s32, 1
      %p211 = por %p209, %p210
      %p212 = scmp.ne.s32.totalorder %s201, %s202
      %p213 = scmp.eq.s32.totalorder %s32, 0
      %p214 = por %p212, %p213
      %p215 = scmp.ne.s32.totalorder %s201, %s202
      %p216 = scmp.eq.s32.totalorder %s33, 1
      %p217 = por %p215, %p216
      %p219 = scmp.ne.s32.totalorder %s202, %s218
      %p220 = scmp.eq.s32.totalorder %s33, 0
      %p221 = por %p219, %p220
      %s222 = ssub.s32 %s34, %s53
      %s223 = ssub.s32 %s35, %s49
      %s224 = sor.u32 %s222, %s223
      %p225 = scmp.eq.s32.totalorder %s224, 0
      %s227 = sadd.s32 %s226, 1
      %s228 = scalar_select %p225, %s226, %s227
      %p231 = pneg %p225
      %p232 = scmp.eq.s32.totalorder %s27, 1
      %p233 = por %p231, %p232
      %p234 = scmp.ne.s32.totalorder %s226, %s229
      %p235 = scmp.eq.s32.totalorder %s27, 0
      %p236 = por %p234, %p235
      %p237 = scmp.ne.s32.totalorder %s226, %s229
      %p238 = scmp.eq.s32.totalorder %s32, 1
      %p239 = por %p237, %p238
      %p240 = scmp.ne.s32.totalorder %s229, %s230
      %p241 = scmp.eq.s32.totalorder %s32, 0
      %p242 = por %p240, %p241
      %p243 = scmp.ne.s32.totalorder %s229, %s230
      %p244 = scmp.eq.s32.totalorder %s33, 1
      %p245 = por %p243, %p244
      %p247 = scmp.ne.s32.totalorder %s230, %s246
      %p248 = scmp.eq.s32.totalorder %s33, 0
      %p249 = por %p247, %p248
      %s250 = ssub.s32 %s34, %s53
      %s251 = ssub.s32 %s36, %s45
      %s252 = sor.u32 %s250, %s251
      %p253 = scmp.eq.s32.totalorder %s252, 0
      %s255 = sadd.s32 %s254, 1
      %s256 = scalar_select %p253, %s254, %s255
      %p259 = pneg %p253
      %p260 = scmp.eq.s32.totalorder %s27, 1
      %p261 = por %p259, %p260
      %p262 = scmp.ne.s32.totalorder %s254, %s257
      %p263 = scmp.eq.s32.totalorder %s27, 0
      %p264 = por %p262, %p263
      %p265 = scmp.ne.s32.totalorder %s254, %s257
      %p266 = scmp.eq.s32.totalorder %s32, 1
      %p267 = por %p265, %p266
      %p268 = scmp.ne.s32.totalorder %s257, %s258
      %p269 = scmp.eq.s32.totalorder %s32, 0
      %p270 = por %p268, %p269
      %p271 = scmp.ne.s32.totalorder %s257, %s258
      %p272 = scmp.eq.s32.totalorder %s33, 1
      %p273 = por %p271, %p272
      %p275 = scmp.ne.s32.totalorder %s258, %s274
      %p276 = scmp.eq.s32.totalorder %s33, 0
      %p277 = por %p275, %p276
      %s278 = ssub.s32 %s34, %s53
      %s279 = ssub.s32 %s36, %s45
      %s280 = sor.u32 %s278, %s279
      %p281 = scmp.eq.s32.totalorder %s280, 0
      %s283 = sadd.s32 %s282, 1
      %s284 = scalar_select %p281, %s282, %s283
      %p287 = pneg %p281
      %p288 = scmp.eq.s32.totalorder %s27, 1
      %p289 = por %p287, %p288
      %p290 = scmp.ne.s32.totalorder %s282, %s285
      %p291 = scmp.eq.s32.totalorder %s27, 0
      %p292 = por %p290, %p291
      %p293 = scmp.ne.s32.totalorder %s282, %s285
      %p294 = scmp.eq.s32.totalorder %s32, 1
      %p295 = por %p293, %p294
      %p296 = scmp.ne.s32.totalorder %s285, %s286
      %p297 = scmp.eq.s32.totalorder %s32, 0
      %p298 = por %p296, %p297
      %p299 = scmp.ne.s32.totalorder %s285, %s286
      %p300 = scmp.eq.s32.totalorder %s33, 1
      %p301 = por %p299, %p300
      %p303 = scmp.ne.s32.totalorder %s286, %s302
      %p304 = scmp.eq.s32.totalorder %s33, 0
      %p305 = por %p303, %p304
      %s306 = ssub.s32 %s34, %s53
      %s307 = ssub.s32 %s35, %s49
      %s308 = sor.u32 %s306, %s307
      %p309 = scmp.eq.s32.totalorder %s308, 0
      %s311 = sadd.s32 %s310, 1
      %s312 = scalar_select %p309, %s310, %s311
      %p315 = pneg %p309
      %p316 = scmp.eq.s32.totalorder %s27, 1
      %p317 = por %p315, %p316
      %p318 = scmp.ne.s32.totalorder %s310, %s313
      %p319 = scmp.eq.s32.totalorder %s27, 0
      %p320 = por %p318, %p319
      %p321 = scmp.ne.s32.totalorder %s310, %s313
      %p322 = scmp.eq.s32.totalorder %s32, 1
      %p323 = por %p321, %p322
      %p324 = scmp.ne.s32.totalorder %s313, %s314
      %p325 = scmp.eq.s32.totalorder %s32, 0
      %p326 = por %p324, %p325
      %p327 = scmp.ne.s32.totalorder %s313, %s314
      %p328 = scmp.eq.s32.totalorder %s33, 1
      %p329 = por %p327, %p328
      %p331 = scmp.ne.s32.totalorder %s314, %s330
      %p332 = scmp.eq.s32.totalorder %s33, 0
      %p333 = por %p331, %p332
      %p334 = scmp.le.s32.totalorder 1, %s27
      %p335 = scmp.lt.s32.totalorder %s27, 3
      %p336 = pnand %p334, %p335
      %p337 = pneg %p336
      // Predicated region
      $region9: #{tpu_custom_call.1} parent=5 // pred_check
        _
      $region10: #{tpu_custom_call.1} parent=5 // pred_check_branch
        %339 = sbr.rel (%p336) target = $region12
      $region11: #{tpu_custom_call.1} parent=5 // pred_region
        %s340 = ssub.s32 %s27, 1
        // Predicated region
        $region13: #{tpu_custom_call.1} parent=11 // pred_check
          %p341 = pneg %p123
        $region14: #{tpu_custom_call.1} parent=11 // pred_check_branch
          %343 = sbr.rel (%p341) target = $region16
        $region15: #{tpu_custom_call.1} parent=11 // pred_region
          %345 = vsyncadd [#allocation12], 0
          %s346 = sshll.u32 %s2, 4
          %s347 = int_to_ptr.hbm [resolvable:$true] %s346
          %s348 = sshll.u32 [#allocation13], 4
          %s349 = int_to_ptr.vmem [resolvable:$true] %s348
          %354 = dma.hbm_to_vmem [thread:$0]  %s347, 256, %s349, [#allocation12], 64, 64, 4
        $region16: #{tpu_custom_call.1} parent=11 // pred_fallthru
          _
        // Predicated region
        $region17: #{tpu_custom_call.1} parent=11 // pred_check
          %p355 = pneg %p144
        $region18: #{tpu_custom_call.1} parent=11 // pred_check_branch
          %357 = sbr.rel (%p355) target = $region20
        $region19: #{tpu_custom_call.1} parent=11 // pred_region
          %359 = vsyncadd [#allocation15], 0
          %s360 = sshll.u32 %s3, 4
          %s361 = int_to_ptr.hbm [resolvable:$true] %s360
          %s362 = sshll.u32 [#allocation14], 4
          %s363 = int_to_ptr.vmem [resolvable:$true] %s362
          %368 = dma.hbm_to_vmem [thread:$0]  %s361, 256, %s363, [#allocation15], 64, 64, 4
        $region20: #{tpu_custom_call.1} parent=11 // pred_fallthru
          _
        // Predicated region
        $region21: #{tpu_custom_call.1} parent=11 // pred_check
          %p369 = pneg %p165
        $region22: #{tpu_custom_call.1} parent=11 // pred_check_branch
          %371 = sbr.rel (%p369) target = $region24
        $region23: #{tpu_custom_call.1} parent=11 // pred_region
          %373 = vsyncadd [#allocation15], 0
          %s374 = sshll.u32 %s4, 4
          %s375 = int_to_ptr.hbm [resolvable:$true] %s374
          %s376 = sshll.u32 [#allocation16], 4
          %s377 = int_to_ptr.vmem [resolvable:$true] %s376
          %382 = dma.hbm_to_vmem [thread:$0]  %s375, 256, %s377, [#allocation15], 64, 64, 4
        $region24: #{tpu_custom_call.1} parent=11 // pred_fallthru
          _
        // Predicated region
        $region25: #{tpu_custom_call.1} parent=11 // pred_check
          %p383 = pneg %p186
        $region26: #{tpu_custom_call.1} parent=11 // pred_check_branch
          %385 = sbr.rel (%p383) target = $region28
        $region27: #{tpu_custom_call.1} parent=11 // pred_region
          %387 = vsyncadd [#allocation18], 0
          %s389 = sshll.u32 %s5, 4
          %s390 = int_to_ptr.hbm [resolvable:$true] %s389
          %s391 = sshll.u32 [#allocation17], 4
          %s392 = int_to_ptr.vmem [resolvable:$true] %s391
          %394 = dma.hbm_to_vmem [thread:$0]  %s390, 128, %s392, [#allocation18]
        $region28: #{tpu_custom_call.1} parent=11 // pred_fallthru
          _
      $region12: #{tpu_custom_call.1} parent=5 // pred_fallthru
        _
      %p395 = scmp.lt.s32.totalorder %s27, 2
      // Predicated region
      $region29: #{tpu_custom_call.1} parent=5 // pred_check
        %p396 = pneg %p395
      $region30: #{tpu_custom_call.1} parent=5 // pred_check_branch
        %398 = sbr.rel (%p396) target = $region32
      $region31: #{tpu_custom_call.1} parent=5 // pred_region
        // Predicated region
        $region33: #{tpu_custom_call.1} parent=31 // pred_check
          %p399 = pneg %p68
        $region34: #{tpu_custom_call.1} parent=31 // pred_check_branch
          %401 = sbr.rel (%p399) target = $region36
        $region35: #{tpu_custom_call.1} parent=31 // pred_region
          %s402 = sand.u32 %s27, 1
          %s403 = scalar_lea.sflag [#allocation9], %s402
          %s404 = sand.u32 %s58, 1
          %s405 = smul.addr %s404, 8
          %s406 = scalar_lea.vmem [#allocation8], %s405
          %408 = vsyncadd %s403, 0
          %s409 = sadd.s32 %s35, %s34
          %s410 = smul.addr %s409, 8
          %s411 = scalar_lea.hbm %s0, %s410
          %s413 = sshll.u32 %s411, 4
          %s414 = int_to_ptr.hbm [resolvable:$true] %s413
          %s415 = sshll.u32 %s406, 4
          %s416 = int_to_ptr.vmem [resolvable:$true] %s415
          %418 = dma.hbm_to_vmem [thread:$0]  %s414, 128, %s416, %s403
        $region36: #{tpu_custom_call.1} parent=31 // pred_fallthru
          _
        // Predicated region
        $region37: #{tpu_custom_call.1} parent=31 // pred_check
          %p419 = pneg %p96
        $region38: #{tpu_custom_call.1} parent=31 // pred_check_branch
          %421 = sbr.rel (%p419) target = $region40
        $region39: #{tpu_custom_call.1} parent=31 // pred_region
          %s422 = sand.u32 %s27, 1
          %s423 = scalar_lea.sflag [#allocation12], %s422
          %s424 = sand.u32 %s86, 1
          %s425 = smul.addr %s424, 8
          %s426 = scalar_lea.vmem [#allocation11], %s425
          %428 = vsyncadd %s423, 0
          %s429 = sadd.s32 %s36, %s34
          %s430 = smul.addr %s429, 8
          %s431 = scalar_lea.hbm %s1, %s430
          %s433 = sshll.u32 %s431, 4
          %s434 = int_to_ptr.hbm [resolvable:$true] %s433
          %s435 = sshll.u32 %s426, 4
          %s436 = int_to_ptr.vmem [resolvable:$true] %s435
          %438 = dma.hbm_to_vmem [thread:$0]  %s434, 128, %s436, %s423
        $region40: #{tpu_custom_call.1} parent=31 // pred_fallthru
          _
        // Predicated region
        $region41: #{tpu_custom_call.1} parent=31 // pred_check
          %p439 = pneg %p208
        $region42: #{tpu_custom_call.1} parent=31 // pred_check_branch
          %441 = sbr.rel (%p439) target = $region44
        $region43: #{tpu_custom_call.1} parent=31 // pred_region
          %s442 = sand.u32 %s27, 1
          %s443 = scalar_lea.sflag [#allocation9], %s442
          %s444 = sand.u32 %s198, 1
          %s445 = smul.addr %s444, 8
          %s446 = scalar_lea.vmem [#allocation19], %s445
          %448 = vsyncadd %s443, 0
          %s449 = sadd.s32 %s35, %s34
          %s450 = smul.addr %s449, 8
          %s451 = scalar_lea.hbm %s6, %s450
          %s453 = sshll.u32 %s451, 4
          %s454 = int_to_ptr.hbm [resolvable:$true] %s453
          %s455 = sshll.u32 %s446, 4
          %s456 = int_to_ptr.vmem [resolvable:$true] %s455
          %458 = dma.hbm_to_vmem [thread:$0]  %s454, 128, %s456, %s443
        $region44: #{tpu_custom_call.1} parent=31 // pred_fallthru
          _
        // Predicated region
        $region45: #{tpu_custom_call.1} parent=31 // pred_check
          %p459 = pneg %p236
        $region46: #{tpu_custom_call.1} parent=31 // pred_check_branch
          %461 = sbr.rel (%p459) target = $region48
        $region47: #{tpu_custom_call.1} parent=31 // pred_region
          %s462 = sand.u32 %s27, 1
          %s463 = scalar_lea.sflag [#allocation12], %s462
          %s464 = sand.u32 %s226, 1
          %s465 = smul.addr %s464, 8
          %s466 = scalar_lea.vmem [#allocation20], %s465
          %468 = vsyncadd %s463, 0
          %s469 = sadd.s32 %s35, %s34
          %s470 = smul.addr %s469, 8
          %s471 = scalar_lea.hbm %s7, %s470
          %s473 = sshll.u32 %s471, 4
          %s474 = int_to_ptr.hbm [resolvable:$true] %s473
          %s475 = sshll.u32 %s466, 4
          %s476 = int_to_ptr.vmem [resolvable:$true] %s475
          %478 = dma.hbm_to_vmem [thread:$0]  %s474, 128, %s476, %s463
        $region48: #{tpu_custom_call.1} parent=31 // pred_fallthru
          _
        // Predicated region
        $region49: #{tpu_custom_call.1} parent=31 // pred_check
          %p479 = pneg %p264
        $region50: #{tpu_custom_call.1} parent=31 // pred_check_branch
          %481 = sbr.rel (%p479) target = $region52
        $region51: #{tpu_custom_call.1} parent=31 // pred_region
          %s482 = sand.u32 %s27, 1
          %s483 = scalar_lea.sflag [#allocation9], %s482
          %s484 = sand.u32 %s254, 1
          %s485 = smul.addr %s484, 8
          %s486 = scalar_lea.vmem [#allocation21], %s485
          %488 = vsyncadd %s483, 0
          %s489 = sadd.s32 %s36, %s34
          %s490 = smul.addr %s489, 8
          %s491 = scalar_lea.hbm %s8, %s490
          %s493 = sshll.u32 %s491, 4
          %s494 = int_to_ptr.hbm [resolvable:$true] %s493
          %s495 = sshll.u32 %s486, 4
          %s496 = int_to_ptr.vmem [resolvable:$true] %s495
          %498 = dma.hbm_to_vmem [thread:$0]  %s494, 128, %s496, %s483
        $region52: #{tpu_custom_call.1} parent=31 // pred_fallthru
          _
        // Predicated region
        $region53: #{tpu_custom_call.1} parent=31 // pred_check
          %p499 = pneg %p292
        $region54: #{tpu_custom_call.1} parent=31 // pred_check_branch
          %501 = sbr.rel (%p499) target = $region56
        $region55: #{tpu_custom_call.1} parent=31 // pred_region
          %s502 = sand.u32 %s27, 1
          %s503 = scalar_lea.sflag [#allocation12], %s502
          %s504 = sand.u32 %s282, 1
          %s505 = smul.addr %s504, 8
          %s506 = scalar_lea.vmem [#allocation22], %s505
          %508 = vsyncadd %s503, 0
          %s509 = sadd.s32 %s36, %s34
          %s510 = smul.addr %s509, 8
          %s511 = scalar_lea.hbm %s9, %s510
          %s513 = sshll.u32 %s511, 4
          %s514 = int_to_ptr.hbm [resolvable:$true] %s513
          %s515 = sshll.u32 %s506, 4
          %s516 = int_to_ptr.vmem [resolvable:$true] %s515
          %518 = dma.hbm_to_vmem [thread:$0]  %s514, 128, %s516, %s503
        $region56: #{tpu_custom_call.1} parent=31 // pred_fallthru
          _
      $region32: #{tpu_custom_call.1} parent=5 // pred_fallthru
        _
      %p519 = scmp.le.s32.totalorder 1, %s27
      %p520 = scmp.lt.s32.totalorder %s27, 3
      %p521 = pnand %p519, %p520
      %p522 = pneg %p521
      // Predicated region
      $region57: #{tpu_custom_call.1} parent=5 // pred_check
        _
      $region58: #{tpu_custom_call.1} parent=5 // pred_check_branch
        %524 = sbr.rel (%p521) target = $region60
      $region59: #{tpu_custom_call.1} parent=5 // pred_region
        %s525 = ssub.s32 %s27, 1
        %s526 = sand.u32 %s32, 1
        %s527 = scalar_lea.sflag [#allocation9], %s526
        %s528 = sand.u32 %s61, 1
        %s529 = smul.addr %s528, 8
        %s530 = scalar_lea.vmem [#allocation8], %s529
        // Predicated region
        $region61: #{tpu_custom_call.1} parent=59 // pred_check
          %p531 = pneg %p74
        $region62: #{tpu_custom_call.1} parent=59 // pred_check_branch
          %533 = sbr.rel (%p531) target = $region64
        $region63: #{tpu_custom_call.1} parent=59 // pred_region
          %535 = dma.done %s527, 128
        $region64: #{tpu_custom_call.1} parent=59 // pred_fallthru
          _
        %s536 = sand.u32 %s32, 1
        %s537 = scalar_lea.sflag [#allocation12], %s536
        %s538 = sand.u32 %s89, 1
        %s539 = smul.addr %s538, 8
        %s540 = scalar_lea.vmem [#allocation11], %s539
        // Predicated region
        $region65: #{tpu_custom_call.1} parent=59 // pred_check
          %p541 = pneg %p102
        $region66: #{tpu_custom_call.1} parent=59 // pred_check_branch
          %543 = sbr.rel (%p541) target = $region68
        $region67: #{tpu_custom_call.1} parent=59 // pred_region
          %545 = dma.done %s537, 128
        $region68: #{tpu_custom_call.1} parent=59 // pred_fallthru
          _
        // Predicated region
        $region69: #{tpu_custom_call.1} parent=59 // pred_check
          %p546 = pneg %p123
        $region70: #{tpu_custom_call.1} parent=59 // pred_check_branch
          %548 = sbr.rel (%p546) target = $region72
        $region71: #{tpu_custom_call.1} parent=59 // pred_region
          %550 = dma.done [#allocation12], 256
        $region72: #{tpu_custom_call.1} parent=59 // pred_fallthru
          _
        // Predicated region
        $region73: #{tpu_custom_call.1} parent=59 // pred_check
          %p551 = pneg %p144
        $region74: #{tpu_custom_call.1} parent=59 // pred_check_branch
          %553 = sbr.rel (%p551) target = $region76
        $region75: #{tpu_custom_call.1} parent=59 // pred_region
          %555 = dma.done [#allocation15], 256
        $region76: #{tpu_custom_call.1} parent=59 // pred_fallthru
          _
        // Predicated region
        $region77: #{tpu_custom_call.1} parent=59 // pred_check
          %p556 = pneg %p165
        $region78: #{tpu_custom_call.1} parent=59 // pred_check_branch
          %558 = sbr.rel (%p556) target = $region80
        $region79: #{tpu_custom_call.1} parent=59 // pred_region
          %560 = dma.done [#allocation15], 256
        $region80: #{tpu_custom_call.1} parent=59 // pred_fallthru
          _
        // Predicated region
        $region81: #{tpu_custom_call.1} parent=59 // pred_check
          %p561 = pneg %p186
        $region82: #{tpu_custom_call.1} parent=59 // pred_check_branch
          %563 = sbr.rel (%p561) target = $region84
        $region83: #{tpu_custom_call.1} parent=59 // pred_region
          %565 = dma.done [#allocation18], 128
        $region84: #{tpu_custom_call.1} parent=59 // pred_fallthru
          _
        %s566 = sand.u32 %s32, 1
        %s567 = scalar_lea.sflag [#allocation9], %s566
        %s568 = sand.u32 %s201, 1
        %s569 = smul.addr %s568, 8
        %s570 = scalar_lea.vmem [#allocation19], %s569
        // Predicated region
        $region85: #{tpu_custom_call.1} parent=59 // pred_check
          %p571 = pneg %p214
        $region86: #{tpu_custom_call.1} parent=59 // pred_check_branch
          %573 = sbr.rel (%p571) target = $region88
        $region87: #{tpu_custom_call.1} parent=59 // pred_region
          %575 = dma.done %s567, 128
        $region88: #{tpu_custom_call.1} parent=59 // pred_fallthru
          _
        %s576 = sand.u32 %s32, 1
        %s577 = scalar_lea.sflag [#allocation12], %s576
        %s578 = sand.u32 %s229, 1
        %s579 = smul.addr %s578, 8
        %s580 = scalar_lea.vmem [#allocation20], %s579
        // Predicated region
        $region89: #{tpu_custom_call.1} parent=59 // pred_check
          %p581 = pneg %p242
        $region90: #{tpu_custom_call.1} parent=59 // pred_check_branch
          %583 = sbr.rel (%p581) target = $region92
        $region91: #{tpu_custom_call.1} parent=59 // pred_region
          %585 = dma.done %s577, 128
        $region92: #{tpu_custom_call.1} parent=59 // pred_fallthru
          _
        %s586 = sand.u32 %s32, 1
        %s587 = scalar_lea.sflag [#allocation9], %s586
        %s588 = sand.u32 %s257, 1
        %s589 = smul.addr %s588, 8
        %s590 = scalar_lea.vmem [#allocation21], %s589
        // Predicated region
        $region93: #{tpu_custom_call.1} parent=59 // pred_check
          %p591 = pneg %p270
        $region94: #{tpu_custom_call.1} parent=59 // pred_check_branch
          %593 = sbr.rel (%p591) target = $region96
        $region95: #{tpu_custom_call.1} parent=59 // pred_region
          %595 = dma.done %s587, 128
        $region96: #{tpu_custom_call.1} parent=59 // pred_fallthru
          _
        %s596 = sand.u32 %s32, 1
        %s597 = scalar_lea.sflag [#allocation12], %s596
        %s598 = sand.u32 %s285, 1
        %s599 = smul.addr %s598, 8
        %s600 = scalar_lea.vmem [#allocation22], %s599
        // Predicated region
        $region97: #{tpu_custom_call.1} parent=59 // pred_check
          %p601 = pneg %p298
        $region98: #{tpu_custom_call.1} parent=59 // pred_check_branch
          %603 = sbr.rel (%p601) target = $region100
        $region99: #{tpu_custom_call.1} parent=59 // pred_region
          %605 = dma.done %s597, 128
        $region100: #{tpu_custom_call.1} parent=59 // pred_fallthru
          _
        %s606 = sand.u32 %s32, 1
        %s607 = scalar_lea.sflag [#allocation9], %s606
        %s608 = sand.u32 %s61, 1
        %s609 = smul.addr %s608, 8
        %s610 = scalar_lea.vmem [#allocation8], %s609
        %p611 = pneg %p74
        %p612 = pneg %p71
        %s613 = sand.u32 %s32, 1
        %s614 = scalar_lea.sflag [#allocation12], %s613
        %s615 = sand.u32 %s89, 1
        %s616 = smul.addr %s615, 8
        %s617 = scalar_lea.vmem [#allocation11], %s616
        %p618 = pneg %p102
        %p619 = pneg %p99
        %p620 = pneg %p123
        %p621 = pneg %p120
        %p622 = pneg %p144
        %p623 = pneg %p141
        %p624 = pneg %p165
        %p625 = pneg %p162
        %p626 = pneg %p186
        %p627 = pneg %p183
        %s628 = sand.u32 %s32, 1
        %s629 = scalar_lea.sflag [#allocation9], %s628
        %s630 = sand.u32 %s201, 1
        %s631 = smul.addr %s630, 8
        %s632 = scalar_lea.vmem [#allocation19], %s631
        %p633 = pneg %p214
        %p634 = pneg %p211
        %s635 = sand.u32 %s32, 1
        %s636 = scalar_lea.sflag [#allocation12], %s635
        %s637 = sand.u32 %s229, 1
        %s638 = smul.addr %s637, 8
        %s639 = scalar_lea.vmem [#allocation20], %s638
        %p640 = pneg %p242
        %p641 = pneg %p239
        %s642 = sand.u32 %s32, 1
        %s643 = scalar_lea.sflag [#allocation9], %s642
        %s644 = sand.u32 %s257, 1
        %s645 = smul.addr %s644, 8
        %s646 = scalar_lea.vmem [#allocation21], %s645
        %p647 = pneg %p270
        %p648 = pneg %p267
        %s649 = sand.u32 %s32, 1
        %s650 = scalar_lea.sflag [#allocation12], %s649
        %s651 = sand.u32 %s285, 1
        %s652 = smul.addr %s651, 8
        %s653 = scalar_lea.vmem [#allocation22], %s652
        %p654 = pneg %p298
        %p655 = pneg %p295
        %p656 = pneg %p326
        %p657 = pneg %p323
        %s658 = sand.u32 %s313, 1
        %s659 = scalar_lea.sflag [#allocation10], %s658
        %s660 = sand.u32 %s313, 1
        %s661 = smul.addr %s660, 8
        %s662 = scalar_lea.vmem [#allocation23], %s661
        %v664 = vld [vmem:[#allocation17] sm:$0x1]
        %p665 = scmp.eq.s32.totalorder %s39, 0
        // Predicated region
        $region101: #{tpu_custom_call.1} parent=59 // pred_check
          %p666 = pneg %p665
        $region102: #{tpu_custom_call.1} parent=59 // pred_check_branch
          %668 = sbr.rel (%p666) target = $region104
        $region103: #{tpu_custom_call.1} parent=59 // pred_region
          %v669 = vld [vmem:[%s530] sm:$0xff]
          %v670 = vmul.f32 %v669, %v669
          %vm671 = vcmask 261120
          %v672 = vsel %vm671, %v670, 0.0
          %673 = vadd.xlane.f32.xlu0 %v672
          %v674 = vpop.xlane.xlu0 %673
          %v675 = vrcp.pop 32.0
          %v676 = vmul.f32 32.0, %v675
          %v677 = vsub.f32 1.0, %v676
          %v678 = vmul.f32 %v675, %v677
          %v679 = vadd.f32 %v675, %v678
          %vm680 = vweird.f32 %v675
          %v681 = vsel %vm680, %v675, %v679
          %v682 = vmul.f32 %v674, %v681
          %v683 = vadd.f32 %v682, 1e-06
          %v684 = vrsqrt.pop %v683
          %v685 = vmul.f32 %v684, %v683
          %v686 = vmul.f32 %v685, %v684
          %v687 = vmul.f32 0.5, %v686
          %v688 = vsub.f32 1.5, %v687
          %v689 = vmul.f32 %v684, %v688
          %vm690 = vweird.f32 %v683
          %vm691 = vweird.f32 %v684
          %vm692 = vmor %vm690, %vm691
          %v693 = vsel %vm692, %v684, %v689
          %v694 = vmul.f32 %v669, %v693
          %v695 = vperm.slane %v664, 0
          %v696 = vmul.f32 %v694, %v695
          %v697 = vpack.c.bf16 %v696, %v696
          %v698 = vld [vmem:[#allocation13] sm:$0xf]
          %v699 = vld [vmem:[#allocation13 + $0x4] sm:$0xf]
          %v700 = vld [vmem:[#allocation13 + $0x8] sm:$0xf]
          %v701 = vld [vmem:[#allocation13 + $0xc] sm:$0xf]
          %v706 = vunpack.c.l.b16 %v698
          %v707 = vunpack.c.l.b16 %v699
          %v708 = vunpack.c.l.b16 %v700
          %v709 = vunpack.c.l.b16 %v701
          %v710 = vpack.c.b16 %v707, %v706
          %v711 = vpack.c.b16 %v709, %v708
          %v715 = vsel %vm671, %v697, 0
          %717 = vmatpush.bf16.msra.mxu0 0
          %718 = vmatpush.bf16.msra.mxu0 0
          %719 = vmatpush.bf16.msra.mxu0 0
          %720 = vmatpush.bf16.msra.mxu0 0
          %721 = vmatpush.bf16.msra.mxu0 0
          %722 = vmatpush.bf16.msra.mxu0 0
          %723 = vmatpush.bf16.msra.mxu0 %v711
          %724 = vmatpush.bf16.msra.mxu0 %v710
          %725 = vmatmul.bf16.gmra.mxu0 %v715
          %v726 = vpop.f32.mrf.mxu0
          %v727 = vadd.f32 0.0, %v726
          %v728 = vpop.f32.mrf.mxu0
          %729 = vdwg.mxu0
          %v730 = vld [vmem:[#allocation17 + $0x2] sm:$0x1]
          %v731 = vperm.slane %v730, 0
          %v732 = vadd.f32 %v727, %v731
          %v733 = vld [vmem:[#allocation17 + $0x3] sm:$0x1]
          %v734 = vperm.slane %v733, 0
          %736 = vrot.lane.b32.xlu0 %v734, 32
          %v737 = vpop.permute.xlu0 %736
          %v739 = vadd.f32 %v727, %v737
          %v740 = vld [vmem:[%s570] sm:$0xff]
          %742 = vrot.lane.b32.xlu0 %v740, 8
          %v743 = vpop.permute.xlu0 %742
          %745 = vrot.lane.b32.xlu0 %v740, 16
          %v746 = vpop.permute.xlu0 %745
          %748 = vrot.lane.b32.xlu0 %v740, 24
          %v749 = vpop.permute.xlu0 %748
          %vm751 = vcmask 64512
          %v752 = vsel %vm751, %v740, %v743
          %vm753 = vcmask 130048
          %v754 = vsel %vm753, %v752, %v746
          %vm755 = vcmask 195584
          %v756 = vsel %vm755, %v754, %v749
          %v757 = vmul.f32 %v732, %v756
          %v758 = vld [vmem:[%s580] sm:$0xff]
          %760 = vrot.lane.b32.xlu0 %v758, 8
          %v761 = vpop.permute.xlu0 %760
          %763 = vrot.lane.b32.xlu0 %v758, 16
          %v764 = vpop.permute.xlu0 %763
          %766 = vrot.lane.b32.xlu0 %v758, 24
          %v767 = vpop.permute.xlu0 %766
          %v769 = vsel %vm751, %v758, %v761
          %v770 = vsel %vm753, %v769, %v764
          %v771 = vsel %vm755, %v770, %v767
          %773 = vrot.lane.b32.xlu0 %v771, 32
          %v774 = vpop.permute.xlu0 %773
          %v776 = vmul.f32 %v739, %v774
          %778 = vrot.lane.b32.xlu0 %v776, 96
          %v779 = vpop.permute.xlu0 %778
          %v781 = vadd.f32 %v757, %v779
          %v782 = vmul.f32 %v781, 0.35355338
          %v783 = vpack.c.bf16 %v782, %v782
          %vm784 = vcmask 257024
          %785 = vst.msk [vmem:[#allocation2] sm:$0xf] %vm784, %v783
          %vm786 = vcmask 31744
          %787 = vst.msk [vmem:[#allocation6] sm:$0xff] %vm786, -inf
          %788 = vst.msk [vmem:[#allocation7] sm:$0xff] %vm786, 0.0
          %789 = vst.msk [vmem:[#allocation5] sm:$0xff] %vm671, 0.0
        $region104: #{tpu_custom_call.1} parent=59 // pred_fallthru
          _
        %v790 = vld [vmem:[%s540] sm:$0xff]
        %v791 = vmul.f32 %v790, %v790
        %vm792 = vcmask 261120
        %v793 = vsel %vm792, %v791, 0.0
        %794 = vadd.xlane.f32.xlu0 %v793
        %v795 = vpop.xlane.xlu0 %794
        %v796 = vrcp.pop 32.0
        %v797 = vmul.f32 32.0, %v796
        %v798 = vsub.f32 1.0, %v797
        %v799 = vmul.f32 %v796, %v798
        %v800 = vadd.f32 %v796, %v799
        %vm801 = vweird.f32 %v796
        %v802 = vsel %vm801, %v796, %v800
        %v803 = vmul.f32 %v795, %v802
        %v804 = vadd.f32 %v803, 1e-06
        %v805 = vrsqrt.pop %v804
        %v806 = vmul.f32 %v805, %v804
        %v807 = vmul.f32 %v806, %v805
        %v808 = vmul.f32 0.5, %v807
        %v809 = vsub.f32 1.5, %v808
        %v810 = vmul.f32 %v805, %v809
        %vm811 = vweird.f32 %v804
        %vm812 = vweird.f32 %v805
        %vm813 = vmor %vm811, %vm812
        %v814 = vsel %vm813, %v805, %v810
        %v815 = vmul.f32 %v790, %v814
        %v816 = vperm.slane %v664, 0
        %v817 = vmul.f32 %v815, %v816
        %v818 = vpack.c.bf16 %v817, %v817
        %v819 = vld [vmem:[#allocation14] sm:$0xf]
        %v820 = vld [vmem:[#allocation14 + $0x4] sm:$0xf]
        %v821 = vld [vmem:[#allocation14 + $0x8] sm:$0xf]
        %v822 = vld [vmem:[#allocation14 + $0xc] sm:$0xf]
        %v827 = vunpack.c.l.b16 %v819
        %v828 = vunpack.c.l.b16 %v820
        %v829 = vunpack.c.l.b16 %v821
        %v830 = vunpack.c.l.b16 %v822
        %v831 = vpack.c.b16 %v828, %v827
        %v832 = vpack.c.b16 %v830, %v829
        %v836 = vsel %vm792, %v818, 0
        %838 = vmatpush.bf16.msra.mxu0 0
        %839 = vmatpush.bf16.msra.mxu0 0
        %840 = vmatpush.bf16.msra.mxu0 0
        %841 = vmatpush.bf16.msra.mxu0 0
        %842 = vmatpush.bf16.msra.mxu0 0
        %843 = vmatpush.bf16.msra.mxu0 0
        %844 = vmatpush.bf16.msra.mxu0 %v832
        %845 = vmatpush.bf16.msra.mxu0 %v831
        %846 = vmatmul.bf16.gmra.mxu0 %v836
        %v847 = vpop.f32.mrf.mxu0
        %v848 = vadd.f32 0.0, %v847
        %v849 = vpop.f32.mrf.mxu0
        %850 = vdwg.mxu0
        %v851 = vld [vmem:[#allocation17 + $0x4] sm:$0x1]
        %v852 = vperm.slane %v851, 0
        %v853 = vadd.f32 %v848, %v852
        %v854 = vld [vmem:[#allocation17 + $0x5] sm:$0x1]
        %v855 = vperm.slane %v854, 0
        %857 = vrot.lane.b32.xlu0 %v855, 32
        %v858 = vpop.permute.xlu0 %857
        %v860 = vadd.f32 %v848, %v858
        %v861 = vld [vmem:[%s590] sm:$0xff]
        %863 = vrot.lane.b32.xlu0 %v861, 8
        %v864 = vpop.permute.xlu0 %863
        %866 = vrot.lane.b32.xlu0 %v861, 16
        %v867 = vpop.permute.xlu0 %866
        %869 = vrot.lane.b32.xlu0 %v861, 24
        %v870 = vpop.permute.xlu0 %869
        %vm872 = vcmask 64512
        %v873 = vsel %vm872, %v861, %v864
        %vm874 = vcmask 130048
        %v875 = vsel %vm874, %v873, %v867
        %vm876 = vcmask 195584
        %v877 = vsel %vm876, %v875, %v870
        %v878 = vmul.f32 %v853, %v877
        %v879 = vld [vmem:[%s600] sm:$0xff]
        %881 = vrot.lane.b32.xlu0 %v879, 8
        %v882 = vpop.permute.xlu0 %881
        %884 = vrot.lane.b32.xlu0 %v879, 16
        %v885 = vpop.permute.xlu0 %884
        %887 = vrot.lane.b32.xlu0 %v879, 24
        %v888 = vpop.permute.xlu0 %887
        %v890 = vsel %vm872, %v879, %v882
        %v891 = vsel %vm874, %v890, %v885
        %v892 = vsel %vm876, %v891, %v888
        %894 = vrot.lane.b32.xlu0 %v892, 32
        %v895 = vpop.permute.xlu0 %894
        %v897 = vmul.f32 %v860, %v895
        %899 = vrot.lane.b32.xlu0 %v897, 96
        %v900 = vpop.permute.xlu0 %899
        %v902 = vadd.f32 %v878, %v900
        %v903 = vpack.c.bf16 %v902, %v902
        %vm904 = vcmask 257024
        %905 = vst.msk [vmem:[#allocation3] sm:$0xf] %vm904, %v903
        %v906 = vld [vmem:[#allocation17 + $0x6] sm:$0x1]
        %v907 = vperm.slane %v906, 0
        %909 = vrot.lane.b32.xlu0 %v907, 64
        %v910 = vpop.permute.xlu0 %909
        %v912 = vadd.f32 %v848, %v910
        %v913 = vpack.c.bf16 %v912, %v912
        %915 = vrot.lane.b32.xlu0 %v913, 64
        %v916 = vpop.permute.xlu0 %915
        %918 = vst.msk [vmem:[#allocation4] sm:$0xf] %vm904, %v916
        %v919 = vld [vmem:[#allocation2] sm:$0xf]
        %v920 = vld [vmem:[#allocation3] sm:$0xf]
        %v922 = vsel %vm872, %v919, 0
        %v925 = vsel %vm872, %v920, 0
        %927 = vmatpush.bf16.xpose.msra.mxu0 0
        %928 = vmatpush.bf16.xpose.msra.mxu0 0
        %929 = vmatpush.bf16.xpose.msra.mxu0 0
        %930 = vmatpush.bf16.xpose.msra.mxu0 0
        %931 = vmatpush.bf16.xpose.msra.mxu0 0
        %932 = vmatpush.bf16.xpose.msra.mxu0 0
        %933 = vmatpush.bf16.xpose.msra.mxu0 0
        %934 = vmatpush.bf16.xpose.msra.mxu0 %v925
        %935 = vmatmul.bf16.gmra.mxu0 %v922
        %v936 = vpop.f32.mrf.mxu0
        %v937 = vadd.f32 0.0, %v936
        %v938 = vpop.f32.mrf.mxu0
        %939 = vdwg.mxu0
        %v940 = vld [vmem:[#allocation6] sm:$0xff]
        %v941 = vsel %vm872, %v937, -inf
        %942 = vmax.xlane.f32.xlu0 %v941
        %v943 = vpop.xlane.xlu0 %942
        %v944 = vmax.f32 %v940, %v943
        %v945 = vsub.f32 %v940, %v944
        %v946 = vmul.f32 %v945, 1.442695
        %v947 = vpow.pop %v946
        %949 = vset.pattern.permute.xlu0 0
        %950 = vperm.xlu0 %949, %v944
        %v951 = vpop.permute.xlu0 %950
        %v953 = vsub.f32 %v937, %v951
        %v954 = vmul.f32 %v953, 1.442695
        %v955 = vpow.pop %v954
        %v956 = vld [vmem:[#allocation7] sm:$0xff]
        %v957 = vmul.f32 %v947, %v956
        %v958 = vsel %vm872, %v955, 0.0
        %959 = vadd.xlane.f32.xlu0 %v958
        %v960 = vpop.xlane.xlu0 %959
        %v961 = vadd.f32 %v957, %v960
        %vm962 = vcmask 7168
        %963 = vst.msk [vmem:[#allocation7] sm:$0xff] %vm962, %v961
        %v964 = vpack.c.bf16 %v955, %v955
        %v965 = vld [vmem:[#allocation4] sm:$0xf]
        %v967 = vsel %vm872, %v964, 0
        %vm969 = vcmask 1043456
        %v971 = vsel %vm969, %v965, 0
        %973 = vmatpush.bf16.msra.mxu0 0
        %974 = vmatpush.bf16.msra.mxu0 0
        %975 = vmatpush.bf16.msra.mxu0 0
        %976 = vmatpush.bf16.msra.mxu0 0
        %977 = vmatpush.bf16.msra.mxu0 0
        %978 = vmatpush.bf16.msra.mxu0 0
        %979 = vmatpush.bf16.msra.mxu0 0
        %980 = vmatpush.bf16.msra.mxu0 %v971
        %981 = vmatmul.bf16.gmra.mxu0 %v967
        %v982 = vpop.f32.mrf.mxu0
        %v983 = vadd.f32 0.0, %v982
        %v984 = vpop.f32.mrf.mxu0
        %985 = vdwg.mxu0
        %v986 = vld [vmem:[#allocation5] sm:$0xff]
        %988 = vset.pattern.permute.xlu0 0
        %989 = vperm.xlu0 %988, %v947
        %v990 = vpop.permute.xlu0 %989
        %v992 = vmul.f32 %v990, %v986
        %v993 = vadd.f32 %v992, %v983
        %994 = vst.msk [vmem:[#allocation5] sm:$0xff] %vm872, %v993
        %995 = vst.msk [vmem:[#allocation6] sm:$0xff] %vm962, %v944
        %v996 = vld [vmem:[#allocation2] sm:$0xf]
        %v997 = vld [vmem:[#allocation3] sm:$0xf]
        %v999 = vunpack.c.l.b16 %v996
        %v1000 = vpack.c.b16 %v999, %v999
        %1001 = vrot.lane.b32.xlu0 %v1000, 120
        %v1002 = vpop.permute.xlu0 %1001
        %v1004 = vunpack.c.l.b16 %v997
        %v1005 = vpack.c.b16 %v1004, %v1004
        %1006 = vrot.lane.b32.xlu0 %v1005, 120
        %v1007 = vpop.permute.xlu0 %1006
        %v1009 = vsel %vm872, %v1002, 0
        %v1012 = vsel %vm872, %v1007, 0
        %1014 = vmatpush.bf16.xpose.msra.mxu0 0
        %1015 = vmatpush.bf16.xpose.msra.mxu0 0
        %1016 = vmatpush.bf16.xpose.msra.mxu0 0
        %1017 = vmatpush.bf16.xpose.msra.mxu0 0
        %1018 = vmatpush.bf16.xpose.msra.mxu0 0
        %1019 = vmatpush.bf16.xpose.msra.mxu0 0
        %1020 = vmatpush.bf16.xpose.msra.mxu0 0
        %1021 = vmatpush.bf16.xpose.msra.mxu0 %v1012
        %1022 = vmatmul.bf16.gmra.mxu0 %v1009
        %v1023 = vpop.f32.mrf.mxu0
        %v1024 = vadd.f32 0.0, %v1023
        %v1025 = vpop.f32.mrf.mxu0
        %1026 = vdwg.mxu0
        %v1027 = vld [vmem:[#allocation6] sm:$0xff]
        %v1028 = vsel %vm872, %v1024, -inf
        %1029 = vmax.xlane.f32.xlu0 %v1028
        %v1030 = vpop.xlane.xlu0 %1029
        %v1031 = vmax.f32 %v1027, %v1030
        %v1032 = vsub.f32 %v1027, %v1031
        %v1033 = vmul.f32 %v1032, 1.442695
        %v1034 = vpow.pop %v1033
        %1036 = vset.pattern.permute.xlu0 1
        %1037 = vperm.xlu0 %1036, %v1031
        %v1038 = vpop.permute.xlu0 %1037
        %v1040 = vsub.f32 %v1024, %v1038
        %v1041 = vmul.f32 %v1040, 1.442695
        %v1042 = vpow.pop %v1041
        %v1043 = vld [vmem:[#allocation7] sm:$0xff]
        %v1044 = vmul.f32 %v1034, %v1043
        %v1045 = vsel %vm872, %v1042, 0.0
        %1046 = vadd.xlane.f32.xlu0 %v1045
        %v1047 = vpop.xlane.xlu0 %1046
        %v1048 = vadd.f32 %v1044, %v1047
        %vm1049 = vcmask 15368
        %1050 = vst.msk [vmem:[#allocation7] sm:$0xff] %vm1049, %v1048
        %v1051 = vpack.c.bf16 %v1042, %v1042
        %v1052 = vld [vmem:[#allocation4] sm:$0xf]
        %v1054 = vunpack.c.l.b16 %v1052
        %v1055 = vpack.c.b16 %v1054, %v1054
        %1056 = vrot.lane.b32.xlu0 %v1055, 120
        %v1057 = vpop.permute.xlu0 %1056
        %v1059 = vsel %vm872, %v1051, 0
        %v1062 = vsel %vm969, %v1057, 0
        %1064 = vmatpush.bf16.msra.mxu0 0
        %1065 = vmatpush.bf16.msra.mxu0 0
        %1066 = vmatpush.bf16.msra.mxu0 0
        %1067 = vmatpush.bf16.msra.mxu0 0
        %1068 = vmatpush.bf16.msra.mxu0 0
        %1069 = vmatpush.bf16.msra.mxu0 0
        %1070 = vmatpush.bf16.msra.mxu0 0
        %1071 = vmatpush.bf16.msra.mxu0 %v1062
        %1072 = vmatmul.bf16.gmra.mxu0 %v1059
        %v1073 = vpop.f32.mrf.mxu0
        %v1074 = vadd.f32 0.0, %v1073
        %v1075 = vpop.f32.mrf.mxu0
        %1076 = vdwg.mxu0
        %v1077 = vld [vmem:[#allocation5] sm:$0xff]
        %1079 = vset.pattern.permute.xlu0 1
        %1080 = vperm.xlu0 %1079, %v1034
        %v1081 = vpop.permute.xlu0 %1080
        %v1083 = vmul.f32 %v1081, %v1077
        %1085 = vrot.lane.b32.xlu0 %v1074, 8
        %v1086 = vpop.permute.xlu0 %1085
        %v1088 = vadd.f32 %v1083, %v1086
        %vm1089 = vcmask 130112
        %1090 = vst.msk [vmem:[#allocation5] sm:$0xff] %vm1089, %v1088
        %1091 = vst.msk [vmem:[#allocation6] sm:$0xff] %vm1049, %v1031
        %v1092 = vld [vmem:[#allocation2] sm:$0xf]
        %v1093 = vld [vmem:[#allocation3] sm:$0xf]
        %v1095 = vunpack.c.l.b16 %v1092
        %v1096 = vpack.c.b16 %v1095, %v1095
        %1097 = vrot.lane.b32.xlu0 %v1096, 112
        %v1098 = vpop.permute.xlu0 %1097
        %v1100 = vunpack.c.l.b16 %v1093
        %v1101 = vpack.c.b16 %v1100, %v1100
        %1102 = vrot.lane.b32.xlu0 %v1101, 112
        %v1103 = vpop.permute.xlu0 %1102
        %v1105 = vsel %vm872, %v1098, 0
        %v1108 = vsel %vm872, %v1103, 0
        %1110 = vmatpush.bf16.xpose.msra.mxu0 0
        %1111 = vmatpush.bf16.xpose.msra.mxu0 0
        %1112 = vmatpush.bf16.xpose.msra.mxu0 0
        %1113 = vmatpush.bf16.xpose.msra.mxu0 0
        %1114 = vmatpush.bf16.xpose.msra.mxu0 0
        %1115 = vmatpush.bf16.xpose.msra.mxu0 0
        %1116 = vmatpush.bf16.xpose.msra.mxu0 0
        %1117 = vmatpush.bf16.xpose.msra.mxu0 %v1108
        %1118 = vmatmul.bf16.gmra.mxu0 %v1105
        %v1119 = vpop.f32.mrf.mxu0
        %v1120 = vadd.f32 0.0, %v1119
        %v1121 = vpop.f32.mrf.mxu0
        %1122 = vdwg.mxu0
        %v1123 = vld [vmem:[#allocation6] sm:$0xff]
        %v1124 = vsel %vm872, %v1120, -inf
        %1125 = vmax.xlane.f32.xlu0 %v1124
        %v1126 = vpop.xlane.xlu0 %1125
        %v1127 = vmax.f32 %v1123, %v1126
        %v1128 = vsub.f32 %v1123, %v1127
        %v1129 = vmul.f32 %v1128, 1.442695
        %v1130 = vpow.pop %v1129
        %1132 = vset.pattern.permute.xlu0 2
        %1133 = vperm.xlu0 %1132, %v1127
        %v1134 = vpop.permute.xlu0 %1133
        %v1136 = vsub.f32 %v1120, %v1134
        %v1137 = vmul.f32 %v1136, 1.442695
        %v1138 = vpow.pop %v1137
        %v1139 = vld [vmem:[#allocation7] sm:$0xff]
        %v1140 = vmul.f32 %v1130, %v1139
        %v1141 = vsel %vm872, %v1138, 0.0
        %1142 = vadd.xlane.f32.xlu0 %v1141
        %v1143 = vpop.xlane.xlu0 %1142
        %v1144 = vadd.f32 %v1140, %v1143
        %vm1145 = vcmask 23568
        %1146 = vst.msk [vmem:[#allocation7] sm:$0xff] %vm1145, %v1144
        %v1147 = vpack.c.bf16 %v1138, %v1138
        %v1148 = vld [vmem:[#allocation4] sm:$0xf]
        %v1150 = vunpack.c.l.b16 %v1148
        %v1151 = vpack.c.b16 %v1150, %v1150
        %1152 = vrot.lane.b32.xlu0 %v1151, 112
        %v1153 = vpop.permute.xlu0 %1152
        %v1155 = vsel %vm872, %v1147, 0
        %v1158 = vsel %vm969, %v1153, 0
        %1160 = vmatpush.bf16.msra.mxu0 0
        %1161 = vmatpush.bf16.msra.mxu0 0
        %1162 = vmatpush.bf16.msra.mxu0 0
        %1163 = vmatpush.bf16.msra.mxu0 0
        %1164 = vmatpush.bf16.msra.mxu0 0
        %1165 = vmatpush.bf16.msra.mxu0 0
        %1166 = vmatpush.bf16.msra.mxu0 0
        %1167 = vmatpush.bf16.msra.mxu0 %v1158
        %1168 = vmatmul.bf16.gmra.mxu0 %v1155
        %v1169 = vpop.f32.mrf.mxu0
        %v1170 = vadd.f32 0.0, %v1169
        %v1171 = vpop.f32.mrf.mxu0
        %1172 = vdwg.mxu0
        %v1173 = vld [vmem:[#allocation5] sm:$0xff]
        %1175 = vset.pattern.permute.xlu0 2
        %1176 = vperm.xlu0 %1175, %v1130
        %v1177 = vpop.permute.xlu0 %1176
        %v1179 = vmul.f32 %v1177, %v1173
        %1181 = vrot.lane.b32.xlu0 %v1170, 16
        %v1182 = vpop.permute.xlu0 %1181
        %v1184 = vadd.f32 %v1179, %v1182
        %vm1185 = vcmask 195712
        %1186 = vst.msk [vmem:[#allocation5] sm:$0xff] %vm1185, %v1184
        %1187 = vst.msk [vmem:[#allocation6] sm:$0xff] %vm1145, %v1127
        %v1188 = vld [vmem:[#allocation2] sm:$0xf]
        %v1189 = vld [vmem:[#allocation3] sm:$0xf]
        %v1191 = vunpack.c.l.b16 %v1188
        %v1192 = vpack.c.b16 %v1191, %v1191
        %1193 = vrot.lane.b32.xlu0 %v1192, 104
        %v1194 = vpop.permute.xlu0 %1193
        %v1196 = vunpack.c.l.b16 %v1189
        %v1197 = vpack.c.b16 %v1196, %v1196
        %1198 = vrot.lane.b32.xlu0 %v1197, 104
        %v1199 = vpop.permute.xlu0 %1198
        %v1201 = vsel %vm872, %v1194, 0
        %v1204 = vsel %vm872, %v1199, 0
        %1206 = vmatpush.bf16.xpose.msra.mxu0 0
        %1207 = vmatpush.bf16.xpose.msra.mxu0 0
        %1208 = vmatpush.bf16.xpose.msra.mxu0 0
        %1209 = vmatpush.bf16.xpose.msra.mxu0 0
        %1210 = vmatpush.bf16.xpose.msra.mxu0 0
        %1211 = vmatpush.bf16.xpose.msra.mxu0 0
        %1212 = vmatpush.bf16.xpose.msra.mxu0 0
        %1213 = vmatpush.bf16.xpose.msra.mxu0 %v1204
        %1214 = vmatmul.bf16.gmra.mxu0 %v1201
        %v1215 = vpop.f32.mrf.mxu0
        %v1216 = vadd.f32 0.0, %v1215
        %v1217 = vpop.f32.mrf.mxu0
        %1218 = vdwg.mxu0
        %v1219 = vld [vmem:[#allocation6] sm:$0xff]
        %v1220 = vsel %vm872, %v1216, -inf
        %1221 = vmax.xlane.f32.xlu0 %v1220
        %v1222 = vpop.xlane.xlu0 %1221
        %v1223 = vmax.f32 %v1219, %v1222
        %v1224 = vsub.f32 %v1219, %v1223
        %v1225 = vmul.f32 %v1224, 1.442695
        %v1226 = vpow.pop %v1225
        %1228 = vset.pattern.permute.xlu0 3
        %1229 = vperm.xlu0 %1228, %v1223
        %v1230 = vpop.permute.xlu0 %1229
        %v1232 = vsub.f32 %v1216, %v1230
        %v1233 = vmul.f32 %v1232, 1.442695
        %v1234 = vpow.pop %v1233
        %v1235 = vld [vmem:[#allocation7] sm:$0xff]
        %v1236 = vmul.f32 %v1226, %v1235
        %v1237 = vsel %vm872, %v1234, 0.0
        %1238 = vadd.xlane.f32.xlu0 %v1237
        %v1239 = vpop.xlane.xlu0 %1238
        %v1240 = vadd.f32 %v1236, %v1239
        %vm1241 = vcmask 31768
        %1242 = vst.msk [vmem:[#allocation7] sm:$0xff] %vm1241, %v1240
        %v1243 = vpack.c.bf16 %v1234, %v1234
        %v1244 = vld [vmem:[#allocation4] sm:$0xf]
        %v1246 = vunpack.c.l.b16 %v1244
        %v1247 = vpack.c.b16 %v1246, %v1246
        %1248 = vrot.lane.b32.xlu0 %v1247, 104
        %v1249 = vpop.permute.xlu0 %1248
        %v1251 = vsel %vm872, %v1243, 0
        %v1254 = vsel %vm969, %v1249, 0
        %1256 = vmatpush.bf16.msra.mxu0 0
        %1257 = vmatpush.bf16.msra.mxu0 0
        %1258 = vmatpush.bf16.msra.mxu0 0
        %1259 = vmatpush.bf16.msra.mxu0 0
        %1260 = vmatpush.bf16.msra.mxu0 0
        %1261 = vmatpush.bf16.msra.mxu0 0
        %1262 = vmatpush.bf16.msra.mxu0 0
        %1263 = vmatpush.bf16.msra.mxu0 %v1254
        %1264 = vmatmul.bf16.gmra.mxu0 %v1251
        %v1265 = vpop.f32.mrf.mxu0
        %v1266 = vadd.f32 0.0, %v1265
        %v1267 = vpop.f32.mrf.mxu0
        %1268 = vdwg.mxu0
        %v1269 = vld [vmem:[#allocation5] sm:$0xff]
        %1271 = vset.pattern.permute.xlu0 3
        %1272 = vperm.xlu0 %1271, %v1226
        %v1273 = vpop.permute.xlu0 %1272
        %v1275 = vmul.f32 %v1273, %v1269
        %1277 = vrot.lane.b32.xlu0 %v1266, 24
        %v1278 = vpop.permute.xlu0 %1277
        %v1280 = vadd.f32 %v1275, %v1278
        %vm1281 = vcmask 261312
        %1282 = vst.msk [vmem:[#allocation5] sm:$0xff] %vm1281, %v1280
        %1283 = vst.msk [vmem:[#allocation6] sm:$0xff] %vm1241, %v1223
        // Predicated region
        $region105: #{tpu_custom_call.1} parent=59 // pred_check
          %p1284 = pneg %p665
        $region106: #{tpu_custom_call.1} parent=59 // pred_check_branch
          %1286 = sbr.rel (%p1284) target = $region108
        $region107: #{tpu_custom_call.1} parent=59 // pred_region
          %v1287 = vld [vmem:[#allocation5] sm:$0xff]
          %v1288 = vld [vmem:[#allocation7] sm:$0xff]
          %v1289 = vrcp.pop %v1288
          %1291 = vset.pattern.permute.xlu0 0
          %1292 = vperm.xlu0 %1291, %v1289
          %v1293 = vpop.permute.xlu0 %1292
          %v1295 = vmul.f32 %v1287, %v1293
          %v1296 = vpack.c.bf16 %v1295, %v1295
          %1297 = vset.pattern.permute.xlu0 1
          %1298 = vperm.xlu0 %1297, %v1289
          %v1299 = vpop.permute.xlu0 %1298
          %v1301 = vmul.f32 %v1287, %v1299
          %v1302 = vpack.c.bf16 %v1301, %v1301
          %1303 = vset.pattern.permute.xlu0 2
          %1304 = vperm.xlu0 %1303, %v1289
          %v1305 = vpop.permute.xlu0 %1304
          %v1307 = vmul.f32 %v1287, %v1305
          %v1308 = vpack.c.bf16 %v1307, %v1307
          %1309 = vset.pattern.permute.xlu0 3
          %1310 = vperm.xlu0 %1309, %v1289
          %v1311 = vpop.permute.xlu0 %1310
          %v1313 = vmul.f32 %v1287, %v1311
          %v1314 = vpack.c.bf16 %v1313, %v1313
          %v1317 = vsel %vm872, %v1296, %v1302
          %v1319 = vsel %vm874, %v1317, %v1308
          %v1321 = vsel %vm876, %v1319, %v1314
          %v1322 = vld [vmem:[#allocation16] sm:$0xf]
          %v1323 = vld [vmem:[#allocation16 + $0x4] sm:$0xf]
          %v1324 = vld [vmem:[#allocation16 + $0x8] sm:$0xf]
          %v1325 = vld [vmem:[#allocation16 + $0xc] sm:$0xf]
          %v1326 = vld [vmem:[#allocation17 + $0x7] sm:$0x1]
          %v1327 = vperm.slane %v1326, 0
          %v1332 = vunpack.c.l.b16 %v1322
          %v1333 = vunpack.c.l.b16 %v1323
          %v1334 = vunpack.c.l.b16 %v1324
          %v1335 = vunpack.c.l.b16 %v1325
          %v1336 = vpack.c.b16 %v1333, %v1332
          %v1337 = vpack.c.b16 %v1335, %v1334
          %v1340 = vsel %vm792, %v1321, 0
          %1342 = vmatpush.bf16.msra.mxu0 0
          %1343 = vmatpush.bf16.msra.mxu0 0
          %1344 = vmatpush.bf16.msra.mxu0 0
          %1345 = vmatpush.bf16.msra.mxu0 0
          %1346 = vmatpush.bf16.msra.mxu0 0
          %1347 = vmatpush.bf16.msra.mxu0 0
          %1348 = vmatpush.bf16.msra.mxu0 %v1337
          %1349 = vmatpush.bf16.msra.mxu0 %v1336
          %1350 = vmatmul.bf16.gmra.mxu0 %v1340
          %v1351 = vpop.f32.mrf.mxu0
          %v1352 = vadd.f32 %v1327, %v1351
          %v1353 = vpop.f32.mrf.mxu0
          %1354 = vdwg.mxu0
          %v1355 = vld [vmem:[%s530] sm:$0xff]
          %v1356 = vadd.f32 %v1355, %v1352
          %1357 = vst.msk [vmem:[%s662] sm:$0xff] %vm792, %v1356
        $region108: #{tpu_custom_call.1} parent=59 // pred_fallthru
          _
        %s1358 = sand.u32 %s313, 1
        %s1359 = scalar_lea.sflag [#allocation10], %s1358
        %s1360 = sand.u32 %s313, 1
        %s1361 = smul.addr %s1360, 8
        %s1362 = scalar_lea.vmem [#allocation23], %s1361
        // Predicated region
        $region109: #{tpu_custom_call.1} parent=59 // pred_check
          %p1363 = pneg %p323
        $region110: #{tpu_custom_call.1} parent=59 // pred_check_branch
          %1365 = sbr.rel (%p1363) target = $region112
        $region111: #{tpu_custom_call.1} parent=59 // pred_region
          %1367 = vsyncadd %s1359, 0
          %s1368 = sadd.s32 %s38, %s37
          %s1369 = smul.addr %s1368, 8
          %s1370 = scalar_lea.hbm %s10, %s1369
          %s1372 = sshll.u32 %s1362, 4
          %s1373 = int_to_ptr.vmem [resolvable:$true] %s1372
          %s1374 = sshll.u32 %s1370, 4
          %s1375 = int_to_ptr.hbm [resolvable:$true] %s1374
          %1377 = dma.vmem_to_hbm [thread:$0]  %s1373, 128, %s1375, %s1359
        $region112: #{tpu_custom_call.1} parent=59 // pred_fallthru
          _
      $region60: #{tpu_custom_call.1} parent=5 // pred_fallthru
        _
      %p1378 = scmp.le.s32.totalorder 2, %s27
      // Predicated region
      $region113: #{tpu_custom_call.1} parent=5 // pred_check
        %p1379 = pneg %p1378
      $region114: #{tpu_custom_call.1} parent=5 // pred_check_branch
        %1381 = sbr.rel (%p1379) target = $region116
      $region115: #{tpu_custom_call.1} parent=5 // pred_region
        %s1382 = ssub.s32 %s27, 2
        // Predicated region
        $region117: #{tpu_custom_call.1} parent=115 // pred_check
          %p1383 = pneg %p329
        $region118: #{tpu_custom_call.1} parent=115 // pred_check_branch
          %1385 = sbr.rel (%p1383) target = $region120
        $region119: #{tpu_custom_call.1} parent=115 // pred_region
          %s1386 = sand.u32 %s314, 1
          %s1387 = scalar_lea.sflag [#allocation10], %s1386
          %s1388 = sand.u32 %s314, 1
          %s1389 = smul.addr %s1388, 8
          %s1390 = scalar_lea.vmem [#allocation23], %s1389
          %1392 = dma.done %s1387, 128
        $region120: #{tpu_custom_call.1} parent=115 // pred_fallthru
          _
      $region116: #{tpu_custom_call.1} parent=5 // pred_fallthru
        _
    $region6: #{tpu_custom_call.1} parent=1 // loop_footer
      %s31 = sadd.s32 1, %s27
    $region7: #{tpu_custom_call.1} parent=1 // loop_footer_branch
      %26 = sbr.rel target = $region3
    $region8: #{tpu_custom_call.1} parent=1 // loop_exit
      _
    %1393 = vsyncpa [#allocation9], 1
    %s1394 = scalar_lea.sflag [#allocation9], 1
    %1395 = vsyncpa %s1394, 1
    %1396 = vsyncpa [#allocation12], 1
    %s1397 = scalar_lea.sflag [#allocation12], 1
    %1398 = vsyncpa %s1397, 1
    %1399 = vsyncpa [#allocation15], 1
    %1400 = vsyncpa [#allocation18], 1
    %1401 = vsyncpa [#allocation10], 1
    %s1402 = scalar_lea.sflag [#allocation10], 1
    %1403 = vsyncpa %s1402, 1

</llo_original>
